<compile_context>
chip_gen: v6e
topology: v6e:2x2x1
jax: 0.10.0
libtpu: 0.0.40
codegen_flags: <defaults>
</compile_context>

<pallas_src>
import functools

import jax
import jax.numpy as jnp
from jax.experimental import pallas as pl
from jax.experimental.pallas import tpu as pltpu


def _pick_tile_h(H, W, max_rows=128):
    """Largest row-tile whose flattened size (tile_h*W) is a multiple of 128
    (lane-dense output blocks) and bounded; falls back to the full H extent
    (block == full dim, which always satisfies the (8,128) rule)."""
    for t in range(min(H, max(max_rows // W, 1)), 0, -1):
        if H % t == 0 and (t * W) % 128 == 0:
            return t
    return H


def _aspp_kernel(x_ref, w_ref, b_ref, o_ref, col_ref, *,
                 W, C, OC, tile_h, dilations, paddings, p_max):
    """One grid step = (batch element n, row tile t).

    x_ref  : (1, Hp, Wp, C)      padded NHWC input for batch n (fetched once per n)
    w_ref  : (B*9*C, OC_pad)     folded bf16 weights, row order (branch, ky, kx, c)
    b_ref  : (1, OC_pad)         summed branch biases (f32, zero padded)
    o_ref  : (1, OC, tile_h*W)   lane-dense NCHW output tile (flat H*W on lanes)
    col_ref: (tile_h*W, B*9*C)   im2col scratch (f32; cast to bf16 at the matmul)
    """
    t = pl.program_id(1)
    row0 = pl.multiple_of(t * tile_h, tile_h)       # first output row of this tile
    tile_hw = tile_h * W
    B = len(dilations)

    # im2col: gather every branch/tap window of this row tile into one buffer.
    # The slice copies happen exactly once, straight into the VMEM scratch.
    for bi in range(B):
        d = dilations[bi]
        off = p_max - paddings[bi]                  # static per-branch offset
        for ky in range(3):
            for kx in range(3):
                k0 = ((bi * 3 + ky) * 3 + kx) * C
                win = x_ref[0,
                            pl.ds(row0 + off + ky * d, tile_h),
                            pl.ds(off + kx * d, W),
                            :]                      # (tile_h, W, C)
                col_ref[:, k0:k0 + C] = win.reshape(tile_hw, C).astype(col_ref.dtype)

    # Single fused MXU matmul over K = B*9*C, bf16 inputs, f32 accumulate.
    acc = jnp.dot(col_ref[...].astype(jnp.bfloat16), w_ref[...],
                  preferred_element_type=jnp.float32)          # (tile_hw, OC_pad)
    acc = acc + b_ref[...]                                     # summed bias, one add

    # One XLU transpose -> (OC_pad, tile_hw); store only the real OC rows,
    # lane-dense (tile_hw on the 128-lane axis), directly in NCHW layout.
    o_ref[0] = jnp.transpose(acc)[:OC, :].astype(o_ref.dtype)


def aspp_v2_pallas(x_nchw, weights, biases, dilation_rates, padding_rates):
    """x_nchw: (N, C, H, W). weights: (B, OC, C, 3, 3) (PyTorch OIHW per branch).
    biases: (B, OC). Returns (N, OC, H, W)."""
    dilation_rates = tuple(int(d) for d in dilation_rates)
    padding_rates = tuple(int(p) for p in padding_rates)
    # With k=3, stride=1 all branches share the output shape iff padding == dilation
    # (the standard ASPP_V2 configuration).
    for d, p in zip(dilation_rates, padding_rates):
        assert p == d, "ASPP_V2 branches must have padding == dilation to share an output shape"

    N, C, H, W = x_nchw.shape
    B, OC = biases.shape
    p_max = max(padding_rates)
    K = B * 9 * C
    OC_PAD = ((OC + 127) // 128) * 128          # zero-pad OC for full-width vmatmul

    # ---- wrapper glue (weight folding is cheap and reusable across calls) ----
    x_nhwc = jnp.transpose(x_nchw, (0, 2, 3, 1))
    x_pad = jnp.pad(x_nhwc, ((0, 0), (p_max, p_max), (p_max, p_max), (0, 0)))
    Hp, Wp = H + 2 * p_max, W + 2 * p_max

    # Fold branches + taps into one (K, OC_pad) bf16 matrix; row order must match
    # the kernel's im2col column order: (branch, ky, kx, c).
    w_folded = jnp.transpose(weights, (0, 3, 4, 2, 1)).reshape(K, OC)
    w_folded = jnp.pad(w_folded, ((0, 0), (0, OC_PAD - OC))).astype(jnp.bfloat16)

    # All branch biases add to the same output -> sum them once here.
    b_total = jnp.pad(jnp.sum(biases, axis=0).astype(jnp.float32),
                      (0, OC_PAD - OC)).reshape(1, OC_PAD)

    tile_h = _pick_tile_h(H, W)
    n_tiles = H // tile_h
    tile_hw = tile_h * W

    kernel = functools.partial(
        _aspp_kernel, W=W, C=C, OC=OC, tile_h=tile_h,
        dilations=dilation_rates, paddings=padding_rates, p_max=p_max,
    )

    out_flat = pl.pallas_call(
        kernel,
        out_shape=jax.ShapeDtypeStruct((N, OC, H * W), x_nchw.dtype),
        grid_spec=pltpu.PrefetchScalarGridSpec(
            num_scalar_prefetch=0,
            grid=(N, n_tiles),
            in_specs=[
                # Padded input: same block for every row tile of a batch element,
                # so Pallas DMAs it once per n and revisits it across t.
                pl.BlockSpec((1, Hp, Wp, C), lambda n, t: (n, 0, 0, 0)),
                pl.BlockSpec((K, OC_PAD), lambda n, t: (0, 0)),
                pl.BlockSpec((1, OC_PAD), lambda n, t: (0, 0)),
            ],
            out_specs=pl.BlockSpec((1, OC, tile_hw), lambda n, t: (n, 0, t)),
            scratch_shapes=[pltpu.VMEM((tile_hw, K), jnp.float32)],
        ),
        compiler_params=pltpu.CompilerParams(
            dimension_semantics=("parallel", "parallel"),
            vmem_limit_bytes=32 * 1024 * 1024,
        ),
    )(x_pad, w_folded, b_total)

    # (N, OC, H*W) -> (N, OC, H, W): pure reshape, no transpose / extra HBM pass.
    return out_flat.reshape(N, OC, H, W)


def aspp_v2_reference(x_nchw, weights, biases, dilation_rates, padding_rates):
    """Pure-JAX reference using lax.conv_general_dilated (matches nn.Conv2d)."""
    out = None
    B = weights.shape[0]
    for bi in range(B):
        d = int(dilation_rates[bi])
        p = int(padding_rates[bi])
        y = jax.lax.conv_general_dilated(
            x_nchw, weights[bi],
            window_strides=(1, 1),
            padding=((p, p), (p, p)),
            rhs_dilation=(d, d),
            dimension_numbers=("NCHW", "OIHW", "NCHW"),
        ) + biases[bi][None, :, None, None]
        out = y if out is None else out + y
    return out


if __name__ == "__main__":
    # Small, deterministic config consistent with the module's __init__.
    batch, in_dim, H, W = 2, 4, 16, 16
    num_classes = 3
    dilation_rates = (1, 2, 3)
    padding_rates = (1, 2, 3)
    B = len(dilation_rates)

    key = jax.random.PRNGKey(0)
    kx, kw, kb = jax.random.split(key, 3)
    x = jax.random.normal(kx, (batch, in_dim, H, W), dtype=jnp.float32)
    # PyTorch OIHW weight layout per branch, stacked: (B, OC, IC, 3, 3).
    weights = 0.1 * jax.random.normal(kw, (B, num_classes, in_dim, 3, 3), dtype=jnp.float32)
    biases = 0.1 * jax.random.normal(kb, (B, num_classes), dtype=jnp.float32)

    out = aspp_v2_pallas(x, weights, biases, dilation_rates, padding_rates)
    out = jax.block_until_ready(out)

    ref = aspp_v2_reference(x, weights, biases, dilation_rates, padding_rates)
    assert out.shape == (batch, num_classes, H, W)
    err = float(jnp.max(jnp.abs(out - ref)))
    # Matmul inputs are bf16 (f32 accumulate), so tolerance reflects bf16 rounding
    # of x and w over a K = B*9*C = 108 contraction.
    assert err < 5e-2, f"max abs err {err}"
    print("KERNEL_OK")
</pallas_src>

<mosaic_0001>
module attributes {stable_mosaic.version = 11 : i64} {
  func.func @_aspp_kernel(%arg0: i32, %arg1: i32, %arg2: memref<1x22x22x4xf32, #tpu.memory_space<vmem>>, %arg3: memref<108x128xbf16, #tpu.memory_space<vmem>>, %arg4: memref<1x128xf32, #tpu.memory_space<vmem>>, %arg5: memref<1x3x128xf32, #tpu.memory_space<vmem>>, %arg6: memref<128x108xf32, #tpu.memory_space<vmem>>) attributes {dimension_semantics = [#tpu.dimension_semantics<parallel>, #tpu.dimension_semantics<parallel>], iteration_bounds = array<i64: 2, 2>, scalar_prefetch = 0 : i64, scratch_operands = 1 : i64, tpu.core_type = #tpu.core_type<tc>, window_params = [{transform_indices = @transform_0, window_bounds = array<i64: 1, 22, 22, 4>}, {pipeline_mode = #tpu.pipeline_mode<synchronous>, transform_indices = @transform_1, window_bounds = array<i64: 108, 128>}, {pipeline_mode = #tpu.pipeline_mode<synchronous>, transform_indices = @transform_2, window_bounds = array<i64: 1, 128>}, {transform_indices = @transform_3, window_bounds = array<i64: 1, 3, 128>}]} {
    %c8_i32 = arith.constant 8 : i32
    %0 = arith.muli %arg1, %c8_i32 : i32
    %1 = tpu.assume_multiple %0, 8 : i32
    %c2_i32 = arith.constant 2 : i32
    %2 = arith.addi %1, %c2_i32 : i32
    %c0_i32 = arith.constant 0 : i32
    %3 = arith.addi %2, %c0_i32 : i32
    %c0 = arith.constant 0 : index
    %4 = arith.index_cast %3 : i32 to index
    %c2 = arith.constant 2 : index
    %c0_0 = arith.constant 0 : index
    %5 = vector.load %arg2[%c0, %4, %c2, %c0_0] : memref<1x22x22x4xf32, #tpu.memory_space<vmem>>, vector<1x8x16x4xf32>
    %6 = vector.shape_cast %5 : vector<1x8x16x4xf32> to vector<8x16x4xf32>
    %7 = vector.shape_cast %6 : vector<8x16x4xf32> to vector<128x4xf32>
    %c0_1 = arith.constant 0 : index
    %c0_2 = arith.constant 0 : index
    %8 = vector.load %arg6[%c0_1, %c0_2] : memref<128x108xf32, #tpu.memory_space<vmem>>, vector<128x4xf32>
    tpu.vector_store %arg6[%c0_1, %c0_2], %7 {strides = array<i32>} : memref<128x108xf32, #tpu.memory_space<vmem>>, vector<128x4xf32>,
    %c2_i32_3 = arith.constant 2 : i32
    %9 = arith.addi %1, %c2_i32_3 : i32
    %c0_i32_4 = arith.constant 0 : i32
    %10 = arith.addi %9, %c0_i32_4 : i32
    %c0_5 = arith.constant 0 : index
    %11 = arith.index_cast %10 : i32 to index
    %c3 = arith.constant 3 : index
    %c0_6 = arith.constant 0 : index
    %12 = vector.load %arg2[%c0_5, %11, %c3, %c0_6] : memref<1x22x22x4xf32, #tpu.memory_space<vmem>>, vector<1x8x16x4xf32>
    %13 = vector.shape_cast %12 : vector<1x8x16x4xf32> to vector<8x16x4xf32>
    %14 = vector.shape_cast %13 : vector<8x16x4xf32> to vector<128x4xf32>
    %c0_7 = arith.constant 0 : index
    %c4 = arith.constant 4 : index
    %15 = vector.load %arg6[%c0_7, %c4] : memref<128x108xf32, #tpu.memory_space<vmem>>, vector<128x4xf32>
    tpu.vector_store %arg6[%c0_7, %c4], %14 {strides = array<i32>} : memref<128x108xf32, #tpu.memory_space<vmem>>, vector<128x4xf32>,
    %c2_i32_8 = arith.constant 2 : i32
    %16 = arith.addi %1, %c2_i32_8 : i32
    %c0_i32_9 = arith.constant 0 : i32
    %17 = arith.addi %16, %c0_i32_9 : i32
    %c0_10 = arith.constant 0 : index
    %18 = arith.index_cast %17 : i32 to index
    %c4_11 = arith.constant 4 : index
    %c0_12 = arith.constant 0 : index
    %19 = vector.load %arg2[%c0_10, %18, %c4_11, %c0_12] : memref<1x22x22x4xf32, #tpu.memory_space<vmem>>, vector<1x8x16x4xf32>
    %20 = vector.shape_cast %19 : vector<1x8x16x4xf32> to vector<8x16x4xf32>
    %21 = vector.shape_cast %20 : vector<8x16x4xf32> to vector<128x4xf32>
    %c0_13 = arith.constant 0 : index
    %c8 = arith.constant 8 : index
    %22 = vector.load %arg6[%c0_13, %c8] : memref<128x108xf32, #tpu.memory_space<vmem>>, vector<128x4xf32>
    tpu.vector_store %arg6[%c0_13, %c8], %21 {strides = array<i32>} : memref<128x108xf32, #tpu.memory_space<vmem>>, vector<128x4xf32>,
    %c2_i32_14 = arith.constant 2 : i32
    %23 = arith.addi %1, %c2_i32_14 : i32
    %c1_i32 = arith.constant 1 : i32
    %24 = arith.addi %23, %c1_i32 : i32
    %c0_15 = arith.constant 0 : index
    %25 = arith.index_cast %24 : i32 to index
    %c2_16 = arith.constant 2 : index
    %c0_17 = arith.constant 0 : index
    %26 = vector.load %arg2[%c0_15, %25, %c2_16, %c0_17] : memref<1x22x22x4xf32, #tpu.memory_space<vmem>>, vector<1x8x16x4xf32>
    %27 = vector.shape_cast %26 : vector<1x8x16x4xf32> to vector<8x16x4xf32>
    %28 = vector.shape_cast %27 : vector<8x16x4xf32> to vector<128x4xf32>
    %c0_18 = arith.constant 0 : index
    %c12 = arith.constant 12 : index
    %29 = vector.load %arg6[%c0_18, %c12] : memref<128x108xf32, #tpu.memory_space<vmem>>, vector<128x4xf32>
    tpu.vector_store %arg6[%c0_18, %c12], %28 {strides = array<i32>} : memref<128x108xf32, #tpu.memory_space<vmem>>, vector<128x4xf32>,
    %c2_i32_19 = arith.constant 2 : i32
    %30 = arith.addi %1, %c2_i32_19 : i32
    %c1_i32_20 = arith.constant 1 : i32
    %31 = arith.addi %30, %c1_i32_20 : i32
    %c0_21 = arith.constant 0 : index
    %32 = arith.index_cast %31 : i32 to index
    %c3_22 = arith.constant 3 : index
    %c0_23 = arith.constant 0 : index
    %33 = vector.load %arg2[%c0_21, %32, %c3_22, %c0_23] : memref<1x22x22x4xf32, #tpu.memory_space<vmem>>, vector<1x8x16x4xf32>
    %34 = vector.shape_cast %33 : vector<1x8x16x4xf32> to vector<8x16x4xf32>
    %35 = vector.shape_cast %34 : vector<8x16x4xf32> to vector<128x4xf32>
    %c0_24 = arith.constant 0 : index
    %c16 = arith.constant 16 : index
    %36 = vector.load %arg6[%c0_24, %c16] : memref<128x108xf32, #tpu.memory_space<vmem>>, vector<128x4xf32>
    tpu.vector_store %arg6[%c0_24, %c16], %35 {strides = array<i32>} : memref<128x108xf32, #tpu.memory_space<vmem>>, vector<128x4xf32>,
    %c2_i32_25 = arith.constant 2 : i32
    %37 = arith.addi %1, %c2_i32_25 : i32
    %c1_i32_26 = arith.constant 1 : i32
    %38 = arith.addi %37, %c1_i32_26 : i32
    %c0_27 = arith.constant 0 : index
    %39 = arith.index_cast %38 : i32 to index
    %c4_28 = arith.constant 4 : index
    %c0_29 = arith.constant 0 : index
    %40 = vector.load %arg2[%c0_27, %39, %c4_28, %c0_29] : memref<1x22x22x4xf32, #tpu.memory_space<vmem>>, vector<1x8x16x4xf32>
    %41 = vector.shape_cast %40 : vector<1x8x16x4xf32> to vector<8x16x4xf32>
    %42 = vector.shape_cast %41 : vector<8x16x4xf32> to vector<128x4xf32>
    %c0_30 = arith.constant 0 : index
    %c20 = arith.constant 20 : index
    %43 = vector.load %arg6[%c0_30, %c20] : memref<128x108xf32, #tpu.memory_space<vmem>>, vector<128x4xf32>
    tpu.vector_store %arg6[%c0_30, %c20], %42 {strides = array<i32>} : memref<128x108xf32, #tpu.memory_space<vmem>>, vector<128x4xf32>,
    %c2_i32_31 = arith.constant 2 : i32
    %44 = arith.addi %1, %c2_i32_31 : i32
    %c2_i32_32 = arith.constant 2 : i32
    %45 = arith.addi %44, %c2_i32_32 : i32
    %c0_33 = arith.constant 0 : index
    %46 = arith.index_cast %45 : i32 to index
    %c2_34 = arith.constant 2 : index
    %c0_35 = arith.constant 0 : index
    %47 = vector.load %arg2[%c0_33, %46, %c2_34, %c0_35] : memref<1x22x22x4xf32, #tpu.memory_space<vmem>>, vector<1x8x16x4xf32>
    %48 = vector.shape_cast %47 : vector<1x8x16x4xf32> to vector<8x16x4xf32>
    %49 = vector.shape_cast %48 : vector<8x16x4xf32> to vector<128x4xf32>
    %c0_36 = arith.constant 0 : index
    %c24 = arith.constant 24 : index
    %50 = vector.load %arg6[%c0_36, %c24] : memref<128x108xf32, #tpu.memory_space<vmem>>, vector<128x4xf32>
    tpu.vector_store %arg6[%c0_36, %c24], %49 {strides = array<i32>} : memref<128x108xf32, #tpu.memory_space<vmem>>, vector<128x4xf32>,
    %c2_i32_37 = arith.constant 2 : i32
    %51 = arith.addi %1, %c2_i32_37 : i32
    %c2_i32_38 = arith.constant 2 : i32
    %52 = arith.addi %51, %c2_i32_38 : i32
    %c0_39 = arith.constant 0 : index
    %53 = arith.index_cast %52 : i32 to index
    %c3_40 = arith.constant 3 : index
    %c0_41 = arith.constant 0 : index
    %54 = vector.load %arg2[%c0_39, %53, %c3_40, %c0_41] : memref<1x22x22x4xf32, #tpu.memory_space<vmem>>, vector<1x8x16x4xf32>
    %55 = vector.shape_cast %54 : vector<1x8x16x4xf32> to vector<8x16x4xf32>
    %56 = vector.shape_cast %55 : vector<8x16x4xf32> to vector<128x4xf32>
    %c0_42 = arith.constant 0 : index
    %c28 = arith.constant 28 : index
    %57 = vector.load %arg6[%c0_42, %c28] : memref<128x108xf32, #tpu.memory_space<vmem>>, vector<128x4xf32>
    tpu.vector_store %arg6[%c0_42, %c28], %56 {strides = array<i32>} : memref<128x108xf32, #tpu.memory_space<vmem>>, vector<128x4xf32>,
    %c2_i32_43 = arith.constant 2 : i32
    %58 = arith.addi %1, %c2_i32_43 : i32
    %c2_i32_44 = arith.constant 2 : i32
    %59 = arith.addi %58, %c2_i32_44 : i32
    %c0_45 = arith.constant 0 : index
    %60 = arith.index_cast %59 : i32 to index
    %c4_46 = arith.constant 4 : index
    %c0_47 = arith.constant 0 : index
    %61 = vector.load %arg2[%c0_45, %60, %c4_46, %c0_47] : memref<1x22x22x4xf32, #tpu.memory_space<vmem>>, vector<1x8x16x4xf32>
    %62 = vector.shape_cast %61 : vector<1x8x16x4xf32> to vector<8x16x4xf32>
    %63 = vector.shape_cast %62 : vector<8x16x4xf32> to vector<128x4xf32>
    %c0_48 = arith.constant 0 : index
    %c32 = arith.constant 32 : index
    %64 = vector.load %arg6[%c0_48, %c32] : memref<128x108xf32, #tpu.memory_space<vmem>>, vector<128x4xf32>
    tpu.vector_store %arg6[%c0_48, %c32], %63 {strides = array<i32>} : memref<128x108xf32, #tpu.memory_space<vmem>>, vector<128x4xf32>,
    %c1_i32_49 = arith.constant 1 : i32
    %65 = arith.addi %1, %c1_i32_49 : i32
    %c0_i32_50 = arith.constant 0 : i32
    %66 = arith.addi %65, %c0_i32_50 : i32
    %c0_51 = arith.constant 0 : index
    %67 = arith.index_cast %66 : i32 to index
    %c1 = arith.constant 1 : index
    %c0_52 = arith.constant 0 : index
    %68 = vector.load %arg2[%c0_51, %67, %c1, %c0_52] : memref<1x22x22x4xf32, #tpu.memory_space<vmem>>, vector<1x8x16x4xf32>
    %69 = vector.shape_cast %68 : vector<1x8x16x4xf32> to vector<8x16x4xf32>
    %70 = vector.shape_cast %69 : vector<8x16x4xf32> to vector<128x4xf32>
    %c0_53 = arith.constant 0 : index
    %c36 = arith.constant 36 : index
    %71 = vector.load %arg6[%c0_53, %c36] : memref<128x108xf32, #tpu.memory_space<vmem>>, vector<128x4xf32>
    tpu.vector_store %arg6[%c0_53, %c36], %70 {strides = array<i32>} : memref<128x108xf32, #tpu.memory_space<vmem>>, vector<128x4xf32>,
    %c1_i32_54 = arith.constant 1 : i32
    %72 = arith.addi %1, %c1_i32_54 : i32
    %c0_i32_55 = arith.constant 0 : i32
    %73 = arith.addi %72, %c0_i32_55 : i32
    %c0_56 = arith.constant 0 : index
    %74 = arith.index_cast %73 : i32 to index
    %c3_57 = arith.constant 3 : index
    %c0_58 = arith.constant 0 : index
    %75 = vector.load %arg2[%c0_56, %74, %c3_57, %c0_58] : memref<1x22x22x4xf32, #tpu.memory_space<vmem>>, vector<1x8x16x4xf32>
    %76 = vector.shape_cast %75 : vector<1x8x16x4xf32> to vector<8x16x4xf32>
    %77 = vector.shape_cast %76 : vector<8x16x4xf32> to vector<128x4xf32>
    %c0_59 = arith.constant 0 : index
    %c40 = arith.constant 40 : index
    %78 = vector.load %arg6[%c0_59, %c40] : memref<128x108xf32, #tpu.memory_space<vmem>>, vector<128x4xf32>
    tpu.vector_store %arg6[%c0_59, %c40], %77 {strides = array<i32>} : memref<128x108xf32, #tpu.memory_space<vmem>>, vector<128x4xf32>,
    %c1_i32_60 = arith.constant 1 : i32
    %79 = arith.addi %1, %c1_i32_60 : i32
    %c0_i32_61 = arith.constant 0 : i32
    %80 = arith.addi %79, %c0_i32_61 : i32
    %c0_62 = arith.constant 0 : index
    %81 = arith.index_cast %80 : i32 to index
    %c5 = arith.constant 5 : index
    %c0_63 = arith.constant 0 : index
    %82 = vector.load %arg2[%c0_62, %81, %c5, %c0_63] : memref<1x22x22x4xf32, #tpu.memory_space<vmem>>, vector<1x8x16x4xf32>
    %83 = vector.shape_cast %82 : vector<1x8x16x4xf32> to vector<8x16x4xf32>
    %84 = vector.shape_cast %83 : vector<8x16x4xf32> to vector<128x4xf32>
    %c0_64 = arith.constant 0 : index
    %c44 = arith.constant 44 : index
    %85 = vector.load %arg6[%c0_64, %c44] : memref<128x108xf32, #tpu.memory_space<vmem>>, vector<128x4xf32>
    tpu.vector_store %arg6[%c0_64, %c44], %84 {strides = array<i32>} : memref<128x108xf32, #tpu.memory_space<vmem>>, vector<128x4xf32>,
    %c1_i32_65 = arith.constant 1 : i32
    %86 = arith.addi %1, %c1_i32_65 : i32
    %c2_i32_66 = arith.constant 2 : i32
    %87 = arith.addi %86, %c2_i32_66 : i32
    %c0_67 = arith.constant 0 : index
    %88 = arith.index_cast %87 : i32 to index
    %c1_68 = arith.constant 1 : index
    %c0_69 = arith.constant 0 : index
    %89 = vector.load %arg2[%c0_67, %88, %c1_68, %c0_69] : memref<1x22x22x4xf32, #tpu.memory_space<vmem>>, vector<1x8x16x4xf32>
    %90 = vector.shape_cast %89 : vector<1x8x16x4xf32> to vector<8x16x4xf32>
    %91 = vector.shape_cast %90 : vector<8x16x4xf32> to vector<128x4xf32>
    %c0_70 = arith.constant 0 : index
    %c48 = arith.constant 48 : index
    %92 = vector.load %arg6[%c0_70, %c48] : memref<128x108xf32, #tpu.memory_space<vmem>>, vector<128x4xf32>
    tpu.vector_store %arg6[%c0_70, %c48], %91 {strides = array<i32>} : memref<128x108xf32, #tpu.memory_space<vmem>>, vector<128x4xf32>,
    %c1_i32_71 = arith.constant 1 : i32
    %93 = arith.addi %1, %c1_i32_71 : i32
    %c2_i32_72 = arith.constant 2 : i32
    %94 = arith.addi %93, %c2_i32_72 : i32
    %c0_73 = arith.constant 0 : index
    %95 = arith.index_cast %94 : i32 to index
    %c3_74 = arith.constant 3 : index
    %c0_75 = arith.constant 0 : index
    %96 = vector.load %arg2[%c0_73, %95, %c3_74, %c0_75] : memref<1x22x22x4xf32, #tpu.memory_space<vmem>>, vector<1x8x16x4xf32>
    %97 = vector.shape_cast %96 : vector<1x8x16x4xf32> to vector<8x16x4xf32>
    %98 = vector.shape_cast %97 : vector<8x16x4xf32> to vector<128x4xf32>
    %c0_76 = arith.constant 0 : index
    %c52 = arith.constant 52 : index
    %99 = vector.load %arg6[%c0_76, %c52] : memref<128x108xf32, #tpu.memory_space<vmem>>, vector<128x4xf32>
    tpu.vector_store %arg6[%c0_76, %c52], %98 {strides = array<i32>} : memref<128x108xf32, #tpu.memory_space<vmem>>, vector<128x4xf32>,
    %c1_i32_77 = arith.constant 1 : i32
    %100 = arith.addi %1, %c1_i32_77 : i32
    %c2_i32_78 = arith.constant 2 : i32
    %101 = arith.addi %100, %c2_i32_78 : i32
    %c0_79 = arith.constant 0 : index
    %102 = arith.index_cast %101 : i32 to index
    %c5_80 = arith.constant 5 : index
    %c0_81 = arith.constant 0 : index
    %103 = vector.load %arg2[%c0_79, %102, %c5_80, %c0_81] : memref<1x22x22x4xf32, #tpu.memory_space<vmem>>, vector<1x8x16x4xf32>
    %104 = vector.shape_cast %103 : vector<1x8x16x4xf32> to vector<8x16x4xf32>
    %105 = vector.shape_cast %104 : vector<8x16x4xf32> to vector<128x4xf32>
    %c0_82 = arith.constant 0 : index
    %c56 = arith.constant 56 : index
    %106 = vector.load %arg6[%c0_82, %c56] : memref<128x108xf32, #tpu.memory_space<vmem>>, vector<128x4xf32>
    tpu.vector_store %arg6[%c0_82, %c56], %105 {strides = array<i32>} : memref<128x108xf32, #tpu.memory_space<vmem>>, vector<128x4xf32>,
    %c1_i32_83 = arith.constant 1 : i32
    %107 = arith.addi %1, %c1_i32_83 : i32
    %c4_i32 = arith.constant 4 : i32
    %108 = arith.addi %107, %c4_i32 : i32
    %c0_84 = arith.constant 0 : index
    %109 = arith.index_cast %108 : i32 to index
    %c1_85 = arith.constant 1 : index
    %c0_86 = arith.constant 0 : index
    %110 = vector.load %arg2[%c0_84, %109, %c1_85, %c0_86] : memref<1x22x22x4xf32, #tpu.memory_space<vmem>>, vector<1x8x16x4xf32>
    %111 = vector.shape_cast %110 : vector<1x8x16x4xf32> to vector<8x16x4xf32>
    %112 = vector.shape_cast %111 : vector<8x16x4xf32> to vector<128x4xf32>
    %c0_87 = arith.constant 0 : index
    %c60 = arith.constant 60 : index
    %113 = vector.load %arg6[%c0_87, %c60] : memref<128x108xf32, #tpu.memory_space<vmem>>, vector<128x4xf32>
    tpu.vector_store %arg6[%c0_87, %c60], %112 {strides = array<i32>} : memref<128x108xf32, #tpu.memory_space<vmem>>, vector<128x4xf32>,
    %c1_i32_88 = arith.constant 1 : i32
    %114 = arith.addi %1, %c1_i32_88 : i32
    %c4_i32_89 = arith.constant 4 : i32
    %115 = arith.addi %114, %c4_i32_89 : i32
    %c0_90 = arith.constant 0 : index
    %116 = arith.index_cast %115 : i32 to index
    %c3_91 = arith.constant 3 : index
    %c0_92 = arith.constant 0 : index
    %117 = vector.load %arg2[%c0_90, %116, %c3_91, %c0_92] : memref<1x22x22x4xf32, #tpu.memory_space<vmem>>, vector<1x8x16x4xf32>
    %118 = vector.shape_cast %117 : vector<1x8x16x4xf32> to vector<8x16x4xf32>
    %119 = vector.shape_cast %118 : vector<8x16x4xf32> to vector<128x4xf32>
    %c0_93 = arith.constant 0 : index
    %c64 = arith.constant 64 : index
    %120 = vector.load %arg6[%c0_93, %c64] : memref<128x108xf32, #tpu.memory_space<vmem>>, vector<128x4xf32>
    tpu.vector_store %arg6[%c0_93, %c64], %119 {strides = array<i32>} : memref<128x108xf32, #tpu.memory_space<vmem>>, vector<128x4xf32>,
    %c1_i32_94 = arith.constant 1 : i32
    %121 = arith.addi %1, %c1_i32_94 : i32
    %c4_i32_95 = arith.constant 4 : i32
    %122 = arith.addi %121, %c4_i32_95 : i32
    %c0_96 = arith.constant 0 : index
    %123 = arith.index_cast %122 : i32 to index
    %c5_97 = arith.constant 5 : index
    %c0_98 = arith.constant 0 : index
    %124 = vector.load %arg2[%c0_96, %123, %c5_97, %c0_98] : memref<1x22x22x4xf32, #tpu.memory_space<vmem>>, vector<1x8x16x4xf32>
    %125 = vector.shape_cast %124 : vector<1x8x16x4xf32> to vector<8x16x4xf32>
    %126 = vector.shape_cast %125 : vector<8x16x4xf32> to vector<128x4xf32>
    %c0_99 = arith.constant 0 : index
    %c68 = arith.constant 68 : index
    %127 = vector.load %arg6[%c0_99, %c68] : memref<128x108xf32, #tpu.memory_space<vmem>>, vector<128x4xf32>
    tpu.vector_store %arg6[%c0_99, %c68], %126 {strides = array<i32>} : memref<128x108xf32, #tpu.memory_space<vmem>>, vector<128x4xf32>,
    %c0_i32_100 = arith.constant 0 : i32
    %128 = arith.addi %1, %c0_i32_100 : i32
    %c0_i32_101 = arith.constant 0 : i32
    %129 = arith.addi %128, %c0_i32_101 : i32
    %c0_102 = arith.constant 0 : index
    %130 = arith.index_cast %129 : i32 to index
    %c0_103 = arith.constant 0 : index
    %c0_104 = arith.constant 0 : index
    %131 = vector.load %arg2[%c0_102, %130, %c0_103, %c0_104] : memref<1x22x22x4xf32, #tpu.memory_space<vmem>>, vector<1x8x16x4xf32>
    %132 = vector.shape_cast %131 : vector<1x8x16x4xf32> to vector<8x16x4xf32>
    %133 = vector.shape_cast %132 : vector<8x16x4xf32> to vector<128x4xf32>
    %c0_105 = arith.constant 0 : index
    %c72 = arith.constant 72 : index
    %134 = vector.load %arg6[%c0_105, %c72] : memref<128x108xf32, #tpu.memory_space<vmem>>, vector<128x4xf32>
    tpu.vector_store %arg6[%c0_105, %c72], %133 {strides = array<i32>} : memref<128x108xf32, #tpu.memory_space<vmem>>, vector<128x4xf32>,
    %c0_i32_106 = arith.constant 0 : i32
    %135 = arith.addi %1, %c0_i32_106 : i32
    %c0_i32_107 = arith.constant 0 : i32
    %136 = arith.addi %135, %c0_i32_107 : i32
    %c0_108 = arith.constant 0 : index
    %137 = arith.index_cast %136 : i32 to index
    %c3_109 = arith.constant 3 : index
    %c0_110 = arith.constant 0 : index
    %138 = vector.load %arg2[%c0_108, %137, %c3_109, %c0_110] : memref<1x22x22x4xf32, #tpu.memory_space<vmem>>, vector<1x8x16x4xf32>
    %139 = vector.shape_cast %138 : vector<1x8x16x4xf32> to vector<8x16x4xf32>
    %140 = vector.shape_cast %139 : vector<8x16x4xf32> to vector<128x4xf32>
    %c0_111 = arith.constant 0 : index
    %c76 = arith.constant 76 : index
    %141 = vector.load %arg6[%c0_111, %c76] : memref<128x108xf32, #tpu.memory_space<vmem>>, vector<128x4xf32>
    tpu.vector_store %arg6[%c0_111, %c76], %140 {strides = array<i32>} : memref<128x108xf32, #tpu.memory_space<vmem>>, vector<128x4xf32>,
    %c0_i32_112 = arith.constant 0 : i32
    %142 = arith.addi %1, %c0_i32_112 : i32
    %c0_i32_113 = arith.constant 0 : i32
    %143 = arith.addi %142, %c0_i32_113 : i32
    %c0_114 = arith.constant 0 : index
    %144 = arith.index_cast %143 : i32 to index
    %c6 = arith.constant 6 : index
    %c0_115 = arith.constant 0 : index
    %145 = vector.load %arg2[%c0_114, %144, %c6, %c0_115] : memref<1x22x22x4xf32, #tpu.memory_space<vmem>>, vector<1x8x16x4xf32>
    %146 = vector.shape_cast %145 : vector<1x8x16x4xf32> to vector<8x16x4xf32>
    %147 = vector.shape_cast %146 : vector<8x16x4xf32> to vector<128x4xf32>
    %c0_116 = arith.constant 0 : index
    %c80 = arith.constant 80 : index
    %148 = vector.load %arg6[%c0_116, %c80] : memref<128x108xf32, #tpu.memory_space<vmem>>, vector<128x4xf32>
    tpu.vector_store %arg6[%c0_116, %c80], %147 {strides = array<i32>} : memref<128x108xf32, #tpu.memory_space<vmem>>, vector<128x4xf32>,
    %c0_i32_117 = arith.constant 0 : i32
    %149 = arith.addi %1, %c0_i32_117 : i32
    %c3_i32 = arith.constant 3 : i32
    %150 = arith.addi %149, %c3_i32 : i32
    %c0_118 = arith.constant 0 : index
    %151 = arith.index_cast %150 : i32 to index
    %c0_119 = arith.constant 0 : index
    %c0_120 = arith.constant 0 : index
    %152 = vector.load %arg2[%c0_118, %151, %c0_119, %c0_120] : memref<1x22x22x4xf32, #tpu.memory_space<vmem>>, vector<1x8x16x4xf32>
    %153 = vector.shape_cast %152 : vector<1x8x16x4xf32> to vector<8x16x4xf32>
    %154 = vector.shape_cast %153 : vector<8x16x4xf32> to vector<128x4xf32>
    %c0_121 = arith.constant 0 : index
    %c84 = arith.constant 84 : index
    %155 = vector.load %arg6[%c0_121, %c84] : memref<128x108xf32, #tpu.memory_space<vmem>>, vector<128x4xf32>
    tpu.vector_store %arg6[%c0_121, %c84], %154 {strides = array<i32>} : memref<128x108xf32, #tpu.memory_space<vmem>>, vector<128x4xf32>,
    %c0_i32_122 = arith.constant 0 : i32
    %156 = arith.addi %1, %c0_i32_122 : i32
    %c3_i32_123 = arith.constant 3 : i32
    %157 = arith.addi %156, %c3_i32_123 : i32
    %c0_124 = arith.constant 0 : index
    %158 = arith.index_cast %157 : i32 to index
    %c3_125 = arith.constant 3 : index
    %c0_126 = arith.constant 0 : index
    %159 = vector.load %arg2[%c0_124, %158, %c3_125, %c0_126] : memref<1x22x22x4xf32, #tpu.memory_space<vmem>>, vector<1x8x16x4xf32>
    %160 = vector.shape_cast %159 : vector<1x8x16x4xf32> to vector<8x16x4xf32>
    %161 = vector.shape_cast %160 : vector<8x16x4xf32> to vector<128x4xf32>
    %c0_127 = arith.constant 0 : index
    %c88 = arith.constant 88 : index
    %162 = vector.load %arg6[%c0_127, %c88] : memref<128x108xf32, #tpu.memory_space<vmem>>, vector<128x4xf32>
    tpu.vector_store %arg6[%c0_127, %c88], %161 {strides = array<i32>} : memref<128x108xf32, #tpu.memory_space<vmem>>, vector<128x4xf32>,
    %c0_i32_128 = arith.constant 0 : i32
    %163 = arith.addi %1, %c0_i32_128 : i32
    %c3_i32_129 = arith.constant 3 : i32
    %164 = arith.addi %163, %c3_i32_129 : i32
    %c0_130 = arith.constant 0 : index
    %165 = arith.index_cast %164 : i32 to index
    %c6_131 = arith.constant 6 : index
    %c0_132 = arith.constant 0 : index
    %166 = vector.load %arg2[%c0_130, %165, %c6_131, %c0_132] : memref<1x22x22x4xf32, #tpu.memory_space<vmem>>, vector<1x8x16x4xf32>
    %167 = vector.shape_cast %166 : vector<1x8x16x4xf32> to vector<8x16x4xf32>
    %168 = vector.shape_cast %167 : vector<8x16x4xf32> to vector<128x4xf32>
    %c0_133 = arith.constant 0 : index
    %c92 = arith.constant 92 : index
    %169 = vector.load %arg6[%c0_133, %c92] : memref<128x108xf32, #tpu.memory_space<vmem>>, vector<128x4xf32>
    tpu.vector_store %arg6[%c0_133, %c92], %168 {strides = array<i32>} : memref<128x108xf32, #tpu.memory_space<vmem>>, vector<128x4xf32>,
    %c0_i32_134 = arith.constant 0 : i32
    %170 = arith.addi %1, %c0_i32_134 : i32
    %c6_i32 = arith.constant 6 : i32
    %171 = arith.addi %170, %c6_i32 : i32
    %c0_135 = arith.constant 0 : index
    %172 = arith.index_cast %171 : i32 to index
    %c0_136 = arith.constant 0 : index
    %c0_137 = arith.constant 0 : index
    %173 = vector.load %arg2[%c0_135, %172, %c0_136, %c0_137] : memref<1x22x22x4xf32, #tpu.memory_space<vmem>>, vector<1x8x16x4xf32>
    %174 = vector.shape_cast %173 : vector<1x8x16x4xf32> to vector<8x16x4xf32>
    %175 = vector.shape_cast %174 : vector<8x16x4xf32> to vector<128x4xf32>
    %c0_138 = arith.constant 0 : index
    %c96 = arith.constant 96 : index
    %176 = vector.load %arg6[%c0_138, %c96] : memref<128x108xf32, #tpu.memory_space<vmem>>, vector<128x4xf32>
    tpu.vector_store %arg6[%c0_138, %c96], %175 {strides = array<i32>} : memref<128x108xf32, #tpu.memory_space<vmem>>, vector<128x4xf32>,
    %c0_i32_139 = arith.constant 0 : i32
    %177 = arith.addi %1, %c0_i32_139 : i32
    %c6_i32_140 = arith.constant 6 : i32
    %178 = arith.addi %177, %c6_i32_140 : i32
    %c0_141 = arith.constant 0 : index
    %179 = arith.index_cast %178 : i32 to index
    %c3_142 = arith.constant 3 : index
    %c0_143 = arith.constant 0 : index
    %180 = vector.load %arg2[%c0_141, %179, %c3_142, %c0_143] : memref<1x22x22x4xf32, #tpu.memory_space<vmem>>, vector<1x8x16x4xf32>
    %181 = vector.shape_cast %180 : vector<1x8x16x4xf32> to vector<8x16x4xf32>
    %182 = vector.shape_cast %181 : vector<8x16x4xf32> to vector<128x4xf32>
    %c0_144 = arith.constant 0 : index
    %c100 = arith.constant 100 : index
    %183 = vector.load %arg6[%c0_144, %c100] : memref<128x108xf32, #tpu.memory_space<vmem>>, vector<128x4xf32>
    tpu.vector_store %arg6[%c0_144, %c100], %182 {strides = array<i32>} : memref<128x108xf32, #tpu.memory_space<vmem>>, vector<128x4xf32>,
    %c0_i32_145 = arith.constant 0 : i32
    %184 = arith.addi %1, %c0_i32_145 : i32
    %c6_i32_146 = arith.constant 6 : i32
    %185 = arith.addi %184, %c6_i32_146 : i32
    %c0_147 = arith.constant 0 : index
    %186 = arith.index_cast %185 : i32 to index
    %c6_148 = arith.constant 6 : index
    %c0_149 = arith.constant 0 : index
    %187 = vector.load %arg2[%c0_147, %186, %c6_148, %c0_149] : memref<1x22x22x4xf32, #tpu.memory_space<vmem>>, vector<1x8x16x4xf32>
    %188 = vector.shape_cast %187 : vector<1x8x16x4xf32> to vector<8x16x4xf32>
    %189 = vector.shape_cast %188 : vector<8x16x4xf32> to vector<128x4xf32>
    %c0_150 = arith.constant 0 : index
    %c104 = arith.constant 104 : index
    %190 = vector.load %arg6[%c0_150, %c104] : memref<128x108xf32, #tpu.memory_space<vmem>>, vector<128x4xf32>
    tpu.vector_store %arg6[%c0_150, %c104], %189 {strides = array<i32>} : memref<128x108xf32, #tpu.memory_space<vmem>>, vector<128x4xf32>,
    %c0_151 = arith.constant 0 : index
    %c0_152 = arith.constant 0 : index
    %191 = vector.load %arg6[%c0_151, %c0_152] : memref<128x108xf32, #tpu.memory_space<vmem>>, vector<128x108xf32>
    %192 = arith.truncf %191 : vector<128x108xf32> to vector<128x108xbf16>
    %c0_153 = arith.constant 0 : index
    %c0_154 = arith.constant 0 : index
    %193 = vector.load %arg3[%c0_153, %c0_154] : memref<108x128xbf16, #tpu.memory_space<vmem>>, vector<108x128xbf16>
    %cst = arith.constant dense<0.000000e+00> : vector<128x128xf32>
    %194 = tpu.matmul %192, %193, %cst {dimension_numbers = #tpu.dot_dimension_numbers<[1], [0], [0], [1], [0, 0, 1, 1], [], []>} : vector<128x108xbf16>, vector<108x128xbf16>, vector<128x128xf32> -> vector<128x128xf32>
    %c0_155 = arith.constant 0 : index
    %c0_156 = arith.constant 0 : index
    %195 = vector.load %arg4[%c0_155, %c0_156] : memref<1x128xf32, #tpu.memory_space<vmem>>, vector<1x128xf32>
    %196 = vector.broadcast %195 : vector<1x128xf32> to vector<128x128xf32>
    %197 = arith.addf %194, %196 : vector<128x128xf32>
    %198 = tpu.transpose %197, [1, 0] : vector<128x128xf32> -> vector<128x128xf32>
    %199 = vector.extract_strided_slice %198 {offsets = [0, 0], sizes = [3, 128], strides = [1, 1]} : vector<128x128xf32> to vector<3x128xf32>
    %c0_157 = arith.constant 0 : index
    %c0_158 = arith.constant 0 : index
    %c0_159 = arith.constant 0 : index
    %200 = vector.load %arg5[%c0_157, %c0_158, %c0_159] : memref<1x3x128xf32, #tpu.memory_space<vmem>>, vector<1x3x128xf32>
    %201 = vector.shape_cast %200 : vector<1x3x128xf32> to vector<3x128xf32>
    %202 = vector.shape_cast %199 : vector<3x128xf32> to vector<1x3x128xf32>
    tpu.vector_store %arg5[%c0_157, %c0_158, %c0_159], %202 {strides = array<i32>} : memref<1x3x128xf32, #tpu.memory_space<vmem>>, vector<1x3x128xf32>,
    return
  }
  func.func @transform_0(%arg0: i32, %arg1: i32) -> (i32, i32, i32, i32) {
    %c0_i32 = arith.constant 0 : i32
    %c0_i32_0 = arith.constant 0 : i32
    %c0_i32_1 = arith.constant 0 : i32
    %c0_i32_2 = arith.constant 0 : i32
    return %arg0, %c0_i32, %c0_i32_0, %c0_i32_1 : i32, i32, i32, i32
  }
  func.func @transform_1(%arg0: i32, %arg1: i32) -> (i32, i32) {
    %c0_i32 = arith.constant 0 : i32
    %c0_i32_0 = arith.constant 0 : i32
    %c0_i32_1 = arith.constant 0 : i32
    return %c0_i32, %c0_i32_0 : i32, i32
  }
  func.func @transform_2(%arg0: i32, %arg1: i32) -> (i32, i32) {
    %c0_i32 = arith.constant 0 : i32
    %c0_i32_0 = arith.constant 0 : i32
    %c0_i32_1 = arith.constant 0 : i32
    return %c0_i32, %c0_i32_0 : i32, i32
  }
  func.func @transform_3(%arg0: i32, %arg1: i32) -> (i32, i32, i32) {
    %c0_i32 = arith.constant 0 : i32
    %c0_i32_0 = arith.constant 0 : i32
    return %arg0, %c0_i32, %arg1 : i32, i32, i32
  }
}

</mosaic_0001>

<llo_original>
// kernel: tpu_custom_call.1
$region0: #{tpu_custom_call.1}
  #allocation0 [shape = 'u32[]', space=smem, size = 0x4, offset = 0x4, fixed_abs, tag = 'smem constant byte address 0x4 - core index']
  #allocation1 [shape = 'u32[144,128]{1,0:T(1,128)}', space=vmem, size = 0x12000, scoped, tag = 'internal scratch']
  #allocation2 [shape = 'f32[128,108]{1,0:T(8,128)}', space=vmem, size = 0x10000, scoped, tag = 'scratch operand']
  %s0 = inlined_call_operand.vmem [shape: f32[2,22,22,4], index: 0, kind: input, shape index: {}]
  %s1 = inlined_call_operand.vmem [shape: bf16[108,128], index: 1, kind: input, shape index: {}]
  %s2 = inlined_call_operand.vmem [shape: f32[1,128], index: 2, kind: input, shape index: {}]
  %s3 = inlined_call_operand.vmem [shape: f32[2,3,256], index: 3, kind: output, shape index: {}]
  %s4 = sld [smem:[#allocation0]]
  $region45: #{tpu_custom_call.1} parent=0
    _
  %s6 = ssub.s32 1, %s4
  %s7 = scalar_select 0, %s6, %s4
  loop: start=0, step=1, limit=6
  $region2: #{tpu_custom_call.1} parent=0 // loop_pre_header
    _
  $region3: #{tpu_custom_call.1} parent=0 // loop_header
    %s9 = sphi 0, %s13
    %p10 = scmp.ge.s32.totalorder %s9, 6
    %s16 = sphi 0, %s28
    %s17 = sphi 0, %s24
    %s18 = sphi 0, %s16
    %s19 = sphi 0, %s17
    %s20 = sphi 0, %s18
    %s21 = sphi 0, %s19
    %s31 = sphi 0, %s33
    %s34 = sphi 0, %s31
    %s35 = sphi 0, %s34
    %s51 = sphi 0, %s35
    %s55 = sphi 0, %s55
    %s57 = sphi 0, %s55
    %s58 = sphi 0, %s57
    %s72 = sphi 0, %s58
    %s76 = sphi 0, %s76
    %s78 = sphi 0, %s76
    %s79 = sphi 0, %s78
    %s93 = sphi 0, %s79
    %s101 = sphi 0, %s103
    %s104 = sphi 0, %s101
    %s105 = sphi 0, %s104
    %s121 = sphi 0, %s105
  $region4: #{tpu_custom_call.1} parent=0 // loop_header_branch
    %12 = sbr.rel (%p10) target = $region8
  $region5: #{tpu_custom_call.1} parent=0 // loop_body
    %s14 = ssub.s32 %s9, 1
    %s15 = ssub.s32 %s9, 2
    %s22 = sadd.s32 1, %s17
    %p23 = scmp.ge.s32.totalorder %s22, 2
    %s24 = scalar_select %p23, 0, %s22
    %s25 = sadd.s32 1, %s16
    %s26 = scalar_select %p23, %s25, %s16
    %p27 = scmp.ge.s32.totalorder %s26, 2
    %s28 = scalar_select %p27, 0, %s26
    %s29 = ssub.s32 %s16, %s28
    %p30 = scmp.eq.s32.totalorder %s29, 0
    %s32 = sadd.s32 %s31, 1
    %s33 = scalar_select %p30, %s31, %s32
    %p36 = pneg %p30
    %p37 = scmp.eq.s32.totalorder %s9, 3
    %p38 = por %p36, %p37
    %p39 = scmp.ne.s32.totalorder %s31, %s34
    %p40 = scmp.eq.s32.totalorder %s9, 0
    %p41 = por %p39, %p40
    %p42 = scmp.ne.s32.totalorder %s31, %s34
    %p43 = scmp.eq.s32.totalorder %s14, 3
    %p44 = por %p42, %p43
    %p45 = scmp.ne.s32.totalorder %s34, %s35
    %p46 = scmp.eq.s32.totalorder %s14, 0
    %p47 = por %p45, %p46
    %p48 = scmp.ne.s32.totalorder %s34, %s35
    %p49 = scmp.eq.s32.totalorder %s15, 3
    %p50 = por %p48, %p49
    %p52 = scmp.ne.s32.totalorder %s35, %s51
    %p53 = scmp.eq.s32.totalorder %s15, 0
    %p54 = por %p52, %p53
    %s56 = sadd.s32 %s55, 1
    %p59 = scmp.eq.s32.totalorder %s9, 3
    %p60 = scmp.ne.s32.totalorder %s55, %s57
    %p61 = scmp.eq.s32.totalorder %s9, 0
    %p62 = por %p60, %p61
    %p63 = scmp.ne.s32.totalorder %s55, %s57
    %p64 = scmp.eq.s32.totalorder %s14, 3
    %p65 = por %p63, %p64
    %p66 = scmp.ne.s32.totalorder %s57, %s58
    %p67 = scmp.eq.s32.totalorder %s14, 0
    %p68 = por %p66, %p67
    %p69 = scmp.ne.s32.totalorder %s57, %s58
    %p70 = scmp.eq.s32.totalorder %s15, 3
    %p71 = por %p69, %p70
    %p73 = scmp.ne.s32.totalorder %s58, %s72
    %p74 = scmp.eq.s32.totalorder %s15, 0
    %p75 = por %p73, %p74
    %s77 = sadd.s32 %s76, 1
    %p80 = scmp.eq.s32.totalorder %s9, 3
    %p81 = scmp.ne.s32.totalorder %s76, %s78
    %p82 = scmp.eq.s32.totalorder %s9, 0
    %p83 = por %p81, %p82
    %p84 = scmp.ne.s32.totalorder %s76, %s78
    %p85 = scmp.eq.s32.totalorder %s14, 3
    %p86 = por %p84, %p85
    %p87 = scmp.ne.s32.totalorder %s78, %s79
    %p88 = scmp.eq.s32.totalorder %s14, 0
    %p89 = por %p87, %p88
    %p90 = scmp.ne.s32.totalorder %s78, %s79
    %p91 = scmp.eq.s32.totalorder %s15, 3
    %p92 = por %p90, %p91
    %p94 = scmp.ne.s32.totalorder %s79, %s93
    %p95 = scmp.eq.s32.totalorder %s15, 0
    %p96 = por %p94, %p95
    %s97 = ssub.s32 %s16, %s28
    %s98 = ssub.s32 %s17, %s24
    %s99 = sor.u32 %s97, %s98
    %p100 = scmp.eq.s32.totalorder %s99, 0
    %s102 = sadd.s32 %s101, 1
    %s103 = scalar_select %p100, %s101, %s102
    %p106 = pneg %p100
    %p107 = scmp.eq.s32.totalorder %s9, 3
    %p108 = por %p106, %p107
    %p109 = scmp.ne.s32.totalorder %s101, %s104
    %p110 = scmp.eq.s32.totalorder %s9, 0
    %p111 = por %p109, %p110
    %p112 = scmp.ne.s32.totalorder %s101, %s104
    %p113 = scmp.eq.s32.totalorder %s14, 3
    %p114 = por %p112, %p113
    %p115 = scmp.ne.s32.totalorder %s104, %s105
    %p116 = scmp.eq.s32.totalorder %s14, 0
    %p117 = por %p115, %p116
    %p118 = scmp.ne.s32.totalorder %s104, %s105
    %p119 = scmp.eq.s32.totalorder %s15, 3
    %p120 = por %p118, %p119
    %p122 = scmp.ne.s32.totalorder %s105, %s121
    %p123 = scmp.eq.s32.totalorder %s15, 0
    %p124 = por %p122, %p123
    %p125 = scmp.le.s32.totalorder 1, %s9
    %p126 = scmp.lt.s32.totalorder %s9, 5
    %p127 = pnand %p125, %p126
    %p128 = pneg %p127
    // Predicated region
    $region9: #{tpu_custom_call.1} parent=5 // pred_check
      _
    $region10: #{tpu_custom_call.1} parent=5 // pred_check_branch
      %130 = sbr.rel (%p127) target = $region12
    $region11: #{tpu_custom_call.1} parent=5 // pred_region
      %s131 = ssub.s32 %s9, 1
      // Predicated region
      $region13: #{tpu_custom_call.1} parent=11 // pred_check
        %p132 = pneg %p68
      $region14: #{tpu_custom_call.1} parent=11 // pred_check_branch
        %134 = sbr.rel (%p132) target = $region16
      $region15: #{tpu_custom_call.1} parent=11 // pred_region
        _
      $region16: #{tpu_custom_call.1} parent=11 // pred_fallthru
        _
      // Predicated region
      $region17: #{tpu_custom_call.1} parent=11 // pred_check
        %p135 = pneg %p89
      $region18: #{tpu_custom_call.1} parent=11 // pred_check_branch
        %137 = sbr.rel (%p135) target = $region20
      $region19: #{tpu_custom_call.1} parent=11 // pred_region
        _
      $region20: #{tpu_custom_call.1} parent=11 // pred_fallthru
        _
    $region12: #{tpu_custom_call.1} parent=5 // pred_fallthru
      _
    %p138 = scmp.lt.s32.totalorder %s9, 4
    // Predicated region
    $region21: #{tpu_custom_call.1} parent=5 // pred_check
      %p139 = pneg %p138
    $region22: #{tpu_custom_call.1} parent=5 // pred_check_branch
      %141 = sbr.rel (%p139) target = $region24
    $region23: #{tpu_custom_call.1} parent=5 // pred_region
      // Predicated region
      $region25: #{tpu_custom_call.1} parent=23 // pred_check
        %p142 = pneg %p41
      $region26: #{tpu_custom_call.1} parent=23 // pred_check_branch
        %144 = sbr.rel (%p142) target = $region28
      $region27: #{tpu_custom_call.1} parent=23 // pred_region
        %p145 = scmp.lt.s32.totalorder %s16, 1
        %s146 = scalar_select %p145, %s16, 1
        %s147 = smul.addr %s146, 66
        %s148 = smul.addr %s147, 8
        %s149 = scalar_lea.vmem %s0, %s148
      $region28: #{tpu_custom_call.1} parent=23 // pred_fallthru
        _
    $region24: #{tpu_custom_call.1} parent=5 // pred_fallthru
      _
    %p150 = scmp.le.s32.totalorder 1, %s9
    %p151 = scmp.lt.s32.totalorder %s9, 5
    %p152 = pnand %p150, %p151
    %p153 = pneg %p152
    // Predicated region
    $region29: #{tpu_custom_call.1} parent=5 // pred_check
      _
    $region30: #{tpu_custom_call.1} parent=5 // pred_check_branch
      %155 = sbr.rel (%p152) target = $region32
    $region31: #{tpu_custom_call.1} parent=5 // pred_region
      %s156 = ssub.s32 %s9, 1
      %p157 = scmp.lt.s32.totalorder %s18, 1
      %s158 = scalar_select %p157, %s18, 1
      %s159 = smul.addr %s158, 66
      %s160 = smul.addr %s159, 8
      %s161 = scalar_lea.vmem %s0, %s160
      %p162 = pneg %p47
      %p163 = pneg %p44
      %p164 = pneg %p68
      %p165 = pneg %p65
      %p166 = pneg %p89
      %p167 = pneg %p86
      %p168 = pneg %p117
      %p169 = pneg %p114
      %p170 = scmp.lt.s32.totalorder %s18, 1
      %s171 = scalar_select %p170, %s18, 1
      %p172 = scmp.lt.s32.totalorder %s19, 1
      %s173 = scalar_select %p172, %s19, 1
      %s174 = smul.addr %s171, 2
      %s175 = sadd.s32 %s173, %s174
      %s176 = smul.addr %s175, 4
      %s177 = scalar_lea.vmem %s3, %s176
      %p178 = scmp.lt.s32.totalorder %s18, 1
      %s179 = scalar_select %p178, %s18, 1
      %s180 = smul.addr %s179, 66
      %s181 = smul.addr %s180, 8
      %s182 = scalar_lea.vmem %s0, %s181
      %p183 = scmp.lt.s32.totalorder %s18, 1
      %s184 = scalar_select %p183, %s18, 1
      %p185 = scmp.lt.s32.totalorder %s19, 1
      %s186 = scalar_select %p185, %s19, 1
      %s187 = smul.addr %s184, 2
      %s188 = sadd.s32 %s186, %s187
      %s189 = smul.addr %s188, 4
      %s190 = scalar_lea.vmem %s3, %s189
      %s192 = smul.u32 %s19, 8
      %s193 = sadd.s32 %s192, 2
      %s194 = smul.u32 %s193, 24
      %s195 = scalar_lea.vmem %s182, %s194
      %v196 = vld [vmem:[%s195 + $0x2] sm:$0xff]
      %v197 = vld [vmem:[%s195 + $0xa] sm:$0xff]
      %v198 = vld [vmem:[%s195 + $0x1a] sm:$0xff]
      %v199 = vld [vmem:[%s195 + $0x22] sm:$0xff]
      %v200 = vld [vmem:[%s195 + $0x32] sm:$0xff]
      %v201 = vld [vmem:[%s195 + $0x3a] sm:$0xff]
      %v202 = vld [vmem:[%s195 + $0x4a] sm:$0xff]
      %v203 = vld [vmem:[%s195 + $0x52] sm:$0xff]
      %v204 = vld [vmem:[%s195 + $0x62] sm:$0xff]
      %v205 = vld [vmem:[%s195 + $0x6a] sm:$0xff]
      %v206 = vld [vmem:[%s195 + $0x7a] sm:$0xff]
      %v207 = vld [vmem:[%s195 + $0x82] sm:$0xff]
      %v208 = vld [vmem:[%s195 + $0x92] sm:$0xff]
      %v209 = vld [vmem:[%s195 + $0x9a] sm:$0xff]
      %v210 = vld [vmem:[%s195 + $0xaa] sm:$0xff]
      %v211 = vld [vmem:[%s195 + $0xb2] sm:$0xff]
      %vm212 = vcmask 31744
      %213 = vst.msk [vmem:[#allocation2] sm:$0xff] %vm212, %v196
      %214 = vst.msk [vmem:[#allocation2 + $0x8] sm:$0xff] %vm212, %v197
      %215 = vst.msk [vmem:[#allocation2 + $0x10] sm:$0xff] %vm212, %v198
      %216 = vst.msk [vmem:[#allocation2 + $0x18] sm:$0xff] %vm212, %v199
      %217 = vst.msk [vmem:[#allocation2 + $0x20] sm:$0xff] %vm212, %v200
      %218 = vst.msk [vmem:[#allocation2 + $0x28] sm:$0xff] %vm212, %v201
      %219 = vst.msk [vmem:[#allocation2 + $0x30] sm:$0xff] %vm212, %v202
      %220 = vst.msk [vmem:[#allocation2 + $0x38] sm:$0xff] %vm212, %v203
      %221 = vst.msk [vmem:[#allocation2 + $0x40] sm:$0xff] %vm212, %v204
      %222 = vst.msk [vmem:[#allocation2 + $0x48] sm:$0xff] %vm212, %v205
      %223 = vst.msk [vmem:[#allocation2 + $0x50] sm:$0xff] %vm212, %v206
      %224 = vst.msk [vmem:[#allocation2 + $0x58] sm:$0xff] %vm212, %v207
      %225 = vst.msk [vmem:[#allocation2 + $0x60] sm:$0xff] %vm212, %v208
      %226 = vst.msk [vmem:[#allocation2 + $0x68] sm:$0xff] %vm212, %v209
      %227 = vst.msk [vmem:[#allocation2 + $0x70] sm:$0xff] %vm212, %v210
      %228 = vst.msk [vmem:[#allocation2 + $0x78] sm:$0xff] %vm212, %v211
      %v229 = vld [vmem:[%s195 + $0x3] sm:$0xff]
      %v230 = vld [vmem:[%s195 + $0xb] sm:$0xff]
      %v231 = vld [vmem:[%s195 + $0x1b] sm:$0xff]
      %v232 = vld [vmem:[%s195 + $0x23] sm:$0xff]
      %v233 = vld [vmem:[%s195 + $0x33] sm:$0xff]
      %v234 = vld [vmem:[%s195 + $0x3b] sm:$0xff]
      %v235 = vld [vmem:[%s195 + $0x4b] sm:$0xff]
      %v236 = vld [vmem:[%s195 + $0x53] sm:$0xff]
      %v237 = vld [vmem:[%s195 + $0x63] sm:$0xff]
      %v238 = vld [vmem:[%s195 + $0x6b] sm:$0xff]
      %v239 = vld [vmem:[%s195 + $0x7b] sm:$0xff]
      %v240 = vld [vmem:[%s195 + $0x83] sm:$0xff]
      %v241 = vld [vmem:[%s195 + $0x93] sm:$0xff]
      %v242 = vld [vmem:[%s195 + $0x9b] sm:$0xff]
      %v243 = vld [vmem:[%s195 + $0xab] sm:$0xff]
      %v244 = vld [vmem:[%s195 + $0xb3] sm:$0xff]
      %261 = vrot.lane.b32.xlu0 %v229, 4
      %v262 = vpop.permute.xlu0 %261
      %263 = vrot.lane.b32.xlu0 %v230, 4
      %v264 = vpop.permute.xlu0 %263
      %265 = vrot.lane.b32.xlu0 %v231, 4
      %v266 = vpop.permute.xlu0 %265
      %267 = vrot.lane.b32.xlu0 %v232, 4
      %v268 = vpop.permute.xlu0 %267
      %269 = vrot.lane.b32.xlu0 %v233, 4
      %v270 = vpop.permute.xlu0 %269
      %271 = vrot.lane.b32.xlu0 %v234, 4
      %v272 = vpop.permute.xlu0 %271
      %273 = vrot.lane.b32.xlu0 %v235, 4
      %v274 = vpop.permute.xlu0 %273
      %275 = vrot.lane.b32.xlu0 %v236, 4
      %v276 = vpop.permute.xlu0 %275
      %277 = vrot.lane.b32.xlu0 %v237, 4
      %v278 = vpop.permute.xlu0 %277
      %279 = vrot.lane.b32.xlu0 %v238, 4
      %v280 = vpop.permute.xlu0 %279
      %281 = vrot.lane.b32.xlu0 %v239, 4
      %v282 = vpop.permute.xlu0 %281
      %283 = vrot.lane.b32.xlu0 %v240, 4
      %v284 = vpop.permute.xlu0 %283
      %285 = vrot.lane.b32.xlu0 %v241, 4
      %v286 = vpop.permute.xlu0 %285
      %287 = vrot.lane.b32.xlu0 %v242, 4
      %v288 = vpop.permute.xlu0 %287
      %289 = vrot.lane.b32.xlu0 %v243, 4
      %v290 = vpop.permute.xlu0 %289
      %291 = vrot.lane.b32.xlu0 %v244, 4
      %v292 = vpop.permute.xlu0 %291
      %vm309 = vcmask 64544
      %310 = vst.msk [vmem:[#allocation2] sm:$0xff] %vm309, %v262
      %311 = vst.msk [vmem:[#allocation2 + $0x8] sm:$0xff] %vm309, %v264
      %312 = vst.msk [vmem:[#allocation2 + $0x10] sm:$0xff] %vm309, %v266
      %313 = vst.msk [vmem:[#allocation2 + $0x18] sm:$0xff] %vm309, %v268
      %314 = vst.msk [vmem:[#allocation2 + $0x20] sm:$0xff] %vm309, %v270
      %315 = vst.msk [vmem:[#allocation2 + $0x28] sm:$0xff] %vm309, %v272
      %316 = vst.msk [vmem:[#allocation2 + $0x30] sm:$0xff] %vm309, %v274
      %317 = vst.msk [vmem:[#allocation2 + $0x38] sm:$0xff] %vm309, %v276
      %318 = vst.msk [vmem:[#allocation2 + $0x40] sm:$0xff] %vm309, %v278
      %319 = vst.msk [vmem:[#allocation2 + $0x48] sm:$0xff] %vm309, %v280
      %320 = vst.msk [vmem:[#allocation2 + $0x50] sm:$0xff] %vm309, %v282
      %321 = vst.msk [vmem:[#allocation2 + $0x58] sm:$0xff] %vm309, %v284
      %322 = vst.msk [vmem:[#allocation2 + $0x60] sm:$0xff] %vm309, %v286
      %323 = vst.msk [vmem:[#allocation2 + $0x68] sm:$0xff] %vm309, %v288
      %324 = vst.msk [vmem:[#allocation2 + $0x70] sm:$0xff] %vm309, %v290
      %325 = vst.msk [vmem:[#allocation2 + $0x78] sm:$0xff] %vm309, %v292
      %v326 = vld [vmem:[%s195 + $0x4] sm:$0xff]
      %v327 = vld [vmem:[%s195 + $0xc] sm:$0xff]
      %v328 = vld [vmem:[%s195 + $0x1c] sm:$0xff]
      %v329 = vld [vmem:[%s195 + $0x24] sm:$0xff]
      %v330 = vld [vmem:[%s195 + $0x34] sm:$0xff]
      %v331 = vld [vmem:[%s195 + $0x3c] sm:$0xff]
      %v332 = vld [vmem:[%s195 + $0x4c] sm:$0xff]
      %v333 = vld [vmem:[%s195 + $0x54] sm:$0xff]
      %v334 = vld [vmem:[%s195 + $0x64] sm:$0xff]
      %v335 = vld [vmem:[%s195 + $0x6c] sm:$0xff]
      %v336 = vld [vmem:[%s195 + $0x7c] sm:$0xff]
      %v337 = vld [vmem:[%s195 + $0x84] sm:$0xff]
      %v338 = vld [vmem:[%s195 + $0x94] sm:$0xff]
      %v339 = vld [vmem:[%s195 + $0x9c] sm:$0xff]
      %v340 = vld [vmem:[%s195 + $0xac] sm:$0xff]
      %v341 = vld [vmem:[%s195 + $0xb4] sm:$0xff]
      %358 = vrot.lane.b32.xlu0 %v326, 8
      %v359 = vpop.permute.xlu0 %358
      %360 = vrot.lane.b32.xlu0 %v327, 8
      %v361 = vpop.permute.xlu0 %360
      %362 = vrot.lane.b32.xlu0 %v328, 8
      %v363 = vpop.permute.xlu0 %362
      %364 = vrot.lane.b32.xlu0 %v329, 8
      %v365 = vpop.permute.xlu0 %364
      %366 = vrot.lane.b32.xlu0 %v330, 8
      %v367 = vpop.permute.xlu0 %366
      %368 = vrot.lane.b32.xlu0 %v331, 8
      %v369 = vpop.permute.xlu0 %368
      %370 = vrot.lane.b32.xlu0 %v332, 8
      %v371 = vpop.permute.xlu0 %370
      %372 = vrot.lane.b32.xlu0 %v333, 8
      %v373 = vpop.permute.xlu0 %372
      %374 = vrot.lane.b32.xlu0 %v334, 8
      %v375 = vpop.permute.xlu0 %374
      %376 = vrot.lane.b32.xlu0 %v335, 8
      %v377 = vpop.permute.xlu0 %376
      %378 = vrot.lane.b32.xlu0 %v336, 8
      %v379 = vpop.permute.xlu0 %378
      %380 = vrot.lane.b32.xlu0 %v337, 8
      %v381 = vpop.permute.xlu0 %380
      %382 = vrot.lane.b32.xlu0 %v338, 8
      %v383 = vpop.permute.xlu0 %382
      %384 = vrot.lane.b32.xlu0 %v339, 8
      %v385 = vpop.permute.xlu0 %384
      %386 = vrot.lane.b32.xlu0 %v340, 8
      %v387 = vpop.permute.xlu0 %386
      %388 = vrot.lane.b32.xlu0 %v341, 8
      %v389 = vpop.permute.xlu0 %388
      %vm406 = vcmask 97344
      %407 = vst.msk [vmem:[#allocation2] sm:$0xff] %vm406, %v359
      %408 = vst.msk [vmem:[#allocation2 + $0x8] sm:$0xff] %vm406, %v361
      %409 = vst.msk [vmem:[#allocation2 + $0x10] sm:$0xff] %vm406, %v363
      %410 = vst.msk [vmem:[#allocation2 + $0x18] sm:$0xff] %vm406, %v365
      %411 = vst.msk [vmem:[#allocation2 + $0x20] sm:$0xff] %vm406, %v367
      %412 = vst.msk [vmem:[#allocation2 + $0x28] sm:$0xff] %vm406, %v369
      %413 = vst.msk [vmem:[#allocation2 + $0x30] sm:$0xff] %vm406, %v371
      %414 = vst.msk [vmem:[#allocation2 + $0x38] sm:$0xff] %vm406, %v373
      %415 = vst.msk [vmem:[#allocation2 + $0x40] sm:$0xff] %vm406, %v375
      %416 = vst.msk [vmem:[#allocation2 + $0x48] sm:$0xff] %vm406, %v377
      %417 = vst.msk [vmem:[#allocation2 + $0x50] sm:$0xff] %vm406, %v379
      %418 = vst.msk [vmem:[#allocation2 + $0x58] sm:$0xff] %vm406, %v381
      %419 = vst.msk [vmem:[#allocation2 + $0x60] sm:$0xff] %vm406, %v383
      %420 = vst.msk [vmem:[#allocation2 + $0x68] sm:$0xff] %vm406, %v385
      %421 = vst.msk [vmem:[#allocation2 + $0x70] sm:$0xff] %vm406, %v387
      %422 = vst.msk [vmem:[#allocation2 + $0x78] sm:$0xff] %vm406, %v389
      %s423 = sadd.s32 %s192, 3
      %s424 = smul.u32 %s423, 24
      %s425 = scalar_lea.vmem %s182, %s424
      %v426 = vld [vmem:[%s425 + $0x2] sm:$0xff]
      %v427 = vld [vmem:[%s425 + $0xa] sm:$0xff]
      %v428 = vld [vmem:[%s425 + $0x1a] sm:$0xff]
      %v429 = vld [vmem:[%s425 + $0x22] sm:$0xff]
      %v430 = vld [vmem:[%s425 + $0x32] sm:$0xff]
      %v431 = vld [vmem:[%s425 + $0x3a] sm:$0xff]
      %v432 = vld [vmem:[%s425 + $0x4a] sm:$0xff]
      %v433 = vld [vmem:[%s425 + $0x52] sm:$0xff]
      %v434 = vld [vmem:[%s425 + $0x62] sm:$0xff]
      %v435 = vld [vmem:[%s425 + $0x6a] sm:$0xff]
      %v436 = vld [vmem:[%s425 + $0x7a] sm:$0xff]
      %v437 = vld [vmem:[%s425 + $0x82] sm:$0xff]
      %v438 = vld [vmem:[%s425 + $0x92] sm:$0xff]
      %v439 = vld [vmem:[%s425 + $0x9a] sm:$0xff]
      %v440 = vld [vmem:[%s425 + $0xaa] sm:$0xff]
      %v441 = vld [vmem:[%s425 + $0xb2] sm:$0xff]
      %458 = vrot.lane.b32.xlu0 %v426, 12
      %v459 = vpop.permute.xlu0 %458
      %460 = vrot.lane.b32.xlu0 %v427, 12
      %v461 = vpop.permute.xlu0 %460
      %462 = vrot.lane.b32.xlu0 %v428, 12
      %v463 = vpop.permute.xlu0 %462
      %464 = vrot.lane.b32.xlu0 %v429, 12
      %v465 = vpop.permute.xlu0 %464
      %466 = vrot.lane.b32.xlu0 %v430, 12
      %v467 = vpop.permute.xlu0 %466
      %468 = vrot.lane.b32.xlu0 %v431, 12
      %v469 = vpop.permute.xlu0 %468
      %470 = vrot.lane.b32.xlu0 %v432, 12
      %v471 = vpop.permute.xlu0 %470
      %472 = vrot.lane.b32.xlu0 %v433, 12
      %v473 = vpop.permute.xlu0 %472
      %474 = vrot.lane.b32.xlu0 %v434, 12
      %v475 = vpop.permute.xlu0 %474
      %476 = vrot.lane.b32.xlu0 %v435, 12
      %v477 = vpop.permute.xlu0 %476
      %478 = vrot.lane.b32.xlu0 %v436, 12
      %v479 = vpop.permute.xlu0 %478
      %480 = vrot.lane.b32.xlu0 %v437, 12
      %v481 = vpop.permute.xlu0 %480
      %482 = vrot.lane.b32.xlu0 %v438, 12
      %v483 = vpop.permute.xlu0 %482
      %484 = vrot.lane.b32.xlu0 %v439, 12
      %v485 = vpop.permute.xlu0 %484
      %486 = vrot.lane.b32.xlu0 %v440, 12
      %v487 = vpop.permute.xlu0 %486
      %488 = vrot.lane.b32.xlu0 %v441, 12
      %v489 = vpop.permute.xlu0 %488
      %vm506 = vcmask 130144
      %507 = vst.msk [vmem:[#allocation2] sm:$0xff] %vm506, %v459
      %508 = vst.msk [vmem:[#allocation2 + $0x8] sm:$0xff] %vm506, %v461
      %509 = vst.msk [vmem:[#allocation2 + $0x10] sm:$0xff] %vm506, %v463
      %510 = vst.msk [vmem:[#allocation2 + $0x18] sm:$0xff] %vm506, %v465
      %511 = vst.msk [vmem:[#allocation2 + $0x20] sm:$0xff] %vm506, %v467
      %512 = vst.msk [vmem:[#allocation2 + $0x28] sm:$0xff] %vm506, %v469
      %513 = vst.msk [vmem:[#allocation2 + $0x30] sm:$0xff] %vm506, %v471
      %514 = vst.msk [vmem:[#allocation2 + $0x38] sm:$0xff] %vm506, %v473
      %515 = vst.msk [vmem:[#allocation2 + $0x40] sm:$0xff] %vm506, %v475
      %516 = vst.msk [vmem:[#allocation2 + $0x48] sm:$0xff] %vm506, %v477
      %517 = vst.msk [vmem:[#allocation2 + $0x50] sm:$0xff] %vm506, %v479
      %518 = vst.msk [vmem:[#allocation2 + $0x58] sm:$0xff] %vm506, %v481
      %519 = vst.msk [vmem:[#allocation2 + $0x60] sm:$0xff] %vm506, %v483
      %520 = vst.msk [vmem:[#allocation2 + $0x68] sm:$0xff] %vm506, %v485
      %521 = vst.msk [vmem:[#allocation2 + $0x70] sm:$0xff] %vm506, %v487
      %522 = vst.msk [vmem:[#allocation2 + $0x78] sm:$0xff] %vm506, %v489
      %v523 = vld [vmem:[%s425 + $0x3] sm:$0xff]
      %v524 = vld [vmem:[%s425 + $0xb] sm:$0xff]
      %v525 = vld [vmem:[%s425 + $0x1b] sm:$0xff]
      %v526 = vld [vmem:[%s425 + $0x23] sm:$0xff]
      %v527 = vld [vmem:[%s425 + $0x33] sm:$0xff]
      %v528 = vld [vmem:[%s425 + $0x3b] sm:$0xff]
      %v529 = vld [vmem:[%s425 + $0x4b] sm:$0xff]
      %v530 = vld [vmem:[%s425 + $0x53] sm:$0xff]
      %v531 = vld [vmem:[%s425 + $0x63] sm:$0xff]
      %v532 = vld [vmem:[%s425 + $0x6b] sm:$0xff]
      %v533 = vld [vmem:[%s425 + $0x7b] sm:$0xff]
      %v534 = vld [vmem:[%s425 + $0x83] sm:$0xff]
      %v535 = vld [vmem:[%s425 + $0x93] sm:$0xff]
      %v536 = vld [vmem:[%s425 + $0x9b] sm:$0xff]
      %v537 = vld [vmem:[%s425 + $0xab] sm:$0xff]
      %v538 = vld [vmem:[%s425 + $0xb3] sm:$0xff]
      %555 = vrot.lane.b32.xlu0 %v523, 16
      %v556 = vpop.permute.xlu0 %555
      %557 = vrot.lane.b32.xlu0 %v524, 16
      %v558 = vpop.permute.xlu0 %557
      %559 = vrot.lane.b32.xlu0 %v525, 16
      %v560 = vpop.permute.xlu0 %559
      %561 = vrot.lane.b32.xlu0 %v526, 16
      %v562 = vpop.permute.xlu0 %561
      %563 = vrot.lane.b32.xlu0 %v527, 16
      %v564 = vpop.permute.xlu0 %563
      %565 = vrot.lane.b32.xlu0 %v528, 16
      %v566 = vpop.permute.xlu0 %565
      %567 = vrot.lane.b32.xlu0 %v529, 16
      %v568 = vpop.permute.xlu0 %567
      %569 = vrot.lane.b32.xlu0 %v530, 16
      %v570 = vpop.permute.xlu0 %569
      %571 = vrot.lane.b32.xlu0 %v531, 16
      %v572 = vpop.permute.xlu0 %571
      %573 = vrot.lane.b32.xlu0 %v532, 16
      %v574 = vpop.permute.xlu0 %573
      %575 = vrot.lane.b32.xlu0 %v533, 16
      %v576 = vpop.permute.xlu0 %575
      %577 = vrot.lane.b32.xlu0 %v534, 16
      %v578 = vpop.permute.xlu0 %577
      %579 = vrot.lane.b32.xlu0 %v535, 16
      %v580 = vpop.permute.xlu0 %579
      %581 = vrot.lane.b32.xlu0 %v536, 16
      %v582 = vpop.permute.xlu0 %581
      %583 = vrot.lane.b32.xlu0 %v537, 16
      %v584 = vpop.permute.xlu0 %583
      %585 = vrot.lane.b32.xlu0 %v538, 16
      %v586 = vpop.permute.xlu0 %585
      %vm603 = vcmask 162944
      %604 = vst.msk [vmem:[#allocation2] sm:$0xff] %vm603, %v556
      %605 = vst.msk [vmem:[#allocation2 + $0x8] sm:$0xff] %vm603, %v558
      %606 = vst.msk [vmem:[#allocation2 + $0x10] sm:$0xff] %vm603, %v560
      %607 = vst.msk [vmem:[#allocation2 + $0x18] sm:$0xff] %vm603, %v562
      %608 = vst.msk [vmem:[#allocation2 + $0x20] sm:$0xff] %vm603, %v564
      %609 = vst.msk [vmem:[#allocation2 + $0x28] sm:$0xff] %vm603, %v566
      %610 = vst.msk [vmem:[#allocation2 + $0x30] sm:$0xff] %vm603, %v568
      %611 = vst.msk [vmem:[#allocation2 + $0x38] sm:$0xff] %vm603, %v570
      %612 = vst.msk [vmem:[#allocation2 + $0x40] sm:$0xff] %vm603, %v572
      %613 = vst.msk [vmem:[#allocation2 + $0x48] sm:$0xff] %vm603, %v574
      %614 = vst.msk [vmem:[#allocation2 + $0x50] sm:$0xff] %vm603, %v576
      %615 = vst.msk [vmem:[#allocation2 + $0x58] sm:$0xff] %vm603, %v578
      %616 = vst.msk [vmem:[#allocation2 + $0x60] sm:$0xff] %vm603, %v580
      %617 = vst.msk [vmem:[#allocation2 + $0x68] sm:$0xff] %vm603, %v582
      %618 = vst.msk [vmem:[#allocation2 + $0x70] sm:$0xff] %vm603, %v584
      %619 = vst.msk [vmem:[#allocation2 + $0x78] sm:$0xff] %vm603, %v586
      %v620 = vld [vmem:[%s425 + $0x4] sm:$0xff]
      %v621 = vld [vmem:[%s425 + $0xc] sm:$0xff]
      %v622 = vld [vmem:[%s425 + $0x1c] sm:$0xff]
      %v623 = vld [vmem:[%s425 + $0x24] sm:$0xff]
      %v624 = vld [vmem:[%s425 + $0x34] sm:$0xff]
      %v625 = vld [vmem:[%s425 + $0x3c] sm:$0xff]
      %v626 = vld [vmem:[%s425 + $0x4c] sm:$0xff]
      %v627 = vld [vmem:[%s425 + $0x54] sm:$0xff]
      %v628 = vld [vmem:[%s425 + $0x64] sm:$0xff]
      %v629 = vld [vmem:[%s425 + $0x6c] sm:$0xff]
      %v630 = vld [vmem:[%s425 + $0x7c] sm:$0xff]
      %v631 = vld [vmem:[%s425 + $0x84] sm:$0xff]
      %v632 = vld [vmem:[%s425 + $0x94] sm:$0xff]
      %v633 = vld [vmem:[%s425 + $0x9c] sm:$0xff]
      %v634 = vld [vmem:[%s425 + $0xac] sm:$0xff]
      %v635 = vld [vmem:[%s425 + $0xb4] sm:$0xff]
      %652 = vrot.lane.b32.xlu0 %v620, 20
      %v653 = vpop.permute.xlu0 %652
      %654 = vrot.lane.b32.xlu0 %v621, 20
      %v655 = vpop.permute.xlu0 %654
      %656 = vrot.lane.b32.xlu0 %v622, 20
      %v657 = vpop.permute.xlu0 %656
      %658 = vrot.lane.b32.xlu0 %v623, 20
      %v659 = vpop.permute.xlu0 %658
      %660 = vrot.lane.b32.xlu0 %v624, 20
      %v661 = vpop.permute.xlu0 %660
      %662 = vrot.lane.b32.xlu0 %v625, 20
      %v663 = vpop.permute.xlu0 %662
      %664 = vrot.lane.b32.xlu0 %v626, 20
      %v665 = vpop.permute.xlu0 %664
      %666 = vrot.lane.b32.xlu0 %v627, 20
      %v667 = vpop.permute.xlu0 %666
      %668 = vrot.lane.b32.xlu0 %v628, 20
      %v669 = vpop.permute.xlu0 %668
      %670 = vrot.lane.b32.xlu0 %v629, 20
      %v671 = vpop.permute.xlu0 %670
      %672 = vrot.lane.b32.xlu0 %v630, 20
      %v673 = vpop.permute.xlu0 %672
      %674 = vrot.lane.b32.xlu0 %v631, 20
      %v675 = vpop.permute.xlu0 %674
      %676 = vrot.lane.b32.xlu0 %v632, 20
      %v677 = vpop.permute.xlu0 %676
      %678 = vrot.lane.b32.xlu0 %v633, 20
      %v679 = vpop.permute.xlu0 %678
      %680 = vrot.lane.b32.xlu0 %v634, 20
      %v681 = vpop.permute.xlu0 %680
      %682 = vrot.lane.b32.xlu0 %v635, 20
      %v683 = vpop.permute.xlu0 %682
      %vm700 = vcmask 195744
      %701 = vst.msk [vmem:[#allocation2] sm:$0xff] %vm700, %v653
      %702 = vst.msk [vmem:[#allocation2 + $0x8] sm:$0xff] %vm700, %v655
      %703 = vst.msk [vmem:[#allocation2 + $0x10] sm:$0xff] %vm700, %v657
      %704 = vst.msk [vmem:[#allocation2 + $0x18] sm:$0xff] %vm700, %v659
      %705 = vst.msk [vmem:[#allocation2 + $0x20] sm:$0xff] %vm700, %v661
      %706 = vst.msk [vmem:[#allocation2 + $0x28] sm:$0xff] %vm700, %v663
      %707 = vst.msk [vmem:[#allocation2 + $0x30] sm:$0xff] %vm700, %v665
      %708 = vst.msk [vmem:[#allocation2 + $0x38] sm:$0xff] %vm700, %v667
      %709 = vst.msk [vmem:[#allocation2 + $0x40] sm:$0xff] %vm700, %v669
      %710 = vst.msk [vmem:[#allocation2 + $0x48] sm:$0xff] %vm700, %v671
      %711 = vst.msk [vmem:[#allocation2 + $0x50] sm:$0xff] %vm700, %v673
      %712 = vst.msk [vmem:[#allocation2 + $0x58] sm:$0xff] %vm700, %v675
      %713 = vst.msk [vmem:[#allocation2 + $0x60] sm:$0xff] %vm700, %v677
      %714 = vst.msk [vmem:[#allocation2 + $0x68] sm:$0xff] %vm700, %v679
      %715 = vst.msk [vmem:[#allocation2 + $0x70] sm:$0xff] %vm700, %v681
      %716 = vst.msk [vmem:[#allocation2 + $0x78] sm:$0xff] %vm700, %v683
      %s717 = sadd.s32 %s192, 4
      %s718 = smul.u32 %s717, 24
      %s719 = scalar_lea.vmem %s182, %s718
      %v720 = vld [vmem:[%s719 + $0x2] sm:$0xff]
      %v721 = vld [vmem:[%s719 + $0xa] sm:$0xff]
      %v722 = vld [vmem:[%s719 + $0x1a] sm:$0xff]
      %v723 = vld [vmem:[%s719 + $0x22] sm:$0xff]
      %v724 = vld [vmem:[%s719 + $0x32] sm:$0xff]
      %v725 = vld [vmem:[%s719 + $0x3a] sm:$0xff]
      %v726 = vld [vmem:[%s719 + $0x4a] sm:$0xff]
      %v727 = vld [vmem:[%s719 + $0x52] sm:$0xff]
      %v728 = vld [vmem:[%s719 + $0x62] sm:$0xff]
      %v729 = vld [vmem:[%s719 + $0x6a] sm:$0xff]
      %v730 = vld [vmem:[%s719 + $0x7a] sm:$0xff]
      %v731 = vld [vmem:[%s719 + $0x82] sm:$0xff]
      %v732 = vld [vmem:[%s719 + $0x92] sm:$0xff]
      %v733 = vld [vmem:[%s719 + $0x9a] sm:$0xff]
      %v734 = vld [vmem:[%s719 + $0xaa] sm:$0xff]
      %v735 = vld [vmem:[%s719 + $0xb2] sm:$0xff]
      %752 = vrot.lane.b32.xlu0 %v720, 24
      %v753 = vpop.permute.xlu0 %752
      %754 = vrot.lane.b32.xlu0 %v721, 24
      %v755 = vpop.permute.xlu0 %754
      %756 = vrot.lane.b32.xlu0 %v722, 24
      %v757 = vpop.permute.xlu0 %756
      %758 = vrot.lane.b32.xlu0 %v723, 24
      %v759 = vpop.permute.xlu0 %758
      %760 = vrot.lane.b32.xlu0 %v724, 24
      %v761 = vpop.permute.xlu0 %760
      %762 = vrot.lane.b32.xlu0 %v725, 24
      %v763 = vpop.permute.xlu0 %762
      %764 = vrot.lane.b32.xlu0 %v726, 24
      %v765 = vpop.permute.xlu0 %764
      %766 = vrot.lane.b32.xlu0 %v727, 24
      %v767 = vpop.permute.xlu0 %766
      %768 = vrot.lane.b32.xlu0 %v728, 24
      %v769 = vpop.permute.xlu0 %768
      %770 = vrot.lane.b32.xlu0 %v729, 24
      %v771 = vpop.permute.xlu0 %770
      %772 = vrot.lane.b32.xlu0 %v730, 24
      %v773 = vpop.permute.xlu0 %772
      %774 = vrot.lane.b32.xlu0 %v731, 24
      %v775 = vpop.permute.xlu0 %774
      %776 = vrot.lane.b32.xlu0 %v732, 24
      %v777 = vpop.permute.xlu0 %776
      %778 = vrot.lane.b32.xlu0 %v733, 24
      %v779 = vpop.permute.xlu0 %778
      %780 = vrot.lane.b32.xlu0 %v734, 24
      %v781 = vpop.permute.xlu0 %780
      %782 = vrot.lane.b32.xlu0 %v735, 24
      %v783 = vpop.permute.xlu0 %782
      %vm800 = vcmask 228544
      %801 = vst.msk [vmem:[#allocation2] sm:$0xff] %vm800, %v753
      %802 = vst.msk [vmem:[#allocation2 + $0x8] sm:$0xff] %vm800, %v755
      %803 = vst.msk [vmem:[#allocation2 + $0x10] sm:$0xff] %vm800, %v757
      %804 = vst.msk [vmem:[#allocation2 + $0x18] sm:$0xff] %vm800, %v759
      %805 = vst.msk [vmem:[#allocation2 + $0x20] sm:$0xff] %vm800, %v761
      %806 = vst.msk [vmem:[#allocation2 + $0x28] sm:$0xff] %vm800, %v763
      %807 = vst.msk [vmem:[#allocation2 + $0x30] sm:$0xff] %vm800, %v765
      %808 = vst.msk [vmem:[#allocation2 + $0x38] sm:$0xff] %vm800, %v767
      %809 = vst.msk [vmem:[#allocation2 + $0x40] sm:$0xff] %vm800, %v769
      %810 = vst.msk [vmem:[#allocation2 + $0x48] sm:$0xff] %vm800, %v771
      %811 = vst.msk [vmem:[#allocation2 + $0x50] sm:$0xff] %vm800, %v773
      %812 = vst.msk [vmem:[#allocation2 + $0x58] sm:$0xff] %vm800, %v775
      %813 = vst.msk [vmem:[#allocation2 + $0x60] sm:$0xff] %vm800, %v777
      %814 = vst.msk [vmem:[#allocation2 + $0x68] sm:$0xff] %vm800, %v779
      %815 = vst.msk [vmem:[#allocation2 + $0x70] sm:$0xff] %vm800, %v781
      %816 = vst.msk [vmem:[#allocation2 + $0x78] sm:$0xff] %vm800, %v783
      %v817 = vld [vmem:[%s719 + $0x3] sm:$0xff]
      %v818 = vld [vmem:[%s719 + $0xb] sm:$0xff]
      %v819 = vld [vmem:[%s719 + $0x1b] sm:$0xff]
      %v820 = vld [vmem:[%s719 + $0x23] sm:$0xff]
      %v821 = vld [vmem:[%s719 + $0x33] sm:$0xff]
      %v822 = vld [vmem:[%s719 + $0x3b] sm:$0xff]
      %v823 = vld [vmem:[%s719 + $0x4b] sm:$0xff]
      %v824 = vld [vmem:[%s719 + $0x53] sm:$0xff]
      %v825 = vld [vmem:[%s719 + $0x63] sm:$0xff]
      %v826 = vld [vmem:[%s719 + $0x6b] sm:$0xff]
      %v827 = vld [vmem:[%s719 + $0x7b] sm:$0xff]
      %v828 = vld [vmem:[%s719 + $0x83] sm:$0xff]
      %v829 = vld [vmem:[%s719 + $0x93] sm:$0xff]
      %v830 = vld [vmem:[%s719 + $0x9b] sm:$0xff]
      %v831 = vld [vmem:[%s719 + $0xab] sm:$0xff]
      %v832 = vld [vmem:[%s719 + $0xb3] sm:$0xff]
      %849 = vrot.lane.b32.xlu0 %v817, 28
      %v850 = vpop.permute.xlu0 %849
      %851 = vrot.lane.b32.xlu0 %v818, 28
      %v852 = vpop.permute.xlu0 %851
      %853 = vrot.lane.b32.xlu0 %v819, 28
      %v854 = vpop.permute.xlu0 %853
      %855 = vrot.lane.b32.xlu0 %v820, 28
      %v856 = vpop.permute.xlu0 %855
      %857 = vrot.lane.b32.xlu0 %v821, 28
      %v858 = vpop.permute.xlu0 %857
      %859 = vrot.lane.b32.xlu0 %v822, 28
      %v860 = vpop.permute.xlu0 %859
      %861 = vrot.lane.b32.xlu0 %v823, 28
      %v862 = vpop.permute.xlu0 %861
      %863 = vrot.lane.b32.xlu0 %v824, 28
      %v864 = vpop.permute.xlu0 %863
      %865 = vrot.lane.b32.xlu0 %v825, 28
      %v866 = vpop.permute.xlu0 %865
      %867 = vrot.lane.b32.xlu0 %v826, 28
      %v868 = vpop.permute.xlu0 %867
      %869 = vrot.lane.b32.xlu0 %v827, 28
      %v870 = vpop.permute.xlu0 %869
      %871 = vrot.lane.b32.xlu0 %v828, 28
      %v872 = vpop.permute.xlu0 %871
      %873 = vrot.lane.b32.xlu0 %v829, 28
      %v874 = vpop.permute.xlu0 %873
      %875 = vrot.lane.b32.xlu0 %v830, 28
      %v876 = vpop.permute.xlu0 %875
      %877 = vrot.lane.b32.xlu0 %v831, 28
      %v878 = vpop.permute.xlu0 %877
      %879 = vrot.lane.b32.xlu0 %v832, 28
      %v880 = vpop.permute.xlu0 %879
      %vm897 = vcmask 261344
      %898 = vst.msk [vmem:[#allocation2] sm:$0xff] %vm897, %v850
      %899 = vst.msk [vmem:[#allocation2 + $0x8] sm:$0xff] %vm897, %v852
      %900 = vst.msk [vmem:[#allocation2 + $0x10] sm:$0xff] %vm897, %v854
      %901 = vst.msk [vmem:[#allocation2 + $0x18] sm:$0xff] %vm897, %v856
      %902 = vst.msk [vmem:[#allocation2 + $0x20] sm:$0xff] %vm897, %v858
      %903 = vst.msk [vmem:[#allocation2 + $0x28] sm:$0xff] %vm897, %v860
      %904 = vst.msk [vmem:[#allocation2 + $0x30] sm:$0xff] %vm897, %v862
      %905 = vst.msk [vmem:[#allocation2 + $0x38] sm:$0xff] %vm897, %v864
      %906 = vst.msk [vmem:[#allocation2 + $0x40] sm:$0xff] %vm897, %v866
      %907 = vst.msk [vmem:[#allocation2 + $0x48] sm:$0xff] %vm897, %v868
      %908 = vst.msk [vmem:[#allocation2 + $0x50] sm:$0xff] %vm897, %v870
      %909 = vst.msk [vmem:[#allocation2 + $0x58] sm:$0xff] %vm897, %v872
      %910 = vst.msk [vmem:[#allocation2 + $0x60] sm:$0xff] %vm897, %v874
      %911 = vst.msk [vmem:[#allocation2 + $0x68] sm:$0xff] %vm897, %v876
      %912 = vst.msk [vmem:[#allocation2 + $0x70] sm:$0xff] %vm897, %v878
      %913 = vst.msk [vmem:[#allocation2 + $0x78] sm:$0xff] %vm897, %v880
      %v914 = vld [vmem:[%s719 + $0x4] sm:$0xff]
      %v915 = vld [vmem:[%s719 + $0xc] sm:$0xff]
      %v916 = vld [vmem:[%s719 + $0x1c] sm:$0xff]
      %v917 = vld [vmem:[%s719 + $0x24] sm:$0xff]
      %v918 = vld [vmem:[%s719 + $0x34] sm:$0xff]
      %v919 = vld [vmem:[%s719 + $0x3c] sm:$0xff]
      %v920 = vld [vmem:[%s719 + $0x4c] sm:$0xff]
      %v921 = vld [vmem:[%s719 + $0x54] sm:$0xff]
      %v922 = vld [vmem:[%s719 + $0x64] sm:$0xff]
      %v923 = vld [vmem:[%s719 + $0x6c] sm:$0xff]
      %v924 = vld [vmem:[%s719 + $0x7c] sm:$0xff]
      %v925 = vld [vmem:[%s719 + $0x84] sm:$0xff]
      %v926 = vld [vmem:[%s719 + $0x94] sm:$0xff]
      %v927 = vld [vmem:[%s719 + $0x9c] sm:$0xff]
      %v928 = vld [vmem:[%s719 + $0xac] sm:$0xff]
      %v929 = vld [vmem:[%s719 + $0xb4] sm:$0xff]
      %946 = vrot.lane.b32.xlu0 %v914, 32
      %v947 = vpop.permute.xlu0 %946
      %948 = vrot.lane.b32.xlu0 %v915, 32
      %v949 = vpop.permute.xlu0 %948
      %950 = vrot.lane.b32.xlu0 %v916, 32
      %v951 = vpop.permute.xlu0 %950
      %952 = vrot.lane.b32.xlu0 %v917, 32
      %v953 = vpop.permute.xlu0 %952
      %954 = vrot.lane.b32.xlu0 %v918, 32
      %v955 = vpop.permute.xlu0 %954
      %956 = vrot.lane.b32.xlu0 %v919, 32
      %v957 = vpop.permute.xlu0 %956
      %958 = vrot.lane.b32.xlu0 %v920, 32
      %v959 = vpop.permute.xlu0 %958
      %960 = vrot.lane.b32.xlu0 %v921, 32
      %v961 = vpop.permute.xlu0 %960
      %962 = vrot.lane.b32.xlu0 %v922, 32
      %v963 = vpop.permute.xlu0 %962
      %964 = vrot.lane.b32.xlu0 %v923, 32
      %v965 = vpop.permute.xlu0 %964
      %966 = vrot.lane.b32.xlu0 %v924, 32
      %v967 = vpop.permute.xlu0 %966
      %968 = vrot.lane.b32.xlu0 %v925, 32
      %v969 = vpop.permute.xlu0 %968
      %970 = vrot.lane.b32.xlu0 %v926, 32
      %v971 = vpop.permute.xlu0 %970
      %972 = vrot.lane.b32.xlu0 %v927, 32
      %v973 = vpop.permute.xlu0 %972
      %974 = vrot.lane.b32.xlu0 %v928, 32
      %v975 = vpop.permute.xlu0 %974
      %976 = vrot.lane.b32.xlu0 %v929, 32
      %v977 = vpop.permute.xlu0 %976
      %vm994 = vcmask 294144
      %995 = vst.msk [vmem:[#allocation2] sm:$0xff] %vm994, %v947
      %996 = vst.msk [vmem:[#allocation2 + $0x8] sm:$0xff] %vm994, %v949
      %997 = vst.msk [vmem:[#allocation2 + $0x10] sm:$0xff] %vm994, %v951
      %998 = vst.msk [vmem:[#allocation2 + $0x18] sm:$0xff] %vm994, %v953
      %999 = vst.msk [vmem:[#allocation2 + $0x20] sm:$0xff] %vm994, %v955
      %1000 = vst.msk [vmem:[#allocation2 + $0x28] sm:$0xff] %vm994, %v957
      %1001 = vst.msk [vmem:[#allocation2 + $0x30] sm:$0xff] %vm994, %v959
      %1002 = vst.msk [vmem:[#allocation2 + $0x38] sm:$0xff] %vm994, %v961
      %1003 = vst.msk [vmem:[#allocation2 + $0x40] sm:$0xff] %vm994, %v963
      %1004 = vst.msk [vmem:[#allocation2 + $0x48] sm:$0xff] %vm994, %v965
      %1005 = vst.msk [vmem:[#allocation2 + $0x50] sm:$0xff] %vm994, %v967
      %1006 = vst.msk [vmem:[#allocation2 + $0x58] sm:$0xff] %vm994, %v969
      %1007 = vst.msk [vmem:[#allocation2 + $0x60] sm:$0xff] %vm994, %v971
      %1008 = vst.msk [vmem:[#allocation2 + $0x68] sm:$0xff] %vm994, %v973
      %1009 = vst.msk [vmem:[#allocation2 + $0x70] sm:$0xff] %vm994, %v975
      %1010 = vst.msk [vmem:[#allocation2 + $0x78] sm:$0xff] %vm994, %v977
      %s1011 = sadd.s32 %s192, 1
      %s1012 = smul.u32 %s1011, 24
      %s1013 = scalar_lea.vmem %s182, %s1012
      %v1014 = vld [vmem:[%s1013 + $0x1] sm:$0xff]
      %v1015 = vld [vmem:[%s1013 + $0x9] sm:$0xff]
      %v1016 = vld [vmem:[%s1013 + $0x19] sm:$0xff]
      %v1017 = vld [vmem:[%s1013 + $0x21] sm:$0xff]
      %v1018 = vld [vmem:[%s1013 + $0x31] sm:$0xff]
      %v1019 = vld [vmem:[%s1013 + $0x39] sm:$0xff]
      %v1020 = vld [vmem:[%s1013 + $0x49] sm:$0xff]
      %v1021 = vld [vmem:[%s1013 + $0x51] sm:$0xff]
      %v1022 = vld [vmem:[%s1013 + $0x61] sm:$0xff]
      %v1023 = vld [vmem:[%s1013 + $0x69] sm:$0xff]
      %v1024 = vld [vmem:[%s1013 + $0x79] sm:$0xff]
      %v1025 = vld [vmem:[%s1013 + $0x81] sm:$0xff]
      %v1026 = vld [vmem:[%s1013 + $0x91] sm:$0xff]
      %v1027 = vld [vmem:[%s1013 + $0x99] sm:$0xff]
      %v1028 = vld [vmem:[%s1013 + $0xa9] sm:$0xff]
      %v1029 = vld [vmem:[%s1013 + $0xb1] sm:$0xff]
      %1046 = vrot.lane.b32.xlu0 %v1014, 36
      %v1047 = vpop.permute.xlu0 %1046
      %1048 = vrot.lane.b32.xlu0 %v1015, 36
      %v1049 = vpop.permute.xlu0 %1048
      %1050 = vrot.lane.b32.xlu0 %v1016, 36
      %v1051 = vpop.permute.xlu0 %1050
      %1052 = vrot.lane.b32.xlu0 %v1017, 36
      %v1053 = vpop.permute.xlu0 %1052
      %1054 = vrot.lane.b32.xlu0 %v1018, 36
      %v1055 = vpop.permute.xlu0 %1054
      %1056 = vrot.lane.b32.xlu0 %v1019, 36
      %v1057 = vpop.permute.xlu0 %1056
      %1058 = vrot.lane.b32.xlu0 %v1020, 36
      %v1059 = vpop.permute.xlu0 %1058
      %1060 = vrot.lane.b32.xlu0 %v1021, 36
      %v1061 = vpop.permute.xlu0 %1060
      %1062 = vrot.lane.b32.xlu0 %v1022, 36
      %v1063 = vpop.permute.xlu0 %1062
      %1064 = vrot.lane.b32.xlu0 %v1023, 36
      %v1065 = vpop.permute.xlu0 %1064
      %1066 = vrot.lane.b32.xlu0 %v1024, 36
      %v1067 = vpop.permute.xlu0 %1066
      %1068 = vrot.lane.b32.xlu0 %v1025, 36
      %v1069 = vpop.permute.xlu0 %1068
      %1070 = vrot.lane.b32.xlu0 %v1026, 36
      %v1071 = vpop.permute.xlu0 %1070
      %1072 = vrot.lane.b32.xlu0 %v1027, 36
      %v1073 = vpop.permute.xlu0 %1072
      %1074 = vrot.lane.b32.xlu0 %v1028, 36
      %v1075 = vpop.permute.xlu0 %1074
      %1076 = vrot.lane.b32.xlu0 %v1029, 36
      %v1077 = vpop.permute.xlu0 %1076
      %vm1094 = vcmask 326944
      %1095 = vst.msk [vmem:[#allocation2] sm:$0xff] %vm1094, %v1047
      %1096 = vst.msk [vmem:[#allocation2 + $0x8] sm:$0xff] %vm1094, %v1049
      %1097 = vst.msk [vmem:[#allocation2 + $0x10] sm:$0xff] %vm1094, %v1051
      %1098 = vst.msk [vmem:[#allocation2 + $0x18] sm:$0xff] %vm1094, %v1053
      %1099 = vst.msk [vmem:[#allocation2 + $0x20] sm:$0xff] %vm1094, %v1055
      %1100 = vst.msk [vmem:[#allocation2 + $0x28] sm:$0xff] %vm1094, %v1057
      %1101 = vst.msk [vmem:[#allocation2 + $0x30] sm:$0xff] %vm1094, %v1059
      %1102 = vst.msk [vmem:[#allocation2 + $0x38] sm:$0xff] %vm1094, %v1061
      %1103 = vst.msk [vmem:[#allocation2 + $0x40] sm:$0xff] %vm1094, %v1063
      %1104 = vst.msk [vmem:[#allocation2 + $0x48] sm:$0xff] %vm1094, %v1065
      %1105 = vst.msk [vmem:[#allocation2 + $0x50] sm:$0xff] %vm1094, %v1067
      %1106 = vst.msk [vmem:[#allocation2 + $0x58] sm:$0xff] %vm1094, %v1069
      %1107 = vst.msk [vmem:[#allocation2 + $0x60] sm:$0xff] %vm1094, %v1071
      %1108 = vst.msk [vmem:[#allocation2 + $0x68] sm:$0xff] %vm1094, %v1073
      %1109 = vst.msk [vmem:[#allocation2 + $0x70] sm:$0xff] %vm1094, %v1075
      %1110 = vst.msk [vmem:[#allocation2 + $0x78] sm:$0xff] %vm1094, %v1077
      %v1111 = vld [vmem:[%s1013 + $0x3] sm:$0xff]
      %v1112 = vld [vmem:[%s1013 + $0xb] sm:$0xff]
      %v1113 = vld [vmem:[%s1013 + $0x1b] sm:$0xff]
      %v1114 = vld [vmem:[%s1013 + $0x23] sm:$0xff]
      %v1115 = vld [vmem:[%s1013 + $0x33] sm:$0xff]
      %v1116 = vld [vmem:[%s1013 + $0x3b] sm:$0xff]
      %v1117 = vld [vmem:[%s1013 + $0x4b] sm:$0xff]
      %v1118 = vld [vmem:[%s1013 + $0x53] sm:$0xff]
      %v1119 = vld [vmem:[%s1013 + $0x63] sm:$0xff]
      %v1120 = vld [vmem:[%s1013 + $0x6b] sm:$0xff]
      %v1121 = vld [vmem:[%s1013 + $0x7b] sm:$0xff]
      %v1122 = vld [vmem:[%s1013 + $0x83] sm:$0xff]
      %v1123 = vld [vmem:[%s1013 + $0x93] sm:$0xff]
      %v1124 = vld [vmem:[%s1013 + $0x9b] sm:$0xff]
      %v1125 = vld [vmem:[%s1013 + $0xab] sm:$0xff]
      %v1126 = vld [vmem:[%s1013 + $0xb3] sm:$0xff]
      %1143 = vrot.lane.b32.xlu0 %v1111, 40
      %v1144 = vpop.permute.xlu0 %1143
      %1145 = vrot.lane.b32.xlu0 %v1112, 40
      %v1146 = vpop.permute.xlu0 %1145
      %1147 = vrot.lane.b32.xlu0 %v1113, 40
      %v1148 = vpop.permute.xlu0 %1147
      %1149 = vrot.lane.b32.xlu0 %v1114, 40
      %v1150 = vpop.permute.xlu0 %1149
      %1151 = vrot.lane.b32.xlu0 %v1115, 40
      %v1152 = vpop.permute.xlu0 %1151
      %1153 = vrot.lane.b32.xlu0 %v1116, 40
      %v1154 = vpop.permute.xlu0 %1153
      %1155 = vrot.lane.b32.xlu0 %v1117, 40
      %v1156 = vpop.permute.xlu0 %1155
      %1157 = vrot.lane.b32.xlu0 %v1118, 40
      %v1158 = vpop.permute.xlu0 %1157
      %1159 = vrot.lane.b32.xlu0 %v1119, 40
      %v1160 = vpop.permute.xlu0 %1159
      %1161 = vrot.lane.b32.xlu0 %v1120, 40
      %v1162 = vpop.permute.xlu0 %1161
      %1163 = vrot.lane.b32.xlu0 %v1121, 40
      %v1164 = vpop.permute.xlu0 %1163
      %1165 = vrot.lane.b32.xlu0 %v1122, 40
      %v1166 = vpop.permute.xlu0 %1165
      %1167 = vrot.lane.b32.xlu0 %v1123, 40
      %v1168 = vpop.permute.xlu0 %1167
      %1169 = vrot.lane.b32.xlu0 %v1124, 40
      %v1170 = vpop.permute.xlu0 %1169
      %1171 = vrot.lane.b32.xlu0 %v1125, 40
      %v1172 = vpop.permute.xlu0 %1171
      %1173 = vrot.lane.b32.xlu0 %v1126, 40
      %v1174 = vpop.permute.xlu0 %1173
      %vm1191 = vcmask 359744
      %1192 = vst.msk [vmem:[#allocation2] sm:$0xff] %vm1191, %v1144
      %1193 = vst.msk [vmem:[#allocation2 + $0x8] sm:$0xff] %vm1191, %v1146
      %1194 = vst.msk [vmem:[#allocation2 + $0x10] sm:$0xff] %vm1191, %v1148
      %1195 = vst.msk [vmem:[#allocation2 + $0x18] sm:$0xff] %vm1191, %v1150
      %1196 = vst.msk [vmem:[#allocation2 + $0x20] sm:$0xff] %vm1191, %v1152
      %1197 = vst.msk [vmem:[#allocation2 + $0x28] sm:$0xff] %vm1191, %v1154
      %1198 = vst.msk [vmem:[#allocation2 + $0x30] sm:$0xff] %vm1191, %v1156
      %1199 = vst.msk [vmem:[#allocation2 + $0x38] sm:$0xff] %vm1191, %v1158
      %1200 = vst.msk [vmem:[#allocation2 + $0x40] sm:$0xff] %vm1191, %v1160
      %1201 = vst.msk [vmem:[#allocation2 + $0x48] sm:$0xff] %vm1191, %v1162
      %1202 = vst.msk [vmem:[#allocation2 + $0x50] sm:$0xff] %vm1191, %v1164
      %1203 = vst.msk [vmem:[#allocation2 + $0x58] sm:$0xff] %vm1191, %v1166
      %1204 = vst.msk [vmem:[#allocation2 + $0x60] sm:$0xff] %vm1191, %v1168
      %1205 = vst.msk [vmem:[#allocation2 + $0x68] sm:$0xff] %vm1191, %v1170
      %1206 = vst.msk [vmem:[#allocation2 + $0x70] sm:$0xff] %vm1191, %v1172
      %1207 = vst.msk [vmem:[#allocation2 + $0x78] sm:$0xff] %vm1191, %v1174
      %v1208 = vld [vmem:[%s1013 + $0x5] sm:$0xff]
      %v1209 = vld [vmem:[%s1013 + $0xd] sm:$0xff]
      %v1210 = vld [vmem:[%s1013 + $0x1d] sm:$0xff]
      %v1211 = vld [vmem:[%s1013 + $0x25] sm:$0xff]
      %v1212 = vld [vmem:[%s1013 + $0x35] sm:$0xff]
      %v1213 = vld [vmem:[%s1013 + $0x3d] sm:$0xff]
      %v1214 = vld [vmem:[%s1013 + $0x4d] sm:$0xff]
      %v1215 = vld [vmem:[%s1013 + $0x55] sm:$0xff]
      %v1216 = vld [vmem:[%s1013 + $0x65] sm:$0xff]
      %v1217 = vld [vmem:[%s1013 + $0x6d] sm:$0xff]
      %v1218 = vld [vmem:[%s1013 + $0x7d] sm:$0xff]
      %v1219 = vld [vmem:[%s1013 + $0x85] sm:$0xff]
      %v1220 = vld [vmem:[%s1013 + $0x95] sm:$0xff]
      %v1221 = vld [vmem:[%s1013 + $0x9d] sm:$0xff]
      %v1222 = vld [vmem:[%s1013 + $0xad] sm:$0xff]
      %v1223 = vld [vmem:[%s1013 + $0xb5] sm:$0xff]
      %1240 = vrot.lane.b32.xlu0 %v1208, 44
      %v1241 = vpop.permute.xlu0 %1240
      %1242 = vrot.lane.b32.xlu0 %v1209, 44
      %v1243 = vpop.permute.xlu0 %1242
      %1244 = vrot.lane.b32.xlu0 %v1210, 44
      %v1245 = vpop.permute.xlu0 %1244
      %1246 = vrot.lane.b32.xlu0 %v1211, 44
      %v1247 = vpop.permute.xlu0 %1246
      %1248 = vrot.lane.b32.xlu0 %v1212, 44
      %v1249 = vpop.permute.xlu0 %1248
      %1250 = vrot.lane.b32.xlu0 %v1213, 44
      %v1251 = vpop.permute.xlu0 %1250
      %1252 = vrot.lane.b32.xlu0 %v1214, 44
      %v1253 = vpop.permute.xlu0 %1252
      %1254 = vrot.lane.b32.xlu0 %v1215, 44
      %v1255 = vpop.permute.xlu0 %1254
      %1256 = vrot.lane.b32.xlu0 %v1216, 44
      %v1257 = vpop.permute.xlu0 %1256
      %1258 = vrot.lane.b32.xlu0 %v1217, 44
      %v1259 = vpop.permute.xlu0 %1258
      %1260 = vrot.lane.b32.xlu0 %v1218, 44
      %v1261 = vpop.permute.xlu0 %1260
      %1262 = vrot.lane.b32.xlu0 %v1219, 44
      %v1263 = vpop.permute.xlu0 %1262
      %1264 = vrot.lane.b32.xlu0 %v1220, 44
      %v1265 = vpop.permute.xlu0 %1264
      %1266 = vrot.lane.b32.xlu0 %v1221, 44
      %v1267 = vpop.permute.xlu0 %1266
      %1268 = vrot.lane.b32.xlu0 %v1222, 44
      %v1269 = vpop.permute.xlu0 %1268
      %1270 = vrot.lane.b32.xlu0 %v1223, 44
      %v1271 = vpop.permute.xlu0 %1270
      %vm1288 = vcmask 392544
      %1289 = vst.msk [vmem:[#allocation2] sm:$0xff] %vm1288, %v1241
      %1290 = vst.msk [vmem:[#allocation2 + $0x8] sm:$0xff] %vm1288, %v1243
      %1291 = vst.msk [vmem:[#allocation2 + $0x10] sm:$0xff] %vm1288, %v1245
      %1292 = vst.msk [vmem:[#allocation2 + $0x18] sm:$0xff] %vm1288, %v1247
      %1293 = vst.msk [vmem:[#allocation2 + $0x20] sm:$0xff] %vm1288, %v1249
      %1294 = vst.msk [vmem:[#allocation2 + $0x28] sm:$0xff] %vm1288, %v1251
      %1295 = vst.msk [vmem:[#allocation2 + $0x30] sm:$0xff] %vm1288, %v1253
      %1296 = vst.msk [vmem:[#allocation2 + $0x38] sm:$0xff] %vm1288, %v1255
      %1297 = vst.msk [vmem:[#allocation2 + $0x40] sm:$0xff] %vm1288, %v1257
      %1298 = vst.msk [vmem:[#allocation2 + $0x48] sm:$0xff] %vm1288, %v1259
      %1299 = vst.msk [vmem:[#allocation2 + $0x50] sm:$0xff] %vm1288, %v1261
      %1300 = vst.msk [vmem:[#allocation2 + $0x58] sm:$0xff] %vm1288, %v1263
      %1301 = vst.msk [vmem:[#allocation2 + $0x60] sm:$0xff] %vm1288, %v1265
      %1302 = vst.msk [vmem:[#allocation2 + $0x68] sm:$0xff] %vm1288, %v1267
      %1303 = vst.msk [vmem:[#allocation2 + $0x70] sm:$0xff] %vm1288, %v1269
      %1304 = vst.msk [vmem:[#allocation2 + $0x78] sm:$0xff] %vm1288, %v1271
      %v1305 = vld [vmem:[%s425 + $0x1] sm:$0xff]
      %v1306 = vld [vmem:[%s425 + $0x9] sm:$0xff]
      %v1307 = vld [vmem:[%s425 + $0x19] sm:$0xff]
      %v1308 = vld [vmem:[%s425 + $0x21] sm:$0xff]
      %v1309 = vld [vmem:[%s425 + $0x31] sm:$0xff]
      %v1310 = vld [vmem:[%s425 + $0x39] sm:$0xff]
      %v1311 = vld [vmem:[%s425 + $0x49] sm:$0xff]
      %v1312 = vld [vmem:[%s425 + $0x51] sm:$0xff]
      %v1313 = vld [vmem:[%s425 + $0x61] sm:$0xff]
      %v1314 = vld [vmem:[%s425 + $0x69] sm:$0xff]
      %v1315 = vld [vmem:[%s425 + $0x79] sm:$0xff]
      %v1316 = vld [vmem:[%s425 + $0x81] sm:$0xff]
      %v1317 = vld [vmem:[%s425 + $0x91] sm:$0xff]
      %v1318 = vld [vmem:[%s425 + $0x99] sm:$0xff]
      %v1319 = vld [vmem:[%s425 + $0xa9] sm:$0xff]
      %v1320 = vld [vmem:[%s425 + $0xb1] sm:$0xff]
      %1337 = vrot.lane.b32.xlu0 %v1305, 48
      %v1338 = vpop.permute.xlu0 %1337
      %1339 = vrot.lane.b32.xlu0 %v1306, 48
      %v1340 = vpop.permute.xlu0 %1339
      %1341 = vrot.lane.b32.xlu0 %v1307, 48
      %v1342 = vpop.permute.xlu0 %1341
      %1343 = vrot.lane.b32.xlu0 %v1308, 48
      %v1344 = vpop.permute.xlu0 %1343
      %1345 = vrot.lane.b32.xlu0 %v1309, 48
      %v1346 = vpop.permute.xlu0 %1345
      %1347 = vrot.lane.b32.xlu0 %v1310, 48
      %v1348 = vpop.permute.xlu0 %1347
      %1349 = vrot.lane.b32.xlu0 %v1311, 48
      %v1350 = vpop.permute.xlu0 %1349
      %1351 = vrot.lane.b32.xlu0 %v1312, 48
      %v1352 = vpop.permute.xlu0 %1351
      %1353 = vrot.lane.b32.xlu0 %v1313, 48
      %v1354 = vpop.permute.xlu0 %1353
      %1355 = vrot.lane.b32.xlu0 %v1314, 48
      %v1356 = vpop.permute.xlu0 %1355
      %1357 = vrot.lane.b32.xlu0 %v1315, 48
      %v1358 = vpop.permute.xlu0 %1357
      %1359 = vrot.lane.b32.xlu0 %v1316, 48
      %v1360 = vpop.permute.xlu0 %1359
      %1361 = vrot.lane.b32.xlu0 %v1317, 48
      %v1362 = vpop.permute.xlu0 %1361
      %1363 = vrot.lane.b32.xlu0 %v1318, 48
      %v1364 = vpop.permute.xlu0 %1363
      %1365 = vrot.lane.b32.xlu0 %v1319, 48
      %v1366 = vpop.permute.xlu0 %1365
      %1367 = vrot.lane.b32.xlu0 %v1320, 48
      %v1368 = vpop.permute.xlu0 %1367
      %vm1385 = vcmask 425344
      %1386 = vst.msk [vmem:[#allocation2] sm:$0xff] %vm1385, %v1338
      %1387 = vst.msk [vmem:[#allocation2 + $0x8] sm:$0xff] %vm1385, %v1340
      %1388 = vst.msk [vmem:[#allocation2 + $0x10] sm:$0xff] %vm1385, %v1342
      %1389 = vst.msk [vmem:[#allocation2 + $0x18] sm:$0xff] %vm1385, %v1344
      %1390 = vst.msk [vmem:[#allocation2 + $0x20] sm:$0xff] %vm1385, %v1346
      %1391 = vst.msk [vmem:[#allocation2 + $0x28] sm:$0xff] %vm1385, %v1348
      %1392 = vst.msk [vmem:[#allocation2 + $0x30] sm:$0xff] %vm1385, %v1350
      %1393 = vst.msk [vmem:[#allocation2 + $0x38] sm:$0xff] %vm1385, %v1352
      %1394 = vst.msk [vmem:[#allocation2 + $0x40] sm:$0xff] %vm1385, %v1354
      %1395 = vst.msk [vmem:[#allocation2 + $0x48] sm:$0xff] %vm1385, %v1356
      %1396 = vst.msk [vmem:[#allocation2 + $0x50] sm:$0xff] %vm1385, %v1358
      %1397 = vst.msk [vmem:[#allocation2 + $0x58] sm:$0xff] %vm1385, %v1360
      %1398 = vst.msk [vmem:[#allocation2 + $0x60] sm:$0xff] %vm1385, %v1362
      %1399 = vst.msk [vmem:[#allocation2 + $0x68] sm:$0xff] %vm1385, %v1364
      %1400 = vst.msk [vmem:[#allocation2 + $0x70] sm:$0xff] %vm1385, %v1366
      %1401 = vst.msk [vmem:[#allocation2 + $0x78] sm:$0xff] %vm1385, %v1368
      %v1402 = vld [vmem:[%s425 + $0x3] sm:$0xff]
      %v1403 = vld [vmem:[%s425 + $0xb] sm:$0xff]
      %v1404 = vld [vmem:[%s425 + $0x1b] sm:$0xff]
      %v1405 = vld [vmem:[%s425 + $0x23] sm:$0xff]
      %v1406 = vld [vmem:[%s425 + $0x33] sm:$0xff]
      %v1407 = vld [vmem:[%s425 + $0x3b] sm:$0xff]
      %v1408 = vld [vmem:[%s425 + $0x4b] sm:$0xff]
      %v1409 = vld [vmem:[%s425 + $0x53] sm:$0xff]
      %v1410 = vld [vmem:[%s425 + $0x63] sm:$0xff]
      %v1411 = vld [vmem:[%s425 + $0x6b] sm:$0xff]
      %v1412 = vld [vmem:[%s425 + $0x7b] sm:$0xff]
      %v1413 = vld [vmem:[%s425 + $0x83] sm:$0xff]
      %v1414 = vld [vmem:[%s425 + $0x93] sm:$0xff]
      %v1415 = vld [vmem:[%s425 + $0x9b] sm:$0xff]
      %v1416 = vld [vmem:[%s425 + $0xab] sm:$0xff]
      %v1417 = vld [vmem:[%s425 + $0xb3] sm:$0xff]
      %1434 = vrot.lane.b32.xlu0 %v1402, 52
      %v1435 = vpop.permute.xlu0 %1434
      %1436 = vrot.lane.b32.xlu0 %v1403, 52
      %v1437 = vpop.permute.xlu0 %1436
      %1438 = vrot.lane.b32.xlu0 %v1404, 52
      %v1439 = vpop.permute.xlu0 %1438
      %1440 = vrot.lane.b32.xlu0 %v1405, 52
      %v1441 = vpop.permute.xlu0 %1440
      %1442 = vrot.lane.b32.xlu0 %v1406, 52
      %v1443 = vpop.permute.xlu0 %1442
      %1444 = vrot.lane.b32.xlu0 %v1407, 52
      %v1445 = vpop.permute.xlu0 %1444
      %1446 = vrot.lane.b32.xlu0 %v1408, 52
      %v1447 = vpop.permute.xlu0 %1446
      %1448 = vrot.lane.b32.xlu0 %v1409, 52
      %v1449 = vpop.permute.xlu0 %1448
      %1450 = vrot.lane.b32.xlu0 %v1410, 52
      %v1451 = vpop.permute.xlu0 %1450
      %1452 = vrot.lane.b32.xlu0 %v1411, 52
      %v1453 = vpop.permute.xlu0 %1452
      %1454 = vrot.lane.b32.xlu0 %v1412, 52
      %v1455 = vpop.permute.xlu0 %1454
      %1456 = vrot.lane.b32.xlu0 %v1413, 52
      %v1457 = vpop.permute.xlu0 %1456
      %1458 = vrot.lane.b32.xlu0 %v1414, 52
      %v1459 = vpop.permute.xlu0 %1458
      %1460 = vrot.lane.b32.xlu0 %v1415, 52
      %v1461 = vpop.permute.xlu0 %1460
      %1462 = vrot.lane.b32.xlu0 %v1416, 52
      %v1463 = vpop.permute.xlu0 %1462
      %1464 = vrot.lane.b32.xlu0 %v1417, 52
      %v1465 = vpop.permute.xlu0 %1464
      %vm1482 = vcmask 458144
      %1483 = vst.msk [vmem:[#allocation2] sm:$0xff] %vm1482, %v1435
      %1484 = vst.msk [vmem:[#allocation2 + $0x8] sm:$0xff] %vm1482, %v1437
      %1485 = vst.msk [vmem:[#allocation2 + $0x10] sm:$0xff] %vm1482, %v1439
      %1486 = vst.msk [vmem:[#allocation2 + $0x18] sm:$0xff] %vm1482, %v1441
      %1487 = vst.msk [vmem:[#allocation2 + $0x20] sm:$0xff] %vm1482, %v1443
      %1488 = vst.msk [vmem:[#allocation2 + $0x28] sm:$0xff] %vm1482, %v1445
      %1489 = vst.msk [vmem:[#allocation2 + $0x30] sm:$0xff] %vm1482, %v1447
      %1490 = vst.msk [vmem:[#allocation2 + $0x38] sm:$0xff] %vm1482, %v1449
      %1491 = vst.msk [vmem:[#allocation2 + $0x40] sm:$0xff] %vm1482, %v1451
      %1492 = vst.msk [vmem:[#allocation2 + $0x48] sm:$0xff] %vm1482, %v1453
      %1493 = vst.msk [vmem:[#allocation2 + $0x50] sm:$0xff] %vm1482, %v1455
      %1494 = vst.msk [vmem:[#allocation2 + $0x58] sm:$0xff] %vm1482, %v1457
      %1495 = vst.msk [vmem:[#allocation2 + $0x60] sm:$0xff] %vm1482, %v1459
      %1496 = vst.msk [vmem:[#allocation2 + $0x68] sm:$0xff] %vm1482, %v1461
      %1497 = vst.msk [vmem:[#allocation2 + $0x70] sm:$0xff] %vm1482, %v1463
      %1498 = vst.msk [vmem:[#allocation2 + $0x78] sm:$0xff] %vm1482, %v1465
      %v1499 = vld [vmem:[%s425 + $0x5] sm:$0xff]
      %v1500 = vld [vmem:[%s425 + $0xd] sm:$0xff]
      %v1501 = vld [vmem:[%s425 + $0x1d] sm:$0xff]
      %v1502 = vld [vmem:[%s425 + $0x25] sm:$0xff]
      %v1503 = vld [vmem:[%s425 + $0x35] sm:$0xff]
      %v1504 = vld [vmem:[%s425 + $0x3d] sm:$0xff]
      %v1505 = vld [vmem:[%s425 + $0x4d] sm:$0xff]
      %v1506 = vld [vmem:[%s425 + $0x55] sm:$0xff]
      %v1507 = vld [vmem:[%s425 + $0x65] sm:$0xff]
      %v1508 = vld [vmem:[%s425 + $0x6d] sm:$0xff]
      %v1509 = vld [vmem:[%s425 + $0x7d] sm:$0xff]
      %v1510 = vld [vmem:[%s425 + $0x85] sm:$0xff]
      %v1511 = vld [vmem:[%s425 + $0x95] sm:$0xff]
      %v1512 = vld [vmem:[%s425 + $0x9d] sm:$0xff]
      %v1513 = vld [vmem:[%s425 + $0xad] sm:$0xff]
      %v1514 = vld [vmem:[%s425 + $0xb5] sm:$0xff]
      %1531 = vrot.lane.b32.xlu0 %v1499, 56
      %v1532 = vpop.permute.xlu0 %1531
      %1533 = vrot.lane.b32.xlu0 %v1500, 56
      %v1534 = vpop.permute.xlu0 %1533
      %1535 = vrot.lane.b32.xlu0 %v1501, 56
      %v1536 = vpop.permute.xlu0 %1535
      %1537 = vrot.lane.b32.xlu0 %v1502, 56
      %v1538 = vpop.permute.xlu0 %1537
      %1539 = vrot.lane.b32.xlu0 %v1503, 56
      %v1540 = vpop.permute.xlu0 %1539
      %1541 = vrot.lane.b32.xlu0 %v1504, 56
      %v1542 = vpop.permute.xlu0 %1541
      %1543 = vrot.lane.b32.xlu0 %v1505, 56
      %v1544 = vpop.permute.xlu0 %1543
      %1545 = vrot.lane.b32.xlu0 %v1506, 56
      %v1546 = vpop.permute.xlu0 %1545
      %1547 = vrot.lane.b32.xlu0 %v1507, 56
      %v1548 = vpop.permute.xlu0 %1547
      %1549 = vrot.lane.b32.xlu0 %v1508, 56
      %v1550 = vpop.permute.xlu0 %1549
      %1551 = vrot.lane.b32.xlu0 %v1509, 56
      %v1552 = vpop.permute.xlu0 %1551
      %1553 = vrot.lane.b32.xlu0 %v1510, 56
      %v1554 = vpop.permute.xlu0 %1553
      %1555 = vrot.lane.b32.xlu0 %v1511, 56
      %v1556 = vpop.permute.xlu0 %1555
      %1557 = vrot.lane.b32.xlu0 %v1512, 56
      %v1558 = vpop.permute.xlu0 %1557
      %1559 = vrot.lane.b32.xlu0 %v1513, 56
      %v1560 = vpop.permute.xlu0 %1559
      %1561 = vrot.lane.b32.xlu0 %v1514, 56
      %v1562 = vpop.permute.xlu0 %1561
      %vm1579 = vcmask 490944
      %1580 = vst.msk [vmem:[#allocation2] sm:$0xff] %vm1579, %v1532
      %1581 = vst.msk [vmem:[#allocation2 + $0x8] sm:$0xff] %vm1579, %v1534
      %1582 = vst.msk [vmem:[#allocation2 + $0x10] sm:$0xff] %vm1579, %v1536
      %1583 = vst.msk [vmem:[#allocation2 + $0x18] sm:$0xff] %vm1579, %v1538
      %1584 = vst.msk [vmem:[#allocation2 + $0x20] sm:$0xff] %vm1579, %v1540
      %1585 = vst.msk [vmem:[#allocation2 + $0x28] sm:$0xff] %vm1579, %v1542
      %1586 = vst.msk [vmem:[#allocation2 + $0x30] sm:$0xff] %vm1579, %v1544
      %1587 = vst.msk [vmem:[#allocation2 + $0x38] sm:$0xff] %vm1579, %v1546
      %1588 = vst.msk [vmem:[#allocation2 + $0x40] sm:$0xff] %vm1579, %v1548
      %1589 = vst.msk [vmem:[#allocation2 + $0x48] sm:$0xff] %vm1579, %v1550
      %1590 = vst.msk [vmem:[#allocation2 + $0x50] sm:$0xff] %vm1579, %v1552
      %1591 = vst.msk [vmem:[#allocation2 + $0x58] sm:$0xff] %vm1579, %v1554
      %1592 = vst.msk [vmem:[#allocation2 + $0x60] sm:$0xff] %vm1579, %v1556
      %1593 = vst.msk [vmem:[#allocation2 + $0x68] sm:$0xff] %vm1579, %v1558
      %1594 = vst.msk [vmem:[#allocation2 + $0x70] sm:$0xff] %vm1579, %v1560
      %1595 = vst.msk [vmem:[#allocation2 + $0x78] sm:$0xff] %vm1579, %v1562
      %s1596 = sadd.s32 %s192, 5
      %s1597 = smul.u32 %s1596, 24
      %s1598 = scalar_lea.vmem %s182, %s1597
      %v1599 = vld [vmem:[%s1598 + $0x1] sm:$0xff]
      %v1600 = vld [vmem:[%s1598 + $0x9] sm:$0xff]
      %v1601 = vld [vmem:[%s1598 + $0x19] sm:$0xff]
      %v1602 = vld [vmem:[%s1598 + $0x21] sm:$0xff]
      %v1603 = vld [vmem:[%s1598 + $0x31] sm:$0xff]
      %v1604 = vld [vmem:[%s1598 + $0x39] sm:$0xff]
      %v1605 = vld [vmem:[%s1598 + $0x49] sm:$0xff]
      %v1606 = vld [vmem:[%s1598 + $0x51] sm:$0xff]
      %v1607 = vld [vmem:[%s1598 + $0x61] sm:$0xff]
      %v1608 = vld [vmem:[%s1598 + $0x69] sm:$0xff]
      %v1609 = vld [vmem:[%s1598 + $0x79] sm:$0xff]
      %v1610 = vld [vmem:[%s1598 + $0x81] sm:$0xff]
      %v1611 = vld [vmem:[%s1598 + $0x91] sm:$0xff]
      %v1612 = vld [vmem:[%s1598 + $0x99] sm:$0xff]
      %v1613 = vld [vmem:[%s1598 + $0xa9] sm:$0xff]
      %v1614 = vld [vmem:[%s1598 + $0xb1] sm:$0xff]
      %1631 = vrot.lane.b32.xlu0 %v1599, 60
      %v1632 = vpop.permute.xlu0 %1631
      %1633 = vrot.lane.b32.xlu0 %v1600, 60
      %v1634 = vpop.permute.xlu0 %1633
      %1635 = vrot.lane.b32.xlu0 %v1601, 60
      %v1636 = vpop.permute.xlu0 %1635
      %1637 = vrot.lane.b32.xlu0 %v1602, 60
      %v1638 = vpop.permute.xlu0 %1637
      %1639 = vrot.lane.b32.xlu0 %v1603, 60
      %v1640 = vpop.permute.xlu0 %1639
      %1641 = vrot.lane.b32.xlu0 %v1604, 60
      %v1642 = vpop.permute.xlu0 %1641
      %1643 = vrot.lane.b32.xlu0 %v1605, 60
      %v1644 = vpop.permute.xlu0 %1643
      %1645 = vrot.lane.b32.xlu0 %v1606, 60
      %v1646 = vpop.permute.xlu0 %1645
      %1647 = vrot.lane.b32.xlu0 %v1607, 60
      %v1648 = vpop.permute.xlu0 %1647
      %1649 = vrot.lane.b32.xlu0 %v1608, 60
      %v1650 = vpop.permute.xlu0 %1649
      %1651 = vrot.lane.b32.xlu0 %v1609, 60
      %v1652 = vpop.permute.xlu0 %1651
      %1653 = vrot.lane.b32.xlu0 %v1610, 60
      %v1654 = vpop.permute.xlu0 %1653
      %1655 = vrot.lane.b32.xlu0 %v1611, 60
      %v1656 = vpop.permute.xlu0 %1655
      %1657 = vrot.lane.b32.xlu0 %v1612, 60
      %v1658 = vpop.permute.xlu0 %1657
      %1659 = vrot.lane.b32.xlu0 %v1613, 60
      %v1660 = vpop.permute.xlu0 %1659
      %1661 = vrot.lane.b32.xlu0 %v1614, 60
      %v1662 = vpop.permute.xlu0 %1661
      %vm1679 = vcmask 523744
      %1680 = vst.msk [vmem:[#allocation2] sm:$0xff] %vm1679, %v1632
      %1681 = vst.msk [vmem:[#allocation2 + $0x8] sm:$0xff] %vm1679, %v1634
      %1682 = vst.msk [vmem:[#allocation2 + $0x10] sm:$0xff] %vm1679, %v1636
      %1683 = vst.msk [vmem:[#allocation2 + $0x18] sm:$0xff] %vm1679, %v1638
      %1684 = vst.msk [vmem:[#allocation2 + $0x20] sm:$0xff] %vm1679, %v1640
      %1685 = vst.msk [vmem:[#allocation2 + $0x28] sm:$0xff] %vm1679, %v1642
      %1686 = vst.msk [vmem:[#allocation2 + $0x30] sm:$0xff] %vm1679, %v1644
      %1687 = vst.msk [vmem:[#allocation2 + $0x38] sm:$0xff] %vm1679, %v1646
      %1688 = vst.msk [vmem:[#allocation2 + $0x40] sm:$0xff] %vm1679, %v1648
      %1689 = vst.msk [vmem:[#allocation2 + $0x48] sm:$0xff] %vm1679, %v1650
      %1690 = vst.msk [vmem:[#allocation2 + $0x50] sm:$0xff] %vm1679, %v1652
      %1691 = vst.msk [vmem:[#allocation2 + $0x58] sm:$0xff] %vm1679, %v1654
      %1692 = vst.msk [vmem:[#allocation2 + $0x60] sm:$0xff] %vm1679, %v1656
      %1693 = vst.msk [vmem:[#allocation2 + $0x68] sm:$0xff] %vm1679, %v1658
      %1694 = vst.msk [vmem:[#allocation2 + $0x70] sm:$0xff] %vm1679, %v1660
      %1695 = vst.msk [vmem:[#allocation2 + $0x78] sm:$0xff] %vm1679, %v1662
      %v1696 = vld [vmem:[%s1598 + $0x3] sm:$0xff]
      %v1697 = vld [vmem:[%s1598 + $0xb] sm:$0xff]
      %v1698 = vld [vmem:[%s1598 + $0x1b] sm:$0xff]
      %v1699 = vld [vmem:[%s1598 + $0x23] sm:$0xff]
      %v1700 = vld [vmem:[%s1598 + $0x33] sm:$0xff]
      %v1701 = vld [vmem:[%s1598 + $0x3b] sm:$0xff]
      %v1702 = vld [vmem:[%s1598 + $0x4b] sm:$0xff]
      %v1703 = vld [vmem:[%s1598 + $0x53] sm:$0xff]
      %v1704 = vld [vmem:[%s1598 + $0x63] sm:$0xff]
      %v1705 = vld [vmem:[%s1598 + $0x6b] sm:$0xff]
      %v1706 = vld [vmem:[%s1598 + $0x7b] sm:$0xff]
      %v1707 = vld [vmem:[%s1598 + $0x83] sm:$0xff]
      %v1708 = vld [vmem:[%s1598 + $0x93] sm:$0xff]
      %v1709 = vld [vmem:[%s1598 + $0x9b] sm:$0xff]
      %v1710 = vld [vmem:[%s1598 + $0xab] sm:$0xff]
      %v1711 = vld [vmem:[%s1598 + $0xb3] sm:$0xff]
      %1728 = vrot.lane.b32.xlu0 %v1696, 64
      %v1729 = vpop.permute.xlu0 %1728
      %1730 = vrot.lane.b32.xlu0 %v1697, 64
      %v1731 = vpop.permute.xlu0 %1730
      %1732 = vrot.lane.b32.xlu0 %v1698, 64
      %v1733 = vpop.permute.xlu0 %1732
      %1734 = vrot.lane.b32.xlu0 %v1699, 64
      %v1735 = vpop.permute.xlu0 %1734
      %1736 = vrot.lane.b32.xlu0 %v1700, 64
      %v1737 = vpop.permute.xlu0 %1736
      %1738 = vrot.lane.b32.xlu0 %v1701, 64
      %v1739 = vpop.permute.xlu0 %1738
      %1740 = vrot.lane.b32.xlu0 %v1702, 64
      %v1741 = vpop.permute.xlu0 %1740
      %1742 = vrot.lane.b32.xlu0 %v1703, 64
      %v1743 = vpop.permute.xlu0 %1742
      %1744 = vrot.lane.b32.xlu0 %v1704, 64
      %v1745 = vpop.permute.xlu0 %1744
      %1746 = vrot.lane.b32.xlu0 %v1705, 64
      %v1747 = vpop.permute.xlu0 %1746
      %1748 = vrot.lane.b32.xlu0 %v1706, 64
      %v1749 = vpop.permute.xlu0 %1748
      %1750 = vrot.lane.b32.xlu0 %v1707, 64
      %v1751 = vpop.permute.xlu0 %1750
      %1752 = vrot.lane.b32.xlu0 %v1708, 64
      %v1753 = vpop.permute.xlu0 %1752
      %1754 = vrot.lane.b32.xlu0 %v1709, 64
      %v1755 = vpop.permute.xlu0 %1754
      %1756 = vrot.lane.b32.xlu0 %v1710, 64
      %v1757 = vpop.permute.xlu0 %1756
      %1758 = vrot.lane.b32.xlu0 %v1711, 64
      %v1759 = vpop.permute.xlu0 %1758
      %vm1776 = vcmask 556544
      %1777 = vst.msk [vmem:[#allocation2] sm:$0xff] %vm1776, %v1729
      %1778 = vst.msk [vmem:[#allocation2 + $0x8] sm:$0xff] %vm1776, %v1731
      %1779 = vst.msk [vmem:[#allocation2 + $0x10] sm:$0xff] %vm1776, %v1733
      %1780 = vst.msk [vmem:[#allocation2 + $0x18] sm:$0xff] %vm1776, %v1735
      %1781 = vst.msk [vmem:[#allocation2 + $0x20] sm:$0xff] %vm1776, %v1737
      %1782 = vst.msk [vmem:[#allocation2 + $0x28] sm:$0xff] %vm1776, %v1739
      %1783 = vst.msk [vmem:[#allocation2 + $0x30] sm:$0xff] %vm1776, %v1741
      %1784 = vst.msk [vmem:[#allocation2 + $0x38] sm:$0xff] %vm1776, %v1743
      %1785 = vst.msk [vmem:[#allocation2 + $0x40] sm:$0xff] %vm1776, %v1745
      %1786 = vst.msk [vmem:[#allocation2 + $0x48] sm:$0xff] %vm1776, %v1747
      %1787 = vst.msk [vmem:[#allocation2 + $0x50] sm:$0xff] %vm1776, %v1749
      %1788 = vst.msk [vmem:[#allocation2 + $0x58] sm:$0xff] %vm1776, %v1751
      %1789 = vst.msk [vmem:[#allocation2 + $0x60] sm:$0xff] %vm1776, %v1753
      %1790 = vst.msk [vmem:[#allocation2 + $0x68] sm:$0xff] %vm1776, %v1755
      %1791 = vst.msk [vmem:[#allocation2 + $0x70] sm:$0xff] %vm1776, %v1757
      %1792 = vst.msk [vmem:[#allocation2 + $0x78] sm:$0xff] %vm1776, %v1759
      %v1793 = vld [vmem:[%s1598 + $0x5] sm:$0xff]
      %v1794 = vld [vmem:[%s1598 + $0xd] sm:$0xff]
      %v1795 = vld [vmem:[%s1598 + $0x1d] sm:$0xff]
      %v1796 = vld [vmem:[%s1598 + $0x25] sm:$0xff]
      %v1797 = vld [vmem:[%s1598 + $0x35] sm:$0xff]
      %v1798 = vld [vmem:[%s1598 + $0x3d] sm:$0xff]
      %v1799 = vld [vmem:[%s1598 + $0x4d] sm:$0xff]
      %v1800 = vld [vmem:[%s1598 + $0x55] sm:$0xff]
      %v1801 = vld [vmem:[%s1598 + $0x65] sm:$0xff]
      %v1802 = vld [vmem:[%s1598 + $0x6d] sm:$0xff]
      %v1803 = vld [vmem:[%s1598 + $0x7d] sm:$0xff]
      %v1804 = vld [vmem:[%s1598 + $0x85] sm:$0xff]
      %v1805 = vld [vmem:[%s1598 + $0x95] sm:$0xff]
      %v1806 = vld [vmem:[%s1598 + $0x9d] sm:$0xff]
      %v1807 = vld [vmem:[%s1598 + $0xad] sm:$0xff]
      %v1808 = vld [vmem:[%s1598 + $0xb5] sm:$0xff]
      %1825 = vrot.lane.b32.xlu0 %v1793, 68
      %v1826 = vpop.permute.xlu0 %1825
      %1827 = vrot.lane.b32.xlu0 %v1794, 68
      %v1828 = vpop.permute.xlu0 %1827
      %1829 = vrot.lane.b32.xlu0 %v1795, 68
      %v1830 = vpop.permute.xlu0 %1829
      %1831 = vrot.lane.b32.xlu0 %v1796, 68
      %v1832 = vpop.permute.xlu0 %1831
      %1833 = vrot.lane.b32.xlu0 %v1797, 68
      %v1834 = vpop.permute.xlu0 %1833
      %1835 = vrot.lane.b32.xlu0 %v1798, 68
      %v1836 = vpop.permute.xlu0 %1835
      %1837 = vrot.lane.b32.xlu0 %v1799, 68
      %v1838 = vpop.permute.xlu0 %1837
      %1839 = vrot.lane.b32.xlu0 %v1800, 68
      %v1840 = vpop.permute.xlu0 %1839
      %1841 = vrot.lane.b32.xlu0 %v1801, 68
      %v1842 = vpop.permute.xlu0 %1841
      %1843 = vrot.lane.b32.xlu0 %v1802, 68
      %v1844 = vpop.permute.xlu0 %1843
      %1845 = vrot.lane.b32.xlu0 %v1803, 68
      %v1846 = vpop.permute.xlu0 %1845
      %1847 = vrot.lane.b32.xlu0 %v1804, 68
      %v1848 = vpop.permute.xlu0 %1847
      %1849 = vrot.lane.b32.xlu0 %v1805, 68
      %v1850 = vpop.permute.xlu0 %1849
      %1851 = vrot.lane.b32.xlu0 %v1806, 68
      %v1852 = vpop.permute.xlu0 %1851
      %1853 = vrot.lane.b32.xlu0 %v1807, 68
      %v1854 = vpop.permute.xlu0 %1853
      %1855 = vrot.lane.b32.xlu0 %v1808, 68
      %v1856 = vpop.permute.xlu0 %1855
      %vm1873 = vcmask 589344
      %1874 = vst.msk [vmem:[#allocation2] sm:$0xff] %vm1873, %v1826
      %1875 = vst.msk [vmem:[#allocation2 + $0x8] sm:$0xff] %vm1873, %v1828
      %1876 = vst.msk [vmem:[#allocation2 + $0x10] sm:$0xff] %vm1873, %v1830
      %1877 = vst.msk [vmem:[#allocation2 + $0x18] sm:$0xff] %vm1873, %v1832
      %1878 = vst.msk [vmem:[#allocation2 + $0x20] sm:$0xff] %vm1873, %v1834
      %1879 = vst.msk [vmem:[#allocation2 + $0x28] sm:$0xff] %vm1873, %v1836
      %1880 = vst.msk [vmem:[#allocation2 + $0x30] sm:$0xff] %vm1873, %v1838
      %1881 = vst.msk [vmem:[#allocation2 + $0x38] sm:$0xff] %vm1873, %v1840
      %1882 = vst.msk [vmem:[#allocation2 + $0x40] sm:$0xff] %vm1873, %v1842
      %1883 = vst.msk [vmem:[#allocation2 + $0x48] sm:$0xff] %vm1873, %v1844
      %1884 = vst.msk [vmem:[#allocation2 + $0x50] sm:$0xff] %vm1873, %v1846
      %1885 = vst.msk [vmem:[#allocation2 + $0x58] sm:$0xff] %vm1873, %v1848
      %1886 = vst.msk [vmem:[#allocation2 + $0x60] sm:$0xff] %vm1873, %v1850
      %1887 = vst.msk [vmem:[#allocation2 + $0x68] sm:$0xff] %vm1873, %v1852
      %1888 = vst.msk [vmem:[#allocation2 + $0x70] sm:$0xff] %vm1873, %v1854
      %1889 = vst.msk [vmem:[#allocation2 + $0x78] sm:$0xff] %vm1873, %v1856
      %s1890 = smul.u32 %s192, 24
      %s1891 = scalar_lea.vmem %s182, %s1890
      %v1892 = vld [vmem:[%s1891] sm:$0xff]
      %v1893 = vld [vmem:[%s1891 + $0x8] sm:$0xff]
      %v1894 = vld [vmem:[%s1891 + $0x18] sm:$0xff]
      %v1895 = vld [vmem:[%s1891 + $0x20] sm:$0xff]
      %v1896 = vld [vmem:[%s1891 + $0x30] sm:$0xff]
      %v1897 = vld [vmem:[%s1891 + $0x38] sm:$0xff]
      %v1898 = vld [vmem:[%s1891 + $0x48] sm:$0xff]
      %v1899 = vld [vmem:[%s1891 + $0x50] sm:$0xff]
      %v1900 = vld [vmem:[%s1891 + $0x60] sm:$0xff]
      %v1901 = vld [vmem:[%s1891 + $0x68] sm:$0xff]
      %v1902 = vld [vmem:[%s1891 + $0x78] sm:$0xff]
      %v1903 = vld [vmem:[%s1891 + $0x80] sm:$0xff]
      %v1904 = vld [vmem:[%s1891 + $0x90] sm:$0xff]
      %v1905 = vld [vmem:[%s1891 + $0x98] sm:$0xff]
      %v1906 = vld [vmem:[%s1891 + $0xa8] sm:$0xff]
      %v1907 = vld [vmem:[%s1891 + $0xb0] sm:$0xff]
      %1924 = vrot.lane.b32.xlu0 %v1892, 72
      %v1925 = vpop.permute.xlu0 %1924
      %1926 = vrot.lane.b32.xlu0 %v1893, 72
      %v1927 = vpop.permute.xlu0 %1926
      %1928 = vrot.lane.b32.xlu0 %v1894, 72
      %v1929 = vpop.permute.xlu0 %1928
      %1930 = vrot.lane.b32.xlu0 %v1895, 72
      %v1931 = vpop.permute.xlu0 %1930
      %1932 = vrot.lane.b32.xlu0 %v1896, 72
      %v1933 = vpop.permute.xlu0 %1932
      %1934 = vrot.lane.b32.xlu0 %v1897, 72
      %v1935 = vpop.permute.xlu0 %1934
      %1936 = vrot.lane.b32.xlu0 %v1898, 72
      %v1937 = vpop.permute.xlu0 %1936
      %1938 = vrot.lane.b32.xlu0 %v1899, 72
      %v1939 = vpop.permute.xlu0 %1938
      %1940 = vrot.lane.b32.xlu0 %v1900, 72
      %v1941 = vpop.permute.xlu0 %1940
      %1942 = vrot.lane.b32.xlu0 %v1901, 72
      %v1943 = vpop.permute.xlu0 %1942
      %1944 = vrot.lane.b32.xlu0 %v1902, 72
      %v1945 = vpop.permute.xlu0 %1944
      %1946 = vrot.lane.b32.xlu0 %v1903, 72
      %v1947 = vpop.permute.xlu0 %1946
      %1948 = vrot.lane.b32.xlu0 %v1904, 72
      %v1949 = vpop.permute.xlu0 %1948
      %1950 = vrot.lane.b32.xlu0 %v1905, 72
      %v1951 = vpop.permute.xlu0 %1950
      %1952 = vrot.lane.b32.xlu0 %v1906, 72
      %v1953 = vpop.permute.xlu0 %1952
      %1954 = vrot.lane.b32.xlu0 %v1907, 72
      %v1955 = vpop.permute.xlu0 %1954
      %vm1972 = vcmask 622144
      %1973 = vst.msk [vmem:[#allocation2] sm:$0xff] %vm1972, %v1925
      %1974 = vst.msk [vmem:[#allocation2 + $0x8] sm:$0xff] %vm1972, %v1927
      %1975 = vst.msk [vmem:[#allocation2 + $0x10] sm:$0xff] %vm1972, %v1929
      %1976 = vst.msk [vmem:[#allocation2 + $0x18] sm:$0xff] %vm1972, %v1931
      %1977 = vst.msk [vmem:[#allocation2 + $0x20] sm:$0xff] %vm1972, %v1933
      %1978 = vst.msk [vmem:[#allocation2 + $0x28] sm:$0xff] %vm1972, %v1935
      %1979 = vst.msk [vmem:[#allocation2 + $0x30] sm:$0xff] %vm1972, %v1937
      %1980 = vst.msk [vmem:[#allocation2 + $0x38] sm:$0xff] %vm1972, %v1939
      %1981 = vst.msk [vmem:[#allocation2 + $0x40] sm:$0xff] %vm1972, %v1941
      %1982 = vst.msk [vmem:[#allocation2 + $0x48] sm:$0xff] %vm1972, %v1943
      %1983 = vst.msk [vmem:[#allocation2 + $0x50] sm:$0xff] %vm1972, %v1945
      %1984 = vst.msk [vmem:[#allocation2 + $0x58] sm:$0xff] %vm1972, %v1947
      %1985 = vst.msk [vmem:[#allocation2 + $0x60] sm:$0xff] %vm1972, %v1949
      %1986 = vst.msk [vmem:[#allocation2 + $0x68] sm:$0xff] %vm1972, %v1951
      %1987 = vst.msk [vmem:[#allocation2 + $0x70] sm:$0xff] %vm1972, %v1953
      %1988 = vst.msk [vmem:[#allocation2 + $0x78] sm:$0xff] %vm1972, %v1955
      %v1989 = vld [vmem:[%s1891 + $0x3] sm:$0xff]
      %v1990 = vld [vmem:[%s1891 + $0xb] sm:$0xff]
      %v1991 = vld [vmem:[%s1891 + $0x1b] sm:$0xff]
      %v1992 = vld [vmem:[%s1891 + $0x23] sm:$0xff]
      %v1993 = vld [vmem:[%s1891 + $0x33] sm:$0xff]
      %v1994 = vld [vmem:[%s1891 + $0x3b] sm:$0xff]
      %v1995 = vld [vmem:[%s1891 + $0x4b] sm:$0xff]
      %v1996 = vld [vmem:[%s1891 + $0x53] sm:$0xff]
      %v1997 = vld [vmem:[%s1891 + $0x63] sm:$0xff]
      %v1998 = vld [vmem:[%s1891 + $0x6b] sm:$0xff]
      %v1999 = vld [vmem:[%s1891 + $0x7b] sm:$0xff]
      %v2000 = vld [vmem:[%s1891 + $0x83] sm:$0xff]
      %v2001 = vld [vmem:[%s1891 + $0x93] sm:$0xff]
      %v2002 = vld [vmem:[%s1891 + $0x9b] sm:$0xff]
      %v2003 = vld [vmem:[%s1891 + $0xab] sm:$0xff]
      %v2004 = vld [vmem:[%s1891 + $0xb3] sm:$0xff]
      %2021 = vrot.lane.b32.xlu0 %v1989, 76
      %v2022 = vpop.permute.xlu0 %2021
      %2023 = vrot.lane.b32.xlu0 %v1990, 76
      %v2024 = vpop.permute.xlu0 %2023
      %2025 = vrot.lane.b32.xlu0 %v1991, 76
      %v2026 = vpop.permute.xlu0 %2025
      %2027 = vrot.lane.b32.xlu0 %v1992, 76
      %v2028 = vpop.permute.xlu0 %2027
      %2029 = vrot.lane.b32.xlu0 %v1993, 76
      %v2030 = vpop.permute.xlu0 %2029
      %2031 = vrot.lane.b32.xlu0 %v1994, 76
      %v2032 = vpop.permute.xlu0 %2031
      %2033 = vrot.lane.b32.xlu0 %v1995, 76
      %v2034 = vpop.permute.xlu0 %2033
      %2035 = vrot.lane.b32.xlu0 %v1996, 76
      %v2036 = vpop.permute.xlu0 %2035
      %2037 = vrot.lane.b32.xlu0 %v1997, 76
      %v2038 = vpop.permute.xlu0 %2037
      %2039 = vrot.lane.b32.xlu0 %v1998, 76
      %v2040 = vpop.permute.xlu0 %2039
      %2041 = vrot.lane.b32.xlu0 %v1999, 76
      %v2042 = vpop.permute.xlu0 %2041
      %2043 = vrot.lane.b32.xlu0 %v2000, 76
      %v2044 = vpop.permute.xlu0 %2043
      %2045 = vrot.lane.b32.xlu0 %v2001, 76
      %v2046 = vpop.permute.xlu0 %2045
      %2047 = vrot.lane.b32.xlu0 %v2002, 76
      %v2048 = vpop.permute.xlu0 %2047
      %2049 = vrot.lane.b32.xlu0 %v2003, 76
      %v2050 = vpop.permute.xlu0 %2049
      %2051 = vrot.lane.b32.xlu0 %v2004, 76
      %v2052 = vpop.permute.xlu0 %2051
      %vm2069 = vcmask 654944
      %2070 = vst.msk [vmem:[#allocation2] sm:$0xff] %vm2069, %v2022
      %2071 = vst.msk [vmem:[#allocation2 + $0x8] sm:$0xff] %vm2069, %v2024
      %2072 = vst.msk [vmem:[#allocation2 + $0x10] sm:$0xff] %vm2069, %v2026
      %2073 = vst.msk [vmem:[#allocation2 + $0x18] sm:$0xff] %vm2069, %v2028
      %2074 = vst.msk [vmem:[#allocation2 + $0x20] sm:$0xff] %vm2069, %v2030
      %2075 = vst.msk [vmem:[#allocation2 + $0x28] sm:$0xff] %vm2069, %v2032
      %2076 = vst.msk [vmem:[#allocation2 + $0x30] sm:$0xff] %vm2069, %v2034
      %2077 = vst.msk [vmem:[#allocation2 + $0x38] sm:$0xff] %vm2069, %v2036
      %2078 = vst.msk [vmem:[#allocation2 + $0x40] sm:$0xff] %vm2069, %v2038
      %2079 = vst.msk [vmem:[#allocation2 + $0x48] sm:$0xff] %vm2069, %v2040
      %2080 = vst.msk [vmem:[#allocation2 + $0x50] sm:$0xff] %vm2069, %v2042
      %2081 = vst.msk [vmem:[#allocation2 + $0x58] sm:$0xff] %vm2069, %v2044
      %2082 = vst.msk [vmem:[#allocation2 + $0x60] sm:$0xff] %vm2069, %v2046
      %2083 = vst.msk [vmem:[#allocation2 + $0x68] sm:$0xff] %vm2069, %v2048
      %2084 = vst.msk [vmem:[#allocation2 + $0x70] sm:$0xff] %vm2069, %v2050
      %2085 = vst.msk [vmem:[#allocation2 + $0x78] sm:$0xff] %vm2069, %v2052
      %v2086 = vld [vmem:[%s1891 + $0x6] sm:$0xff]
      %v2087 = vld [vmem:[%s1891 + $0xe] sm:$0xff]
      %v2088 = vld [vmem:[%s1891 + $0x1e] sm:$0xff]
      %v2089 = vld [vmem:[%s1891 + $0x26] sm:$0xff]
      %v2090 = vld [vmem:[%s1891 + $0x36] sm:$0xff]
      %v2091 = vld [vmem:[%s1891 + $0x3e] sm:$0xff]
      %v2092 = vld [vmem:[%s1891 + $0x4e] sm:$0xff]
      %v2093 = vld [vmem:[%s1891 + $0x56] sm:$0xff]
      %v2094 = vld [vmem:[%s1891 + $0x66] sm:$0xff]
      %v2095 = vld [vmem:[%s1891 + $0x6e] sm:$0xff]
      %v2096 = vld [vmem:[%s1891 + $0x7e] sm:$0xff]
      %v2097 = vld [vmem:[%s1891 + $0x86] sm:$0xff]
      %v2098 = vld [vmem:[%s1891 + $0x96] sm:$0xff]
      %v2099 = vld [vmem:[%s1891 + $0x9e] sm:$0xff]
      %v2100 = vld [vmem:[%s1891 + $0xae] sm:$0xff]
      %v2101 = vld [vmem:[%s1891 + $0xb6] sm:$0xff]
      %2118 = vrot.lane.b32.xlu0 %v2086, 80
      %v2119 = vpop.permute.xlu0 %2118
      %2120 = vrot.lane.b32.xlu0 %v2087, 80
      %v2121 = vpop.permute.xlu0 %2120
      %2122 = vrot.lane.b32.xlu0 %v2088, 80
      %v2123 = vpop.permute.xlu0 %2122
      %2124 = vrot.lane.b32.xlu0 %v2089, 80
      %v2125 = vpop.permute.xlu0 %2124
      %2126 = vrot.lane.b32.xlu0 %v2090, 80
      %v2127 = vpop.permute.xlu0 %2126
      %2128 = vrot.lane.b32.xlu0 %v2091, 80
      %v2129 = vpop.permute.xlu0 %2128
      %2130 = vrot.lane.b32.xlu0 %v2092, 80
      %v2131 = vpop.permute.xlu0 %2130
      %2132 = vrot.lane.b32.xlu0 %v2093, 80
      %v2133 = vpop.permute.xlu0 %2132
      %2134 = vrot.lane.b32.xlu0 %v2094, 80
      %v2135 = vpop.permute.xlu0 %2134
      %2136 = vrot.lane.b32.xlu0 %v2095, 80
      %v2137 = vpop.permute.xlu0 %2136
      %2138 = vrot.lane.b32.xlu0 %v2096, 80
      %v2139 = vpop.permute.xlu0 %2138
      %2140 = vrot.lane.b32.xlu0 %v2097, 80
      %v2141 = vpop.permute.xlu0 %2140
      %2142 = vrot.lane.b32.xlu0 %v2098, 80
      %v2143 = vpop.permute.xlu0 %2142
      %2144 = vrot.lane.b32.xlu0 %v2099, 80
      %v2145 = vpop.permute.xlu0 %2144
      %2146 = vrot.lane.b32.xlu0 %v2100, 80
      %v2147 = vpop.permute.xlu0 %2146
      %2148 = vrot.lane.b32.xlu0 %v2101, 80
      %v2149 = vpop.permute.xlu0 %2148
      %vm2166 = vcmask 687744
      %2167 = vst.msk [vmem:[#allocation2] sm:$0xff] %vm2166, %v2119
      %2168 = vst.msk [vmem:[#allocation2 + $0x8] sm:$0xff] %vm2166, %v2121
      %2169 = vst.msk [vmem:[#allocation2 + $0x10] sm:$0xff] %vm2166, %v2123
      %2170 = vst.msk [vmem:[#allocation2 + $0x18] sm:$0xff] %vm2166, %v2125
      %2171 = vst.msk [vmem:[#allocation2 + $0x20] sm:$0xff] %vm2166, %v2127
      %2172 = vst.msk [vmem:[#allocation2 + $0x28] sm:$0xff] %vm2166, %v2129
      %2173 = vst.msk [vmem:[#allocation2 + $0x30] sm:$0xff] %vm2166, %v2131
      %2174 = vst.msk [vmem:[#allocation2 + $0x38] sm:$0xff] %vm2166, %v2133
      %2175 = vst.msk [vmem:[#allocation2 + $0x40] sm:$0xff] %vm2166, %v2135
      %2176 = vst.msk [vmem:[#allocation2 + $0x48] sm:$0xff] %vm2166, %v2137
      %2177 = vst.msk [vmem:[#allocation2 + $0x50] sm:$0xff] %vm2166, %v2139
      %2178 = vst.msk [vmem:[#allocation2 + $0x58] sm:$0xff] %vm2166, %v2141
      %2179 = vst.msk [vmem:[#allocation2 + $0x60] sm:$0xff] %vm2166, %v2143
      %2180 = vst.msk [vmem:[#allocation2 + $0x68] sm:$0xff] %vm2166, %v2145
      %2181 = vst.msk [vmem:[#allocation2 + $0x70] sm:$0xff] %vm2166, %v2147
      %2182 = vst.msk [vmem:[#allocation2 + $0x78] sm:$0xff] %vm2166, %v2149
      %v2183 = vld [vmem:[%s425] sm:$0xff]
      %v2184 = vld [vmem:[%s425 + $0x8] sm:$0xff]
      %v2185 = vld [vmem:[%s425 + $0x18] sm:$0xff]
      %v2186 = vld [vmem:[%s425 + $0x20] sm:$0xff]
      %v2187 = vld [vmem:[%s425 + $0x30] sm:$0xff]
      %v2188 = vld [vmem:[%s425 + $0x38] sm:$0xff]
      %v2189 = vld [vmem:[%s425 + $0x48] sm:$0xff]
      %v2190 = vld [vmem:[%s425 + $0x50] sm:$0xff]
      %v2191 = vld [vmem:[%s425 + $0x60] sm:$0xff]
      %v2192 = vld [vmem:[%s425 + $0x68] sm:$0xff]
      %v2193 = vld [vmem:[%s425 + $0x78] sm:$0xff]
      %v2194 = vld [vmem:[%s425 + $0x80] sm:$0xff]
      %v2195 = vld [vmem:[%s425 + $0x90] sm:$0xff]
      %v2196 = vld [vmem:[%s425 + $0x98] sm:$0xff]
      %v2197 = vld [vmem:[%s425 + $0xa8] sm:$0xff]
      %v2198 = vld [vmem:[%s425 + $0xb0] sm:$0xff]
      %2215 = vrot.lane.b32.xlu0 %v2183, 84
      %v2216 = vpop.permute.xlu0 %2215
      %2217 = vrot.lane.b32.xlu0 %v2184, 84
      %v2218 = vpop.permute.xlu0 %2217
      %2219 = vrot.lane.b32.xlu0 %v2185, 84
      %v2220 = vpop.permute.xlu0 %2219
      %2221 = vrot.lane.b32.xlu0 %v2186, 84
      %v2222 = vpop.permute.xlu0 %2221
      %2223 = vrot.lane.b32.xlu0 %v2187, 84
      %v2224 = vpop.permute.xlu0 %2223
      %2225 = vrot.lane.b32.xlu0 %v2188, 84
      %v2226 = vpop.permute.xlu0 %2225
      %2227 = vrot.lane.b32.xlu0 %v2189, 84
      %v2228 = vpop.permute.xlu0 %2227
      %2229 = vrot.lane.b32.xlu0 %v2190, 84
      %v2230 = vpop.permute.xlu0 %2229
      %2231 = vrot.lane.b32.xlu0 %v2191, 84
      %v2232 = vpop.permute.xlu0 %2231
      %2233 = vrot.lane.b32.xlu0 %v2192, 84
      %v2234 = vpop.permute.xlu0 %2233
      %2235 = vrot.lane.b32.xlu0 %v2193, 84
      %v2236 = vpop.permute.xlu0 %2235
      %2237 = vrot.lane.b32.xlu0 %v2194, 84
      %v2238 = vpop.permute.xlu0 %2237
      %2239 = vrot.lane.b32.xlu0 %v2195, 84
      %v2240 = vpop.permute.xlu0 %2239
      %2241 = vrot.lane.b32.xlu0 %v2196, 84
      %v2242 = vpop.permute.xlu0 %2241
      %2243 = vrot.lane.b32.xlu0 %v2197, 84
      %v2244 = vpop.permute.xlu0 %2243
      %2245 = vrot.lane.b32.xlu0 %v2198, 84
      %v2246 = vpop.permute.xlu0 %2245
      %vm2263 = vcmask 720544
      %2264 = vst.msk [vmem:[#allocation2] sm:$0xff] %vm2263, %v2216
      %2265 = vst.msk [vmem:[#allocation2 + $0x8] sm:$0xff] %vm2263, %v2218
      %2266 = vst.msk [vmem:[#allocation2 + $0x10] sm:$0xff] %vm2263, %v2220
      %2267 = vst.msk [vmem:[#allocation2 + $0x18] sm:$0xff] %vm2263, %v2222
      %2268 = vst.msk [vmem:[#allocation2 + $0x20] sm:$0xff] %vm2263, %v2224
      %2269 = vst.msk [vmem:[#allocation2 + $0x28] sm:$0xff] %vm2263, %v2226
      %2270 = vst.msk [vmem:[#allocation2 + $0x30] sm:$0xff] %vm2263, %v2228
      %2271 = vst.msk [vmem:[#allocation2 + $0x38] sm:$0xff] %vm2263, %v2230
      %2272 = vst.msk [vmem:[#allocation2 + $0x40] sm:$0xff] %vm2263, %v2232
      %2273 = vst.msk [vmem:[#allocation2 + $0x48] sm:$0xff] %vm2263, %v2234
      %2274 = vst.msk [vmem:[#allocation2 + $0x50] sm:$0xff] %vm2263, %v2236
      %2275 = vst.msk [vmem:[#allocation2 + $0x58] sm:$0xff] %vm2263, %v2238
      %2276 = vst.msk [vmem:[#allocation2 + $0x60] sm:$0xff] %vm2263, %v2240
      %2277 = vst.msk [vmem:[#allocation2 + $0x68] sm:$0xff] %vm2263, %v2242
      %2278 = vst.msk [vmem:[#allocation2 + $0x70] sm:$0xff] %vm2263, %v2244
      %2279 = vst.msk [vmem:[#allocation2 + $0x78] sm:$0xff] %vm2263, %v2246
      %v2280 = vld [vmem:[%s425 + $0x3] sm:$0xff]
      %v2281 = vld [vmem:[%s425 + $0xb] sm:$0xff]
      %v2282 = vld [vmem:[%s425 + $0x1b] sm:$0xff]
      %v2283 = vld [vmem:[%s425 + $0x23] sm:$0xff]
      %v2284 = vld [vmem:[%s425 + $0x33] sm:$0xff]
      %v2285 = vld [vmem:[%s425 + $0x3b] sm:$0xff]
      %v2286 = vld [vmem:[%s425 + $0x4b] sm:$0xff]
      %v2287 = vld [vmem:[%s425 + $0x53] sm:$0xff]
      %v2288 = vld [vmem:[%s425 + $0x63] sm:$0xff]
      %v2289 = vld [vmem:[%s425 + $0x6b] sm:$0xff]
      %v2290 = vld [vmem:[%s425 + $0x7b] sm:$0xff]
      %v2291 = vld [vmem:[%s425 + $0x83] sm:$0xff]
      %v2292 = vld [vmem:[%s425 + $0x93] sm:$0xff]
      %v2293 = vld [vmem:[%s425 + $0x9b] sm:$0xff]
      %v2294 = vld [vmem:[%s425 + $0xab] sm:$0xff]
      %v2295 = vld [vmem:[%s425 + $0xb3] sm:$0xff]
      %2312 = vrot.lane.b32.xlu0 %v2280, 88
      %v2313 = vpop.permute.xlu0 %2312
      %2314 = vrot.lane.b32.xlu0 %v2281, 88
      %v2315 = vpop.permute.xlu0 %2314
      %2316 = vrot.lane.b32.xlu0 %v2282, 88
      %v2317 = vpop.permute.xlu0 %2316
      %2318 = vrot.lane.b32.xlu0 %v2283, 88
      %v2319 = vpop.permute.xlu0 %2318
      %2320 = vrot.lane.b32.xlu0 %v2284, 88
      %v2321 = vpop.permute.xlu0 %2320
      %2322 = vrot.lane.b32.xlu0 %v2285, 88
      %v2323 = vpop.permute.xlu0 %2322
      %2324 = vrot.lane.b32.xlu0 %v2286, 88
      %v2325 = vpop.permute.xlu0 %2324
      %2326 = vrot.lane.b32.xlu0 %v2287, 88
      %v2327 = vpop.permute.xlu0 %2326
      %2328 = vrot.lane.b32.xlu0 %v2288, 88
      %v2329 = vpop.permute.xlu0 %2328
      %2330 = vrot.lane.b32.xlu0 %v2289, 88
      %v2331 = vpop.permute.xlu0 %2330
      %2332 = vrot.lane.b32.xlu0 %v2290, 88
      %v2333 = vpop.permute.xlu0 %2332
      %2334 = vrot.lane.b32.xlu0 %v2291, 88
      %v2335 = vpop.permute.xlu0 %2334
      %2336 = vrot.lane.b32.xlu0 %v2292, 88
      %v2337 = vpop.permute.xlu0 %2336
      %2338 = vrot.lane.b32.xlu0 %v2293, 88
      %v2339 = vpop.permute.xlu0 %2338
      %2340 = vrot.lane.b32.xlu0 %v2294, 88
      %v2341 = vpop.permute.xlu0 %2340
      %2342 = vrot.lane.b32.xlu0 %v2295, 88
      %v2343 = vpop.permute.xlu0 %2342
      %vm2360 = vcmask 753344
      %2361 = vst.msk [vmem:[#allocation2] sm:$0xff] %vm2360, %v2313
      %2362 = vst.msk [vmem:[#allocation2 + $0x8] sm:$0xff] %vm2360, %v2315
      %2363 = vst.msk [vmem:[#allocation2 + $0x10] sm:$0xff] %vm2360, %v2317
      %2364 = vst.msk [vmem:[#allocation2 + $0x18] sm:$0xff] %vm2360, %v2319
      %2365 = vst.msk [vmem:[#allocation2 + $0x20] sm:$0xff] %vm2360, %v2321
      %2366 = vst.msk [vmem:[#allocation2 + $0x28] sm:$0xff] %vm2360, %v2323
      %2367 = vst.msk [vmem:[#allocation2 + $0x30] sm:$0xff] %vm2360, %v2325
      %2368 = vst.msk [vmem:[#allocation2 + $0x38] sm:$0xff] %vm2360, %v2327
      %2369 = vst.msk [vmem:[#allocation2 + $0x40] sm:$0xff] %vm2360, %v2329
      %2370 = vst.msk [vmem:[#allocation2 + $0x48] sm:$0xff] %vm2360, %v2331
      %2371 = vst.msk [vmem:[#allocation2 + $0x50] sm:$0xff] %vm2360, %v2333
      %2372 = vst.msk [vmem:[#allocation2 + $0x58] sm:$0xff] %vm2360, %v2335
      %2373 = vst.msk [vmem:[#allocation2 + $0x60] sm:$0xff] %vm2360, %v2337
      %2374 = vst.msk [vmem:[#allocation2 + $0x68] sm:$0xff] %vm2360, %v2339
      %2375 = vst.msk [vmem:[#allocation2 + $0x70] sm:$0xff] %vm2360, %v2341
      %2376 = vst.msk [vmem:[#allocation2 + $0x78] sm:$0xff] %vm2360, %v2343
      %v2377 = vld [vmem:[%s425 + $0x6] sm:$0xff]
      %v2378 = vld [vmem:[%s425 + $0xe] sm:$0xff]
      %v2379 = vld [vmem:[%s425 + $0x1e] sm:$0xff]
      %v2380 = vld [vmem:[%s425 + $0x26] sm:$0xff]
      %v2381 = vld [vmem:[%s425 + $0x36] sm:$0xff]
      %v2382 = vld [vmem:[%s425 + $0x3e] sm:$0xff]
      %v2383 = vld [vmem:[%s425 + $0x4e] sm:$0xff]
      %v2384 = vld [vmem:[%s425 + $0x56] sm:$0xff]
      %v2385 = vld [vmem:[%s425 + $0x66] sm:$0xff]
      %v2386 = vld [vmem:[%s425 + $0x6e] sm:$0xff]
      %v2387 = vld [vmem:[%s425 + $0x7e] sm:$0xff]
      %v2388 = vld [vmem:[%s425 + $0x86] sm:$0xff]
      %v2389 = vld [vmem:[%s425 + $0x96] sm:$0xff]
      %v2390 = vld [vmem:[%s425 + $0x9e] sm:$0xff]
      %v2391 = vld [vmem:[%s425 + $0xae] sm:$0xff]
      %v2392 = vld [vmem:[%s425 + $0xb6] sm:$0xff]
      %2409 = vrot.lane.b32.xlu0 %v2377, 92
      %v2410 = vpop.permute.xlu0 %2409
      %2411 = vrot.lane.b32.xlu0 %v2378, 92
      %v2412 = vpop.permute.xlu0 %2411
      %2413 = vrot.lane.b32.xlu0 %v2379, 92
      %v2414 = vpop.permute.xlu0 %2413
      %2415 = vrot.lane.b32.xlu0 %v2380, 92
      %v2416 = vpop.permute.xlu0 %2415
      %2417 = vrot.lane.b32.xlu0 %v2381, 92
      %v2418 = vpop.permute.xlu0 %2417
      %2419 = vrot.lane.b32.xlu0 %v2382, 92
      %v2420 = vpop.permute.xlu0 %2419
      %2421 = vrot.lane.b32.xlu0 %v2383, 92
      %v2422 = vpop.permute.xlu0 %2421
      %2423 = vrot.lane.b32.xlu0 %v2384, 92
      %v2424 = vpop.permute.xlu0 %2423
      %2425 = vrot.lane.b32.xlu0 %v2385, 92
      %v2426 = vpop.permute.xlu0 %2425
      %2427 = vrot.lane.b32.xlu0 %v2386, 92
      %v2428 = vpop.permute.xlu0 %2427
      %2429 = vrot.lane.b32.xlu0 %v2387, 92
      %v2430 = vpop.permute.xlu0 %2429
      %2431 = vrot.lane.b32.xlu0 %v2388, 92
      %v2432 = vpop.permute.xlu0 %2431
      %2433 = vrot.lane.b32.xlu0 %v2389, 92
      %v2434 = vpop.permute.xlu0 %2433
      %2435 = vrot.lane.b32.xlu0 %v2390, 92
      %v2436 = vpop.permute.xlu0 %2435
      %2437 = vrot.lane.b32.xlu0 %v2391, 92
      %v2438 = vpop.permute.xlu0 %2437
      %2439 = vrot.lane.b32.xlu0 %v2392, 92
      %v2440 = vpop.permute.xlu0 %2439
      %vm2457 = vcmask 786144
      %2458 = vst.msk [vmem:[#allocation2] sm:$0xff] %vm2457, %v2410
      %2459 = vst.msk [vmem:[#allocation2 + $0x8] sm:$0xff] %vm2457, %v2412
      %2460 = vst.msk [vmem:[#allocation2 + $0x10] sm:$0xff] %vm2457, %v2414
      %2461 = vst.msk [vmem:[#allocation2 + $0x18] sm:$0xff] %vm2457, %v2416
      %2462 = vst.msk [vmem:[#allocation2 + $0x20] sm:$0xff] %vm2457, %v2418
      %2463 = vst.msk [vmem:[#allocation2 + $0x28] sm:$0xff] %vm2457, %v2420
      %2464 = vst.msk [vmem:[#allocation2 + $0x30] sm:$0xff] %vm2457, %v2422
      %2465 = vst.msk [vmem:[#allocation2 + $0x38] sm:$0xff] %vm2457, %v2424
      %2466 = vst.msk [vmem:[#allocation2 + $0x40] sm:$0xff] %vm2457, %v2426
      %2467 = vst.msk [vmem:[#allocation2 + $0x48] sm:$0xff] %vm2457, %v2428
      %2468 = vst.msk [vmem:[#allocation2 + $0x50] sm:$0xff] %vm2457, %v2430
      %2469 = vst.msk [vmem:[#allocation2 + $0x58] sm:$0xff] %vm2457, %v2432
      %2470 = vst.msk [vmem:[#allocation2 + $0x60] sm:$0xff] %vm2457, %v2434
      %2471 = vst.msk [vmem:[#allocation2 + $0x68] sm:$0xff] %vm2457, %v2436
      %2472 = vst.msk [vmem:[#allocation2 + $0x70] sm:$0xff] %vm2457, %v2438
      %2473 = vst.msk [vmem:[#allocation2 + $0x78] sm:$0xff] %vm2457, %v2440
      %s2474 = sadd.s32 %s192, 6
      %s2475 = smul.u32 %s2474, 24
      %s2476 = scalar_lea.vmem %s182, %s2475
      %v2477 = vld [vmem:[%s2476] sm:$0xff]
      %v2478 = vld [vmem:[%s2476 + $0x8] sm:$0xff]
      %v2479 = vld [vmem:[%s2476 + $0x18] sm:$0xff]
      %v2480 = vld [vmem:[%s2476 + $0x20] sm:$0xff]
      %v2481 = vld [vmem:[%s2476 + $0x30] sm:$0xff]
      %v2482 = vld [vmem:[%s2476 + $0x38] sm:$0xff]
      %v2483 = vld [vmem:[%s2476 + $0x48] sm:$0xff]
      %v2484 = vld [vmem:[%s2476 + $0x50] sm:$0xff]
      %v2485 = vld [vmem:[%s2476 + $0x60] sm:$0xff]
      %v2486 = vld [vmem:[%s2476 + $0x68] sm:$0xff]
      %v2487 = vld [vmem:[%s2476 + $0x78] sm:$0xff]
      %v2488 = vld [vmem:[%s2476 + $0x80] sm:$0xff]
      %v2489 = vld [vmem:[%s2476 + $0x90] sm:$0xff]
      %v2490 = vld [vmem:[%s2476 + $0x98] sm:$0xff]
      %v2491 = vld [vmem:[%s2476 + $0xa8] sm:$0xff]
      %v2492 = vld [vmem:[%s2476 + $0xb0] sm:$0xff]
      %2509 = vrot.lane.b32.xlu0 %v2477, 96
      %v2510 = vpop.permute.xlu0 %2509
      %2511 = vrot.lane.b32.xlu0 %v2478, 96
      %v2512 = vpop.permute.xlu0 %2511
      %2513 = vrot.lane.b32.xlu0 %v2479, 96
      %v2514 = vpop.permute.xlu0 %2513
      %2515 = vrot.lane.b32.xlu0 %v2480, 96
      %v2516 = vpop.permute.xlu0 %2515
      %2517 = vrot.lane.b32.xlu0 %v2481, 96
      %v2518 = vpop.permute.xlu0 %2517
      %2519 = vrot.lane.b32.xlu0 %v2482, 96
      %v2520 = vpop.permute.xlu0 %2519
      %2521 = vrot.lane.b32.xlu0 %v2483, 96
      %v2522 = vpop.permute.xlu0 %2521
      %2523 = vrot.lane.b32.xlu0 %v2484, 96
      %v2524 = vpop.permute.xlu0 %2523
      %2525 = vrot.lane.b32.xlu0 %v2485, 96
      %v2526 = vpop.permute.xlu0 %2525
      %2527 = vrot.lane.b32.xlu0 %v2486, 96
      %v2528 = vpop.permute.xlu0 %2527
      %2529 = vrot.lane.b32.xlu0 %v2487, 96
      %v2530 = vpop.permute.xlu0 %2529
      %2531 = vrot.lane.b32.xlu0 %v2488, 96
      %v2532 = vpop.permute.xlu0 %2531
      %2533 = vrot.lane.b32.xlu0 %v2489, 96
      %v2534 = vpop.permute.xlu0 %2533
      %2535 = vrot.lane.b32.xlu0 %v2490, 96
      %v2536 = vpop.permute.xlu0 %2535
      %2537 = vrot.lane.b32.xlu0 %v2491, 96
      %v2538 = vpop.permute.xlu0 %2537
      %2539 = vrot.lane.b32.xlu0 %v2492, 96
      %v2540 = vpop.permute.xlu0 %2539
      %vm2557 = vcmask 818944
      %2558 = vst.msk [vmem:[#allocation2] sm:$0xff] %vm2557, %v2510
      %2559 = vst.msk [vmem:[#allocation2 + $0x8] sm:$0xff] %vm2557, %v2512
      %2560 = vst.msk [vmem:[#allocation2 + $0x10] sm:$0xff] %vm2557, %v2514
      %2561 = vst.msk [vmem:[#allocation2 + $0x18] sm:$0xff] %vm2557, %v2516
      %2562 = vst.msk [vmem:[#allocation2 + $0x20] sm:$0xff] %vm2557, %v2518
      %2563 = vst.msk [vmem:[#allocation2 + $0x28] sm:$0xff] %vm2557, %v2520
      %2564 = vst.msk [vmem:[#allocation2 + $0x30] sm:$0xff] %vm2557, %v2522
      %2565 = vst.msk [vmem:[#allocation2 + $0x38] sm:$0xff] %vm2557, %v2524
      %2566 = vst.msk [vmem:[#allocation2 + $0x40] sm:$0xff] %vm2557, %v2526
      %2567 = vst.msk [vmem:[#allocation2 + $0x48] sm:$0xff] %vm2557, %v2528
      %2568 = vst.msk [vmem:[#allocation2 + $0x50] sm:$0xff] %vm2557, %v2530
      %2569 = vst.msk [vmem:[#allocation2 + $0x58] sm:$0xff] %vm2557, %v2532
      %2570 = vst.msk [vmem:[#allocation2 + $0x60] sm:$0xff] %vm2557, %v2534
      %2571 = vst.msk [vmem:[#allocation2 + $0x68] sm:$0xff] %vm2557, %v2536
      %2572 = vst.msk [vmem:[#allocation2 + $0x70] sm:$0xff] %vm2557, %v2538
      %2573 = vst.msk [vmem:[#allocation2 + $0x78] sm:$0xff] %vm2557, %v2540
      %v2574 = vld [vmem:[%s2476 + $0x3] sm:$0xff]
      %v2575 = vld [vmem:[%s2476 + $0xb] sm:$0xff]
      %v2576 = vld [vmem:[%s2476 + $0x1b] sm:$0xff]
      %v2577 = vld [vmem:[%s2476 + $0x23] sm:$0xff]
      %v2578 = vld [vmem:[%s2476 + $0x33] sm:$0xff]
      %v2579 = vld [vmem:[%s2476 + $0x3b] sm:$0xff]
      %v2580 = vld [vmem:[%s2476 + $0x4b] sm:$0xff]
      %v2581 = vld [vmem:[%s2476 + $0x53] sm:$0xff]
      %v2582 = vld [vmem:[%s2476 + $0x63] sm:$0xff]
      %v2583 = vld [vmem:[%s2476 + $0x6b] sm:$0xff]
      %v2584 = vld [vmem:[%s2476 + $0x7b] sm:$0xff]
      %v2585 = vld [vmem:[%s2476 + $0x83] sm:$0xff]
      %v2586 = vld [vmem:[%s2476 + $0x93] sm:$0xff]
      %v2587 = vld [vmem:[%s2476 + $0x9b] sm:$0xff]
      %v2588 = vld [vmem:[%s2476 + $0xab] sm:$0xff]
      %v2589 = vld [vmem:[%s2476 + $0xb3] sm:$0xff]
      %2606 = vrot.lane.b32.xlu0 %v2574, 100
      %v2607 = vpop.permute.xlu0 %2606
      %2608 = vrot.lane.b32.xlu0 %v2575, 100
      %v2609 = vpop.permute.xlu0 %2608
      %2610 = vrot.lane.b32.xlu0 %v2576, 100
      %v2611 = vpop.permute.xlu0 %2610
      %2612 = vrot.lane.b32.xlu0 %v2577, 100
      %v2613 = vpop.permute.xlu0 %2612
      %2614 = vrot.lane.b32.xlu0 %v2578, 100
      %v2615 = vpop.permute.xlu0 %2614
      %2616 = vrot.lane.b32.xlu0 %v2579, 100
      %v2617 = vpop.permute.xlu0 %2616
      %2618 = vrot.lane.b32.xlu0 %v2580, 100
      %v2619 = vpop.permute.xlu0 %2618
      %2620 = vrot.lane.b32.xlu0 %v2581, 100
      %v2621 = vpop.permute.xlu0 %2620
      %2622 = vrot.lane.b32.xlu0 %v2582, 100
      %v2623 = vpop.permute.xlu0 %2622
      %2624 = vrot.lane.b32.xlu0 %v2583, 100
      %v2625 = vpop.permute.xlu0 %2624
      %2626 = vrot.lane.b32.xlu0 %v2584, 100
      %v2627 = vpop.permute.xlu0 %2626
      %2628 = vrot.lane.b32.xlu0 %v2585, 100
      %v2629 = vpop.permute.xlu0 %2628
      %2630 = vrot.lane.b32.xlu0 %v2586, 100
      %v2631 = vpop.permute.xlu0 %2630
      %2632 = vrot.lane.b32.xlu0 %v2587, 100
      %v2633 = vpop.permute.xlu0 %2632
      %2634 = vrot.lane.b32.xlu0 %v2588, 100
      %v2635 = vpop.permute.xlu0 %2634
      %2636 = vrot.lane.b32.xlu0 %v2589, 100
      %v2637 = vpop.permute.xlu0 %2636
      %vm2654 = vcmask 851744
      %2655 = vst.msk [vmem:[#allocation2] sm:$0xff] %vm2654, %v2607
      %2656 = vst.msk [vmem:[#allocation2 + $0x8] sm:$0xff] %vm2654, %v2609
      %2657 = vst.msk [vmem:[#allocation2 + $0x10] sm:$0xff] %vm2654, %v2611
      %2658 = vst.msk [vmem:[#allocation2 + $0x18] sm:$0xff] %vm2654, %v2613
      %2659 = vst.msk [vmem:[#allocation2 + $0x20] sm:$0xff] %vm2654, %v2615
      %2660 = vst.msk [vmem:[#allocation2 + $0x28] sm:$0xff] %vm2654, %v2617
      %2661 = vst.msk [vmem:[#allocation2 + $0x30] sm:$0xff] %vm2654, %v2619
      %2662 = vst.msk [vmem:[#allocation2 + $0x38] sm:$0xff] %vm2654, %v2621
      %2663 = vst.msk [vmem:[#allocation2 + $0x40] sm:$0xff] %vm2654, %v2623
      %2664 = vst.msk [vmem:[#allocation2 + $0x48] sm:$0xff] %vm2654, %v2625
      %2665 = vst.msk [vmem:[#allocation2 + $0x50] sm:$0xff] %vm2654, %v2627
      %2666 = vst.msk [vmem:[#allocation2 + $0x58] sm:$0xff] %vm2654, %v2629
      %2667 = vst.msk [vmem:[#allocation2 + $0x60] sm:$0xff] %vm2654, %v2631
      %2668 = vst.msk [vmem:[#allocation2 + $0x68] sm:$0xff] %vm2654, %v2633
      %2669 = vst.msk [vmem:[#allocation2 + $0x70] sm:$0xff] %vm2654, %v2635
      %2670 = vst.msk [vmem:[#allocation2 + $0x78] sm:$0xff] %vm2654, %v2637
      %v2671 = vld [vmem:[%s2476 + $0x6] sm:$0xff]
      %v2672 = vld [vmem:[%s2476 + $0xe] sm:$0xff]
      %v2673 = vld [vmem:[%s2476 + $0x1e] sm:$0xff]
      %v2674 = vld [vmem:[%s2476 + $0x26] sm:$0xff]
      %v2675 = vld [vmem:[%s2476 + $0x36] sm:$0xff]
      %v2676 = vld [vmem:[%s2476 + $0x3e] sm:$0xff]
      %v2677 = vld [vmem:[%s2476 + $0x4e] sm:$0xff]
      %v2678 = vld [vmem:[%s2476 + $0x56] sm:$0xff]
      %v2679 = vld [vmem:[%s2476 + $0x66] sm:$0xff]
      %v2680 = vld [vmem:[%s2476 + $0x6e] sm:$0xff]
      %v2681 = vld [vmem:[%s2476 + $0x7e] sm:$0xff]
      %v2682 = vld [vmem:[%s2476 + $0x86] sm:$0xff]
      %v2683 = vld [vmem:[%s2476 + $0x96] sm:$0xff]
      %v2684 = vld [vmem:[%s2476 + $0x9e] sm:$0xff]
      %v2685 = vld [vmem:[%s2476 + $0xae] sm:$0xff]
      %v2686 = vld [vmem:[%s2476 + $0xb6] sm:$0xff]
      %2703 = vrot.lane.b32.xlu0 %v2671, 104
      %v2704 = vpop.permute.xlu0 %2703
      %2705 = vrot.lane.b32.xlu0 %v2672, 104
      %v2706 = vpop.permute.xlu0 %2705
      %2707 = vrot.lane.b32.xlu0 %v2673, 104
      %v2708 = vpop.permute.xlu0 %2707
      %2709 = vrot.lane.b32.xlu0 %v2674, 104
      %v2710 = vpop.permute.xlu0 %2709
      %2711 = vrot.lane.b32.xlu0 %v2675, 104
      %v2712 = vpop.permute.xlu0 %2711
      %2713 = vrot.lane.b32.xlu0 %v2676, 104
      %v2714 = vpop.permute.xlu0 %2713
      %2715 = vrot.lane.b32.xlu0 %v2677, 104
      %v2716 = vpop.permute.xlu0 %2715
      %2717 = vrot.lane.b32.xlu0 %v2678, 104
      %v2718 = vpop.permute.xlu0 %2717
      %2719 = vrot.lane.b32.xlu0 %v2679, 104
      %v2720 = vpop.permute.xlu0 %2719
      %2721 = vrot.lane.b32.xlu0 %v2680, 104
      %v2722 = vpop.permute.xlu0 %2721
      %2723 = vrot.lane.b32.xlu0 %v2681, 104
      %v2724 = vpop.permute.xlu0 %2723
      %2725 = vrot.lane.b32.xlu0 %v2682, 104
      %v2726 = vpop.permute.xlu0 %2725
      %2727 = vrot.lane.b32.xlu0 %v2683, 104
      %v2728 = vpop.permute.xlu0 %2727
      %2729 = vrot.lane.b32.xlu0 %v2684, 104
      %v2730 = vpop.permute.xlu0 %2729
      %2731 = vrot.lane.b32.xlu0 %v2685, 104
      %v2732 = vpop.permute.xlu0 %2731
      %2733 = vrot.lane.b32.xlu0 %v2686, 104
      %v2734 = vpop.permute.xlu0 %2733
      %vm2751 = vcmask 884544
      %2752 = vst.msk [vmem:[#allocation2] sm:$0xff] %vm2751, %v2704
      %2753 = vst.msk [vmem:[#allocation2 + $0x8] sm:$0xff] %vm2751, %v2706
      %2754 = vst.msk [vmem:[#allocation2 + $0x10] sm:$0xff] %vm2751, %v2708
      %2755 = vst.msk [vmem:[#allocation2 + $0x18] sm:$0xff] %vm2751, %v2710
      %2756 = vst.msk [vmem:[#allocation2 + $0x20] sm:$0xff] %vm2751, %v2712
      %2757 = vst.msk [vmem:[#allocation2 + $0x28] sm:$0xff] %vm2751, %v2714
      %2758 = vst.msk [vmem:[#allocation2 + $0x30] sm:$0xff] %vm2751, %v2716
      %2759 = vst.msk [vmem:[#allocation2 + $0x38] sm:$0xff] %vm2751, %v2718
      %2760 = vst.msk [vmem:[#allocation2 + $0x40] sm:$0xff] %vm2751, %v2720
      %2761 = vst.msk [vmem:[#allocation2 + $0x48] sm:$0xff] %vm2751, %v2722
      %2762 = vst.msk [vmem:[#allocation2 + $0x50] sm:$0xff] %vm2751, %v2724
      %2763 = vst.msk [vmem:[#allocation2 + $0x58] sm:$0xff] %vm2751, %v2726
      %2764 = vst.msk [vmem:[#allocation2 + $0x60] sm:$0xff] %vm2751, %v2728
      %2765 = vst.msk [vmem:[#allocation2 + $0x68] sm:$0xff] %vm2751, %v2730
      %2766 = vst.msk [vmem:[#allocation2 + $0x70] sm:$0xff] %vm2751, %v2732
      %2767 = vst.msk [vmem:[#allocation2 + $0x78] sm:$0xff] %vm2751, %v2734
      %v2768 = vld [vmem:[#allocation2] sm:$0xff]
      %v2769 = vld [vmem:[#allocation2 + $0x8] sm:$0xff]
      %v2770 = vld [vmem:[#allocation2 + $0x10] sm:$0xff]
      %v2771 = vld [vmem:[#allocation2 + $0x18] sm:$0xff]
      %v2772 = vld [vmem:[#allocation2 + $0x20] sm:$0xff]
      %v2773 = vld [vmem:[#allocation2 + $0x28] sm:$0xff]
      %v2774 = vld [vmem:[#allocation2 + $0x30] sm:$0xff]
      %v2775 = vld [vmem:[#allocation2 + $0x38] sm:$0xff]
      %v2776 = vld [vmem:[#allocation2 + $0x40] sm:$0xff]
      %v2777 = vld [vmem:[#allocation2 + $0x48] sm:$0xff]
      %v2778 = vld [vmem:[#allocation2 + $0x50] sm:$0xff]
      %v2779 = vld [vmem:[#allocation2 + $0x58] sm:$0xff]
      %v2780 = vld [vmem:[#allocation2 + $0x60] sm:$0xff]
      %v2781 = vld [vmem:[#allocation2 + $0x68] sm:$0xff]
      %v2782 = vld [vmem:[#allocation2 + $0x70] sm:$0xff]
      %v2783 = vld [vmem:[#allocation2 + $0x78] sm:$0xff]
      %v2784 = vpack.c.bf16 %v2769, %v2768
      %v2785 = vpack.c.bf16 %v2771, %v2770
      %v2786 = vpack.c.bf16 %v2773, %v2772
      %v2787 = vpack.c.bf16 %v2775, %v2774
      %v2788 = vpack.c.bf16 %v2777, %v2776
      %v2789 = vpack.c.bf16 %v2779, %v2778
      %v2790 = vpack.c.bf16 %v2781, %v2780
      %v2791 = vpack.c.bf16 %v2783, %v2782
      %v2792 = vld [vmem:[%s1] sm:$0xf]
      %v2793 = vld [vmem:[%s1 + $0x4] sm:$0xf]
      %v2794 = vld [vmem:[%s1 + $0x8] sm:$0xf]
      %v2795 = vld [vmem:[%s1 + $0xc] sm:$0xf]
      %v2796 = vld [vmem:[%s1 + $0x10] sm:$0xf]
      %v2797 = vld [vmem:[%s1 + $0x14] sm:$0xf]
      %v2798 = vld [vmem:[%s1 + $0x18] sm:$0xf]
      %v2799 = vld [vmem:[%s1 + $0x1c] sm:$0xf]
      %v2800 = vld [vmem:[%s1 + $0x20] sm:$0xf]
      %v2801 = vld [vmem:[%s1 + $0x24] sm:$0xf]
      %v2802 = vld [vmem:[%s1 + $0x28] sm:$0xf]
      %v2803 = vld [vmem:[%s1 + $0x2c] sm:$0xf]
      %v2804 = vld [vmem:[%s1 + $0x30] sm:$0xf]
      %v2805 = vld [vmem:[%s1 + $0x34] sm:$0x3]
      %v2806 = vld [vmem:[%s2] sm:$0x1]
      %v2808 = vlaneseq
      %v2809 = vshrl.u32 %v2808, 7
      %v2810 = vsub.s32 0, %v2809
      %v2811 = vrot.slane %v2806, %v2810
      %v2827 = vunpack.c.l.b16 %v2792
      %v2828 = vunpack.c.l.b16 %v2793
      %v2829 = vunpack.c.l.b16 %v2794
      %v2830 = vunpack.c.l.b16 %v2795
      %v2831 = vunpack.c.l.b16 %v2796
      %v2832 = vunpack.c.l.b16 %v2797
      %v2833 = vunpack.c.l.b16 %v2798
      %v2834 = vunpack.c.l.b16 %v2799
      %v2835 = vunpack.c.l.b16 %v2800
      %v2836 = vunpack.c.l.b16 %v2801
      %v2837 = vunpack.c.l.b16 %v2802
      %v2838 = vunpack.c.l.b16 %v2803
      %v2839 = vunpack.c.l.b16 %v2804
      %v2840 = vunpack.c.l.b16 %v2805
      %v2841 = vpack.c.b16 %v2828, %v2827
      %v2842 = vpack.c.b16 %v2830, %v2829
      %v2843 = vpack.c.b16 %v2832, %v2831
      %v2844 = vpack.c.b16 %v2834, %v2833
      %v2845 = vpack.c.b16 %v2836, %v2835
      %v2846 = vpack.c.b16 %v2838, %v2837
      %v2847 = vpack.c.b16 %v2840, %v2839
      %vm2854 = vcmask 883712
      %v2856 = vsel %vm2854, %v2784, 0
      %v2859 = vsel %vm2854, %v2785, 0
      %v2862 = vsel %vm2854, %v2786, 0
      %v2865 = vsel %vm2854, %v2787, 0
      %v2868 = vsel %vm2854, %v2788, 0
      %v2871 = vsel %vm2854, %v2789, 0
      %v2874 = vsel %vm2854, %v2790, 0
      %v2877 = vsel %vm2854, %v2791, 0
      %vm2879 = vcmask 1045504
      %v2881 = vsel %vm2879, %v2847, 0
      %2883 = vmatprep.subr.bf16.mxu0 0
      %2884 = vmatpush1.bf16.msra.mxu0 0
      %2885 = vmatprep.subr.bf16.mxu0 0
      %2886 = vmatpush1.bf16.msra.mxu0 %v2881
      %2887 = vmatprep.subr.bf16.mxu0 0
      %2888 = vmatpush1.bf16.msra.mxu0 %v2846
      %2889 = vmatprep.subr.bf16.mxu0 0
      %2890 = vmatpush1.bf16.msra.mxu0 %v2845
      %2891 = vmatprep.subr.bf16.mxu0 0
      %2892 = vmatpush1.bf16.msra.mxu0 %v2844
      %2893 = vmatprep.subr.bf16.mxu0 0
      %2894 = vmatpush1.bf16.msra.mxu0 %v2843
      %2895 = vmatprep.subr.bf16.mxu0 0
      %2896 = vmatpush1.bf16.msra.mxu0 %v2842
      %2897 = vmatprep.subr.bf16.mxu0 0
      %2898 = vmatpush1.bf16.msra.mxu0 %v2841
      %2899 = vmatprep.subr.bf16.mxu0 0
      %2900 = vmatpush2.bf16.msra.mxu0 0
      %2901 = vmatprep.subr.bf16.mxu0 0
      %2902 = vmatpush2.bf16.msra.mxu0 0
      %2903 = vmatprep.subr.bf16.mxu0 0
      %2904 = vmatpush2.bf16.msra.mxu0 0
      %2905 = vmatprep.subr.bf16.mxu0 0
      %2906 = vmatpush2.bf16.msra.mxu0 0
      %2907 = vmatprep.subr.bf16.mxu0 0
      %2908 = vmatpush2.bf16.msra.mxu0 0
      %2909 = vmatprep.subr.bf16.mxu0 0
      %2910 = vmatpush2.bf16.msra.mxu0 0
      %2911 = vmatprep.subr.bf16.mxu0 0
      %2912 = vmatpush2.bf16.msra.mxu0 0
      %2913 = vmatprep.subr.bf16.mxu0 0
      %2914 = vmatpush2.bf16.msra.mxu0 0
      %2915 = vmatprep.mubr.bf16.mxu0 0
      %2916 = vmatmul.mubr.bf16.gmra.mxu0 %v2856
      %v2917 = vpop.f32.mrf.mxu0
      %v2918 = vadd.f32 %v2811, %v2917
      %v2919 = vpop.f32.mrf.mxu0
      %v2920 = vpop.f32.mrf.mxu0
      %v2921 = vadd.f32 %v2811, %v2920
      %v2922 = vpop.f32.mrf.mxu0
      %2923 = vmatprep.mubr.bf16.mxu0 0
      %2924 = vmatmul.mubr.bf16.gmra.mxu0 %v2859
      %v2925 = vpop.f32.mrf.mxu0
      %v2926 = vadd.f32 %v2811, %v2925
      %v2927 = vpop.f32.mrf.mxu0
      %v2928 = vpop.f32.mrf.mxu0
      %v2929 = vadd.f32 %v2811, %v2928
      %v2930 = vpop.f32.mrf.mxu0
      %2931 = vmatprep.mubr.bf16.mxu0 0
      %2932 = vmatmul.mubr.bf16.gmra.mxu0 %v2862
      %v2933 = vpop.f32.mrf.mxu0
      %v2934 = vadd.f32 %v2811, %v2933
      %v2935 = vpop.f32.mrf.mxu0
      %v2936 = vpop.f32.mrf.mxu0
      %v2937 = vadd.f32 %v2811, %v2936
      %v2938 = vpop.f32.mrf.mxu0
      %2939 = vmatprep.mubr.bf16.mxu0 0
      %2940 = vmatmul.mubr.bf16.gmra.mxu0 %v2865
      %v2941 = vpop.f32.mrf.mxu0
      %v2942 = vadd.f32 %v2811, %v2941
      %v2943 = vpop.f32.mrf.mxu0
      %v2944 = vpop.f32.mrf.mxu0
      %v2945 = vadd.f32 %v2811, %v2944
      %v2946 = vpop.f32.mrf.mxu0
      %2947 = vmatprep.mubr.bf16.mxu0 0
      %2948 = vmatmul.mubr.bf16.gmra.mxu0 %v2868
      %v2949 = vpop.f32.mrf.mxu0
      %v2950 = vadd.f32 %v2811, %v2949
      %v2951 = vpop.f32.mrf.mxu0
      %v2952 = vpop.f32.mrf.mxu0
      %v2953 = vadd.f32 %v2811, %v2952
      %v2954 = vpop.f32.mrf.mxu0
      %2955 = vmatprep.mubr.bf16.mxu0 0
      %2956 = vmatmul.mubr.bf16.gmra.mxu0 %v2871
      %v2957 = vpop.f32.mrf.mxu0
      %v2958 = vadd.f32 %v2811, %v2957
      %v2959 = vpop.f32.mrf.mxu0
      %v2960 = vpop.f32.mrf.mxu0
      %v2961 = vadd.f32 %v2811, %v2960
      %v2962 = vpop.f32.mrf.mxu0
      %2963 = vmatprep.mubr.bf16.mxu0 0
      %2964 = vmatmul.mubr.bf16.gmra.mxu0 %v2874
      %v2965 = vpop.f32.mrf.mxu0
      %v2966 = vadd.f32 %v2811, %v2965
      %v2967 = vpop.f32.mrf.mxu0
      %v2968 = vpop.f32.mrf.mxu0
      %v2969 = vadd.f32 %v2811, %v2968
      %v2970 = vpop.f32.mrf.mxu0
      %2971 = vmatprep.mubr.bf16.mxu0 0
      %2972 = vmatmul.mubr.bf16.gmra.mxu0 %v2877
      %v2973 = vpop.f32.mrf.mxu0
      %v2974 = vadd.f32 %v2811, %v2973
      %v2975 = vpop.f32.mrf.mxu0
      %v2976 = vpop.f32.mrf.mxu0
      %v2977 = vadd.f32 %v2811, %v2976
      %v2978 = vpop.f32.mrf.mxu0
      %2979 = vdwg.mxu0
      %2980 = vxpose.xlu0.b32.start [1/16] %v2918, 128
      %2981 = vxpose.xlu0.b32.cont [2/16] %v2921, 128
      %2982 = vxpose.xlu0.b32.cont [3/16] %v2926, 128
      %2983 = vxpose.xlu0.b32.cont [4/16] %v2929, 128
      %2984 = vxpose.xlu0.b32.cont [5/16] %v2934, 128
      %2985 = vxpose.xlu0.b32.cont [6/16] %v2937, 128
      %2986 = vxpose.xlu0.b32.cont [7/16] %v2942, 128
      %2987 = vxpose.xlu0.b32.cont [8/16] %v2945, 128
      %2988 = vxpose.xlu0.b32.cont [9/16] %v2950, 128
      %2989 = vxpose.xlu0.b32.cont [10/16] %v2953, 128
      %2990 = vxpose.xlu0.b32.cont [11/16] %v2958, 128
      %2991 = vxpose.xlu0.b32.cont [12/16] %v2961, 128
      %2992 = vxpose.xlu0.b32.cont [13/16] %v2966, 128
      %2993 = vxpose.xlu0.b32.cont [14/16] %v2969, 128
      %2994 = vxpose.xlu0.b32.cont [15/16] %v2974, 128
      %2995 = vxpose.xlu0.b32.end [16/16] %v2977, 128
      %v2996 = vpop.trf.xlu0
      %v2997 = vpop.trf.xlu0
      %v2998 = vpop.trf.xlu0
      %v2999 = vpop.trf.xlu0
      %v3000 = vpop.trf.xlu0
      %v3001 = vpop.trf.xlu0
      %v3002 = vpop.trf.xlu0
      %v3003 = vpop.trf.xlu0
      %v3004 = vpop.trf.xlu0
      %v3005 = vpop.trf.xlu0
      %v3006 = vpop.trf.xlu0
      %v3007 = vpop.trf.xlu0
      %v3008 = vpop.trf.xlu0
      %v3009 = vpop.trf.xlu0
      %v3010 = vpop.trf.xlu0
      %v3011 = vpop.trf.xlu0
      %3012 = vst [vmem:[%s190] sm:$0x7] %v2996
      %p3013 = scmp.lt.s32.totalorder %s18, 1
      %s3014 = scalar_select %p3013, %s18, 1
      %p3015 = scmp.lt.s32.totalorder %s19, 1
      %s3016 = scalar_select %p3015, %s19, 1
      %s3017 = smul.addr %s3014, 2
      %s3018 = sadd.s32 %s3016, %s3017
      %s3019 = smul.addr %s3018, 4
      %s3020 = scalar_lea.vmem %s3, %s3019
      // Predicated region
      $region33: #{tpu_custom_call.1} parent=31 // pred_check
        %p3021 = pneg %p114
      $region34: #{tpu_custom_call.1} parent=31 // pred_check_branch
        %3023 = sbr.rel (%p3021) target = $region36
      $region35: #{tpu_custom_call.1} parent=31 // pred_region
        _
      $region36: #{tpu_custom_call.1} parent=31 // pred_fallthru
        _
    $region32: #{tpu_custom_call.1} parent=5 // pred_fallthru
      _
    %p3024 = scmp.le.s32.totalorder 2, %s9
    // Predicated region
    $region37: #{tpu_custom_call.1} parent=5 // pred_check
      %p3025 = pneg %p3024
    $region38: #{tpu_custom_call.1} parent=5 // pred_check_branch
      %3027 = sbr.rel (%p3025) target = $region40
    $region39: #{tpu_custom_call.1} parent=5 // pred_region
      %s3028 = ssub.s32 %s9, 2
      // Predicated region
      $region41: #{tpu_custom_call.1} parent=39 // pred_check
        %p3029 = pneg %p120
      $region42: #{tpu_custom_call.1} parent=39 // pred_check_branch
        %3031 = sbr.rel (%p3029) target = $region44
      $region43: #{tpu_custom_call.1} parent=39 // pred_region
        %p3032 = scmp.lt.s32.totalorder %s20, 1
        %s3033 = scalar_select %p3032, %s20, 1
        %p3034 = scmp.lt.s32.totalorder %s21, 1
        %s3035 = scalar_select %p3034, %s21, 1
        %s3036 = smul.addr %s3033, 2
        %s3037 = sadd.s32 %s3035, %s3036
        %s3038 = smul.addr %s3037, 4
        %s3039 = scalar_lea.vmem %s3, %s3038
      $region44: #{tpu_custom_call.1} parent=39 // pred_fallthru
        _
    $region40: #{tpu_custom_call.1} parent=5 // pred_fallthru
      _
  $region6: #{tpu_custom_call.1} parent=0 // loop_footer
    %s13 = sadd.s32 1, %s9
  $region7: #{tpu_custom_call.1} parent=0 // loop_footer_branch
    %8 = sbr.rel target = $region3
  $region8: #{tpu_custom_call.1} parent=0 // loop_exit
    _

</llo_original>
